<compile_context>
chip_gen: v6e
topology: v6e:2x2x1
jax: 0.10.0
libtpu: 0.0.40
codegen_flags: <defaults>
</compile_context>

<pallas_src>
import math
from functools import partial

import jax
import jax.numpy as jnp
from jax.experimental import pallas as pl
from jax.experimental.pallas import tpu as pltpu


# ----------------------------------------------------------------------------
# helpers
# ----------------------------------------------------------------------------
def _round_up(x, m):
    return (x + m - 1) // m * m


def _pick_tile(total, quantum, max_tile):
    """Largest multiple of `quantum` that divides `total` and is <= max_tile."""
    best = quantum
    t = quantum
    lim = min(total, max_tile)
    while t <= lim:
        if total % t == 0:
            best = t
        t += quantum
    return best


def _itemsize(dtype):
    return jnp.dtype(dtype).itemsize


# Safe on v7x (64 MiB physical VMEM per TC) as well as v5e/v6e (128 MiB).
_VMEM_LIMIT = 48 << 20
_MAX_TM = 256   # row tile cap
_MAX_TN = 512   # output-column tile cap
_MAX_TK = 512   # contraction tile cap (only multi-step for large dff)


# ----------------------------------------------------------------------------
# 1) Fused LayerNorm + Linear:  y = act(LN(x) @ W + b)
#    Grid (M//tm, N//tn); full K (= padded d_model) per tile, no K reduction.
# ----------------------------------------------------------------------------
def _make_ln_linear_kernel(d_valid, eps, activation):
    inv_d = 1.0 / float(d_valid)

    def kernel(x_ref, g_ref, bn_ref, w_ref, bias_ref, o_ref):
        x = x_ref[...].astype(jnp.float32)                        # (tm, Kp)
        lane = jax.lax.broadcasted_iota(jnp.int32, x.shape, 1)
        valid = lane < d_valid
        xz = jnp.where(valid, x, 0.0)
        mean = jnp.sum(xz, axis=-1, keepdims=True) * inv_d
        diff = jnp.where(valid, x - mean, 0.0)
        var = jnp.sum(diff * diff, axis=-1, keepdims=True) * inv_d
        xn = diff * jax.lax.rsqrt(var + eps) * g_ref[...] + bn_ref[...]
        out = jnp.dot(xn.astype(x_ref.dtype), w_ref[...],
                      preferred_element_type=jnp.float32)
        out = out + bias_ref[...]
        if activation == "relu":
            out = jnp.maximum(out, 0.0)
        o_ref[...] = out.astype(o_ref.dtype)

    return kernel


def ln_linear(x, gamma, beta, w, bias, *, d_valid, eps=1e-5, activation=None):
    """x: (M, Kp), gamma/beta: (1, Kp) f32, w: (Kp, Np), bias: (1, Np) f32."""
    M, Kp = x.shape
    Np = w.shape[1]
    tm = _pick_tile(M, 8, _MAX_TM)
    tn = _pick_tile(Np, 128, _MAX_TN)
    grid = (M // tm, Np // tn)

    cost = pl.CostEstimate(
        flops=int(2 * M * Np * Kp + 8 * M * Kp),
        transcendentals=int(M),
        bytes_accessed=int((M * Kp + Kp * Np + M * Np) * _itemsize(x.dtype)),
    )
    return pl.pallas_call(
        _make_ln_linear_kernel(d_valid, eps, activation),
        out_shape=jax.ShapeDtypeStruct((M, Np), x.dtype),
        grid_spec=pl.GridSpec(
            grid=grid,
            in_specs=[
                pl.BlockSpec((tm, Kp), lambda i, j: (i, 0)),
                pl.BlockSpec((1, Kp), lambda i, j: (0, 0)),
                pl.BlockSpec((1, Kp), lambda i, j: (0, 0)),
                pl.BlockSpec((Kp, tn), lambda i, j: (0, j)),
                pl.BlockSpec((1, tn), lambda i, j: (0, j)),
            ],
            out_specs=pl.BlockSpec((tm, tn), lambda i, j: (i, j)),
        ),
        compiler_params=pltpu.CompilerParams(
            dimension_semantics=("parallel", "parallel"),
            vmem_limit_bytes=_VMEM_LIMIT,
        ),
        cost_estimate=cost,
    )(x, gamma, beta, w, bias)


# ----------------------------------------------------------------------------
# 2) Plain Linear: y = act(x @ W + b) [+ residual]
#    Single-K-step fast path writes o_ref directly (no f32 scratch accumulator).
# ----------------------------------------------------------------------------
def _make_linear_kernel(n_k, activation, has_residual):
    def kernel(*refs):
        x_ref, w_ref, b_ref = refs[0], refs[1], refs[2]
        idx = 3
        res_ref = None
        if has_residual:
            res_ref = refs[idx]
            idx += 1
        o_ref = refs[idx]
        idx += 1
        acc_ref = refs[idx] if n_k > 1 else None

        def epilogue(acc):
            out = acc + b_ref[...].astype(jnp.float32)
            if activation == "relu":
                out = jnp.maximum(out, 0.0)
            if has_residual:
                out = out + res_ref[...].astype(jnp.float32)
            o_ref[...] = out.astype(o_ref.dtype)

        partial_dot = jnp.dot(x_ref[...], w_ref[...],
                              preferred_element_type=jnp.float32)
        if n_k == 1:
            epilogue(partial_dot)
        else:
            k = pl.program_id(2)

            @pl.when(k == 0)
            def _():
                acc_ref[...] = jnp.zeros_like(acc_ref)

            acc_ref[...] += partial_dot

            @pl.when(k == n_k - 1)
            def _():
                epilogue(acc_ref[...])

    return kernel


def linear(x, w, bias, *, activation=None, residual=None):
    """x: (M, K), w: (K, N), bias: (1, N) f32 -> (M, N)."""
    M, K = x.shape
    N = w.shape[1]
    tm = _pick_tile(M, 8, _MAX_TM)
    tn = _pick_tile(N, 128, _MAX_TN)
    tk = _pick_tile(K, 128, _MAX_TK)
    n_k = K // tk
    grid = (M // tm, N // tn, n_k)

    operands = [x, w, bias]
    in_specs = [
        pl.BlockSpec((tm, tk), lambda i, j, k: (i, k)),
        pl.BlockSpec((tk, tn), lambda i, j, k: (k, j)),
        pl.BlockSpec((1, tn), lambda i, j, k: (0, j)),
    ]
    if residual is not None:
        operands.append(residual)
        in_specs.append(pl.BlockSpec((tm, tn), lambda i, j, k: (i, j)))

    scratch = [] if n_k == 1 else [pltpu.VMEM((tm, tn), jnp.float32)]

    cost = pl.CostEstimate(
        flops=int(2 * M * N * K),
        transcendentals=0,
        bytes_accessed=int((M * K + K * N + 2 * M * N) * _itemsize(x.dtype)),
    )
    return pl.pallas_call(
        _make_linear_kernel(n_k, activation, residual is not None),
        out_shape=jax.ShapeDtypeStruct((M, N), x.dtype),
        grid_spec=pltpu.PrefetchScalarGridSpec(
            num_scalar_prefetch=0,
            grid=grid,
            in_specs=in_specs,
            out_specs=pl.BlockSpec((tm, tn), lambda i, j, k: (i, j)),
            scratch_shapes=scratch,
        ),
        compiler_params=pltpu.CompilerParams(
            dimension_semantics=("parallel", "parallel", "arbitrary"),
            vmem_limit_bytes=_VMEM_LIMIT,
        ),
        cost_estimate=cost,
    )(*operands)


# ----------------------------------------------------------------------------
# 3) Multi-head attention, one batch per grid step; heads sliced in-kernel from
#    the fused QKV (self-attn) / Q + fused KV (cross-attn) projections.
#    Mask (causal / padded-key) generated in-kernel; deferred softmax norm.
# ----------------------------------------------------------------------------
def _make_attention_kernel(H, dh, scale, q_off, k_off, v_off,
                           self_attn, s_valid, causal, has_mask, out_dp):
    def kernel(*refs):
        idx = 0
        q_ref = refs[idx]; idx += 1
        if self_attn:
            kv_ref = q_ref
        else:
            kv_ref = refs[idx]; idx += 1
        mask_ref = None
        if has_mask:
            mask_ref = refs[idx]; idx += 1
        o_ref = refs[idx]

        tp = o_ref.shape[1]
        sp = kv_ref.shape[1]

        qv = q_ref[0]                                   # (tp, Wq), input dtype
        kvv = qv if self_attn else kv_ref[0]            # (sp, Wkv)

        bias = jnp.zeros((tp, sp), jnp.float32)
        if has_mask:
            bias = bias + mask_ref[...].astype(jnp.float32)
        if causal:
            row = jax.lax.broadcasted_iota(jnp.int32, (tp, sp), 0)
            col = jax.lax.broadcasted_iota(jnp.int32, (tp, sp), 1)
            bias = jnp.where(col <= row, bias, -1e9)
        if s_valid < sp:
            col = jax.lax.broadcasted_iota(jnp.int32, (tp, sp), 1)
            bias = jnp.where(col < s_valid, bias, -1e9)

        # TODO(synk): flash-style online-softmax KV tiling + lane-dense head
        #             packing for long sequences / large dh.
        parts = []
        for h in range(H):
            qh = qv[:, q_off + h * dh: q_off + (h + 1) * dh]
            kh = kvv[:, k_off + h * dh: k_off + (h + 1) * dh]
            vh = kvv[:, v_off + h * dh: v_off + (h + 1) * dh]
            s = jax.lax.dot_general(qh, kh, (((1,), (1,)), ((), ())),
                                    preferred_element_type=jnp.float32)
            s = s * scale + bias
            m = jnp.max(s, axis=-1, keepdims=True)
            p = jnp.exp(s - m)
            denom = jnp.sum(p, axis=-1, keepdims=True)
            o_h = jnp.dot(p.astype(vh.dtype), vh,
                          preferred_element_type=jnp.float32)
            o_h = o_h * pl.reciprocal(denom, approx=True)   # deferred softmax norm
            parts.append(o_h)
        if out_dp > H * dh:
            parts.append(jnp.zeros((tp, out_dp - H * dh), jnp.float32))
        o_ref[0] = jnp.concatenate(parts, axis=-1).astype(o_ref.dtype)

    return kernel


def attention(q_src, kv_src, *, nhead, dh, q_off, k_off, v_off, dp_out,
              s_valid, causal=False, mask=None):
    """q_src: (B, Tp, Wq).  kv_src: (B, Sp, Wkv) or None (self-attn: K/V live
    inside q_src at k_off / v_off).  mask: optional additive (Tp, Sp) f32."""
    B, Tp, Wq = q_src.shape
    self_attn = kv_src is None
    Sp = Tp if self_attn else kv_src.shape[1]
    scale = 1.0 / math.sqrt(dh)

    operands = [q_src]
    in_specs = [pl.BlockSpec((1, Tp, Wq), lambda b: (b, 0, 0))]
    if not self_attn:
        Wkv = kv_src.shape[2]
        operands.append(kv_src)
        in_specs.append(pl.BlockSpec((1, Sp, Wkv), lambda b: (b, 0, 0)))
    if mask is not None:
        operands.append(mask.astype(jnp.float32))
        in_specs.append(pl.BlockSpec((Tp, Sp), lambda b: (0, 0)))

    D = nhead * dh
    cost = pl.CostEstimate(
        flops=int(4 * B * Tp * Sp * D),
        transcendentals=int(B * nhead * Tp * Sp),
        bytes_accessed=int(B * (Tp * Wq + (0 if self_attn else Sp * kv_src.shape[2])
                                + Tp * dp_out) * _itemsize(q_src.dtype)),
    )
    return pl.pallas_call(
        _make_attention_kernel(nhead, dh, scale, q_off, k_off, v_off,
                               self_attn, s_valid, causal, mask is not None,
                               dp_out),
        out_shape=jax.ShapeDtypeStruct((B, Tp, dp_out), q_src.dtype),
        grid_spec=pl.GridSpec(
            grid=(B,),
            in_specs=in_specs,
            out_specs=pl.BlockSpec((1, Tp, dp_out), lambda b: (b, 0, 0)),
        ),
        compiler_params=pltpu.CompilerParams(
            dimension_semantics=("parallel",),
            vmem_limit_bytes=_VMEM_LIMIT,
        ),
        cost_estimate=cost,
    )(*operands)


# ----------------------------------------------------------------------------
# Parameter preparation (done ONCE, outside the per-call path):
#   * pad weights/biases/LN params to lane-aligned (128-multiple) shapes
#   * fuse self-attn Q/K/V weights into (Dp, 3Dp), cross-attn K/V into (Dp, 2Dp)
# ----------------------------------------------------------------------------
def prepare_params(p, d_model):
    D = d_model
    Dp = _round_up(D, 128)

    def pw(w):
        r, c = w.shape
        return jnp.pad(w, ((0, _round_up(r, 128) - r), (0, _round_up(c, 128) - c)))

    def pb(b):
        n = b.shape[0]
        return jnp.pad(b.astype(jnp.float32), (0, _round_up(n, 128) - n)).reshape(1, -1)

    def pln(v):
        return jnp.pad(v.astype(jnp.float32), (0, Dp - D)).reshape(1, Dp)

    return {
        "sa_wqkv": jnp.concatenate([pw(p["sa_wq"]), pw(p["sa_wk"]), pw(p["sa_wv"])], axis=1),
        "sa_bqkv": jnp.concatenate([pb(p["sa_bq"]), pb(p["sa_bk"]), pb(p["sa_bv"])], axis=1),
        "sa_wo": pw(p["sa_wo"]), "sa_bo": pb(p["sa_bo"]),
        "ca_wq": pw(p["ca_wq"]), "ca_bq": pb(p["ca_bq"]),
        "ca_wkv": jnp.concatenate([pw(p["ca_wk"]), pw(p["ca_wv"])], axis=1),
        "ca_bkv": jnp.concatenate([pb(p["ca_bk"]), pb(p["ca_bv"])], axis=1),
        "ca_wo": pw(p["ca_wo"]), "ca_bo": pb(p["ca_bo"]),
        "ff_w1": pw(p["ff_w1"]), "ff_b1": pb(p["ff_b1"]),
        "ff_w2": pw(p["ff_w2"]), "ff_b2": pb(p["ff_b2"]),
        "norm1_w": pln(p["norm1_w"]), "norm1_b": pln(p["norm1_b"]),
        "norm2_w": pln(p["norm2_w"]), "norm2_b": pln(p["norm2_b"]),
        "norm3_w": pln(p["norm3_w"]), "norm3_b": pln(p["norm3_b"]),
    }


# ----------------------------------------------------------------------------
# Full decoder-layer forward (pre-norm path).
# Activations are laid out batch-major and padded to (Tp, Dp) ONCE at entry;
# they stay lane-padded through LN / attention / FFN and are unpadded at exit.
# ----------------------------------------------------------------------------
@partial(jax.jit, static_argnames=("nhead", "causal"))
def transformer_decoder_layer(tgt, memory, prep, *, nhead, causal=False,
                              tgt_mask=None, memory_mask=None):
    """tgt: (T, B, D), memory: (S, B, D)  (batch_first=False, as in the module)."""
    T, B, D = tgt.shape
    S = memory.shape[0]
    H = nhead
    dh = D // H
    Dp = _round_up(D, 128)
    Tp = _round_up(T, 8)
    Sp = _round_up(S, 8)

    # one-time layout change: (T,B,D) -> (B*Tp, Dp), batch-major rows
    x = jnp.transpose(tgt, (1, 0, 2))
    x = jnp.pad(x, ((0, 0), (0, Tp - T), (0, Dp - D)))
    x2 = x.reshape(B * Tp, Dp)
    mem = jnp.transpose(memory, (1, 0, 2))
    mem = jnp.pad(mem, ((0, 0), (0, Sp - S), (0, Dp - D)))
    mem2 = mem.reshape(B * Sp, Dp)

    sa_mask = None
    if tgt_mask is not None:
        sa_mask = jnp.pad(tgt_mask.astype(jnp.float32),
                          ((0, Tp - T), (0, Tp - T)))
    ca_mask = None
    if memory_mask is not None:
        ca_mask = jnp.pad(memory_mask.astype(jnp.float32),
                          ((0, Tp - T), (0, Sp - S)))

    # ---- self-attention block: LN1 fused into the fused QKV projection ----
    qkv = ln_linear(x2, prep["norm1_w"], prep["norm1_b"],
                    prep["sa_wqkv"], prep["sa_bqkv"], d_valid=D)
    attn = attention(qkv.reshape(B, Tp, 3 * Dp), None, nhead=H, dh=dh,
                     q_off=0, k_off=Dp, v_off=2 * Dp, dp_out=Dp,
                     s_valid=T, causal=causal, mask=sa_mask)
    x2 = linear(attn.reshape(B * Tp, Dp), prep["sa_wo"], prep["sa_bo"],
                residual=x2)

    # ---- cross-attention block: LN2 fused into Q; fused KV from memory ----
    q = ln_linear(x2, prep["norm2_w"], prep["norm2_b"],
                  prep["ca_wq"], prep["ca_bq"], d_valid=D)
    kv = linear(mem2, prep["ca_wkv"], prep["ca_bkv"])
    attn = attention(q.reshape(B, Tp, Dp), kv.reshape(B, Sp, 2 * Dp),
                     nhead=H, dh=dh, q_off=0, k_off=0, v_off=Dp, dp_out=Dp,
                     s_valid=S, causal=False, mask=ca_mask)
    x2 = linear(attn.reshape(B * Tp, Dp), prep["ca_wo"], prep["ca_bo"],
                residual=x2)

    # ---- feed-forward block: LN3 fused into FF1 (+ReLU), FF2 fuses residual ----
    h = ln_linear(x2, prep["norm3_w"], prep["norm3_b"],
                  prep["ff_w1"], prep["ff_b1"], d_valid=D, activation="relu")
    x2 = linear(h, prep["ff_w2"], prep["ff_b2"], residual=x2)

    # TODO(synk): the reference also returns attn_map from its custom MHA.
    out = x2.reshape(B, Tp, Dp)[:, :T, :D]
    return jnp.transpose(out, (1, 0, 2))


# ----------------------------------------------------------------------------
# Pure-JAX reference (same math, no Pallas) for correctness checking
# ----------------------------------------------------------------------------
def decoder_layer_ref(tgt, memory, p, *, nhead, tgt_mask=None, memory_mask=None,
                      eps=1e-5):
    T, B, D = tgt.shape
    H = nhead
    dh = D // H

    def ln(x, w, b):
        mu = jnp.mean(x, -1, keepdims=True)
        var = jnp.mean(jnp.square(x - mu), -1, keepdims=True)
        return (x - mu) * jax.lax.rsqrt(var + eps) * w + b

    def heads(t):  # (L, B, D) -> (B, H, L, dh)
        L = t.shape[0]
        return t.reshape(L, B, H, dh).transpose(1, 2, 0, 3)

    def mha(xq, xkv, pre, mask):
        q = xq @ p[pre + "wq"] + p[pre + "bq"]
        k = xkv @ p[pre + "wk"] + p[pre + "bk"]
        v = xkv @ p[pre + "wv"] + p[pre + "bv"]
        s = jnp.einsum("bhtd,bhsd->bhts", heads(q), heads(k)) / math.sqrt(dh)
        if mask is not None:
            s = s + mask
        a = jax.nn.softmax(s, axis=-1)
        o = jnp.einsum("bhts,bhsd->bhtd", a, heads(v))
        o = o.transpose(2, 0, 1, 3).reshape(-1, B, D)
        return o @ p[pre + "wo"] + p[pre + "bo"]

    x = tgt
    x = x + mha(ln(x, p["norm1_w"], p["norm1_b"]),
                ln(x, p["norm1_w"], p["norm1_b"]), "sa_", tgt_mask)
    x = x + mha(ln(x, p["norm2_w"], p["norm2_b"]), memory, "ca_", memory_mask)
    h = ln(x, p["norm3_w"], p["norm3_b"])
    x = x + (jnp.maximum(h @ p["ff_w1"] + p["ff_b1"], 0.0) @ p["ff_w2"] + p["ff_b2"])
    return x


# ----------------------------------------------------------------------------
# Deterministic parameter init + demo
# ----------------------------------------------------------------------------
def init_params(key, d_model, dff):
    keys = iter(jax.random.split(key, 32))

    def wmat(fan_in, fan_out):
        return jax.random.normal(next(keys), (fan_in, fan_out), jnp.float32) / math.sqrt(fan_in)

    def bvec(n):
        return 0.02 * jax.random.normal(next(keys), (n,), jnp.float32)

    p = {}
    for pre in ("sa_", "ca_"):
        for name in ("q", "k", "v", "o"):
            p[pre + "w" + name] = wmat(d_model, d_model)
            p[pre + "b" + name] = bvec(d_model)
    p["ff_w1"] = wmat(d_model, dff)
    p["ff_b1"] = bvec(dff)
    p["ff_w2"] = wmat(dff, d_model)
    p["ff_b2"] = bvec(d_model)
    for i in (1, 2, 3):
        p[f"norm{i}_w"] = 1.0 + 0.1 * jax.random.normal(next(keys), (d_model,), jnp.float32)
        p[f"norm{i}_b"] = 0.05 * jax.random.normal(next(keys), (d_model,), jnp.float32)
    return p


if __name__ == "__main__":
    T, S, B, D, H, DFF = 8, 8, 2, 32, 4, 64

    key = jax.random.PRNGKey(0)
    k_tgt, k_mem, k_par = jax.random.split(key, 3)
    tgt = jax.random.normal(k_tgt, (T, B, D), jnp.float32)
    memory = jax.random.normal(k_mem, (S, B, D), jnp.float32)
    params = init_params(k_par, D, DFF)
    prep = prepare_params(params, D)      # one-time weight padding / fusion

    # self-attention uses the in-kernel causal mask (no (T,T) mask DMA)
    out = transformer_decoder_layer(tgt, memory, prep, nhead=H, causal=True)
    out = jax.block_until_ready(out)

    causal_mask = jnp.where(
        jnp.arange(T)[:, None] >= jnp.arange(T)[None, :], 0.0, -1e9
    ).astype(jnp.float32)
    ref = decoder_layer_ref(tgt, memory, params, nhead=H, tgt_mask=causal_mask)

    assert out.shape == tgt.shape
    max_err = float(jnp.max(jnp.abs(out - ref)))
    assert jnp.allclose(out, ref, atol=2e-2, rtol=2e-2), f"max abs err {max_err}"

    print("KERNEL_OK")
</pallas_src>

<mosaic_0001>
module attributes {stable_mosaic.version = 11 : i64} {
  func.func @kernel(%arg0: i32, %arg1: i32, %arg2: memref<16x128xf32, #tpu.memory_space<vmem>>, %arg3: memref<1x128xf32, #tpu.memory_space<vmem>>, %arg4: memref<1x128xf32, #tpu.memory_space<vmem>>, %arg5: memref<128x384xf32, #tpu.memory_space<vmem>>, %arg6: memref<1x384xf32, #tpu.memory_space<vmem>>, %arg7: memref<16x384xf32, #tpu.memory_space<vmem>>) attributes {dimension_semantics = [#tpu.dimension_semantics<parallel>, #tpu.dimension_semantics<parallel>], iteration_bounds = array<i64: 1, 1>, scalar_prefetch = 0 : i64, scratch_operands = 0 : i64, tpu.core_type = #tpu.core_type<tc>, window_params = [{transform_indices = @transform_0, window_bounds = array<i64: 16, 128>}, {pipeline_mode = #tpu.pipeline_mode<synchronous>, transform_indices = @transform_1, window_bounds = array<i64: 1, 128>}, {pipeline_mode = #tpu.pipeline_mode<synchronous>, transform_indices = @transform_2, window_bounds = array<i64: 1, 128>}, {transform_indices = @transform_3, window_bounds = array<i64: 128, 384>}, {transform_indices = @transform_4, window_bounds = array<i64: 1, 384>}, {transform_indices = @transform_5, window_bounds = array<i64: 16, 384>}]} {
    %c0 = arith.constant 0 : index
    %c0_0 = arith.constant 0 : index
    %0 = vector.load %arg2[%c0, %c0_0] : memref<16x128xf32, #tpu.memory_space<vmem>>, vector<16x128xf32>
    %1 = tpu.iota {dimensions = array<i32: 1>} : vector<16x128xi32>
    %c32_i32 = arith.constant 32 : i32
    %2 = vector.broadcast %c32_i32 : i32 to vector<16x128xi32>
    %3 = arith.cmpi slt, %1, %2 : vector<16x128xi32>
    %cst = arith.constant 0.000000e+00 : f32
    %4 = vector.broadcast %cst : f32 to vector<16x128xf32>
    %5 = arith.select %3, %0, %4 : vector<16x128xi1>, vector<16x128xf32>
    %cst_1 = arith.constant dense<0.000000e+00> : vector<16xf32>
    %6 = vector.multi_reduction <add>, %5, %cst_1 [1] : vector<16x128xf32> to vector<16xf32>
    %7 = vector.shape_cast %6 : vector<16xf32> to vector<16x1xf32>
    %cst_2 = arith.constant 3.125000e-02 : f32
    %8 = vector.broadcast %cst_2 : f32 to vector<16x1xf32>
    %9 = arith.mulf %7, %8 : vector<16x1xf32>
    %10 = vector.broadcast %9 : vector<16x1xf32> to vector<16x128xf32>
    %11 = arith.subf %0, %10 : vector<16x128xf32>
    %cst_3 = arith.constant 0.000000e+00 : f32
    %12 = vector.broadcast %cst_3 : f32 to vector<16x128xf32>
    %13 = arith.select %3, %11, %12 : vector<16x128xi1>, vector<16x128xf32>
    %14 = arith.mulf %13, %13 : vector<16x128xf32>
    %cst_4 = arith.constant dense<0.000000e+00> : vector<16xf32>
    %15 = vector.multi_reduction <add>, %14, %cst_4 [1] : vector<16x128xf32> to vector<16xf32>
    %16 = vector.shape_cast %15 : vector<16xf32> to vector<16x1xf32>
    %cst_5 = arith.constant 3.125000e-02 : f32
    %17 = vector.broadcast %cst_5 : f32 to vector<16x1xf32>
    %18 = arith.mulf %16, %17 : vector<16x1xf32>
    %cst_6 = arith.constant 9.99999974E-6 : f32
    %19 = vector.broadcast %cst_6 : f32 to vector<16x1xf32>
    %20 = arith.addf %18, %19 : vector<16x1xf32>
    %21 = math.rsqrt %20 : vector<16x1xf32>
    %22 = vector.broadcast %21 : vector<16x1xf32> to vector<16x128xf32>
    %23 = arith.mulf %13, %22 : vector<16x128xf32>
    %c0_7 = arith.constant 0 : index
    %c0_8 = arith.constant 0 : index
    %24 = vector.load %arg3[%c0_7, %c0_8] : memref<1x128xf32, #tpu.memory_space<vmem>>, vector<1x128xf32>
    %25 = vector.broadcast %24 : vector<1x128xf32> to vector<16x128xf32>
    %26 = arith.mulf %23, %25 : vector<16x128xf32>
    %c0_9 = arith.constant 0 : index
    %c0_10 = arith.constant 0 : index
    %27 = vector.load %arg4[%c0_9, %c0_10] : memref<1x128xf32, #tpu.memory_space<vmem>>, vector<1x128xf32>
    %28 = vector.broadcast %27 : vector<1x128xf32> to vector<16x128xf32>
    %29 = arith.addf %26, %28 : vector<16x128xf32>
    %c0_11 = arith.constant 0 : index
    %c0_12 = arith.constant 0 : index
    %30 = vector.load %arg5[%c0_11, %c0_12] : memref<128x384xf32, #tpu.memory_space<vmem>>, vector<128x384xf32>
    %cst_13 = arith.constant dense<0.000000e+00> : vector<16x384xf32>
    %31 = tpu.matmul %29, %30, %cst_13 {dimension_numbers = #tpu.dot_dimension_numbers<[1], [0], [0], [1], [0, 0, 1, 1], [], []>} : vector<16x128xf32>, vector<128x384xf32>, vector<16x384xf32> -> vector<16x384xf32>
    %c0_14 = arith.constant 0 : index
    %c0_15 = arith.constant 0 : index
    %32 = vector.load %arg6[%c0_14, %c0_15] : memref<1x384xf32, #tpu.memory_space<vmem>>, vector<1x384xf32>
    %33 = vector.broadcast %32 : vector<1x384xf32> to vector<16x384xf32>
    %34 = arith.addf %31, %33 : vector<16x384xf32>
    %c0_16 = arith.constant 0 : index
    %c0_17 = arith.constant 0 : index
    %35 = vector.load %arg7[%c0_16, %c0_17] : memref<16x384xf32, #tpu.memory_space<vmem>>, vector<16x384xf32>
    tpu.vector_store %arg7[%c0_16, %c0_17], %34 {strides = array<i32>} : memref<16x384xf32, #tpu.memory_space<vmem>>, vector<16x384xf32>,
    return
  }
  func.func @transform_0(%arg0: i32, %arg1: i32) -> (i32, i32) {
    %c0_i32 = arith.constant 0 : i32
    %c0_i32_0 = arith.constant 0 : i32
    return %arg0, %c0_i32 : i32, i32
  }
  func.func @transform_1(%arg0: i32, %arg1: i32) -> (i32, i32) {
    %c0_i32 = arith.constant 0 : i32
    %c0_i32_0 = arith.constant 0 : i32
    %c0_i32_1 = arith.constant 0 : i32
    return %c0_i32, %c0_i32_0 : i32, i32
  }
  func.func @transform_2(%arg0: i32, %arg1: i32) -> (i32, i32) {
    %c0_i32 = arith.constant 0 : i32
    %c0_i32_0 = arith.constant 0 : i32
    %c0_i32_1 = arith.constant 0 : i32
    return %c0_i32, %c0_i32_0 : i32, i32
  }
  func.func @transform_3(%arg0: i32, %arg1: i32) -> (i32, i32) {
    %c0_i32 = arith.constant 0 : i32
    %c0_i32_0 = arith.constant 0 : i32
    return %c0_i32, %arg1 : i32, i32
  }
  func.func @transform_4(%arg0: i32, %arg1: i32) -> (i32, i32) {
    %c0_i32 = arith.constant 0 : i32
    %c0_i32_0 = arith.constant 0 : i32
    return %c0_i32, %arg1 : i32, i32
  }
  func.func @transform_5(%arg0: i32, %arg1: i32) -> (i32, i32) {
    %c0_i32 = arith.constant 0 : i32
    return %arg0, %arg1 : i32, i32
  }
}

module attributes {stable_mosaic.version = 11 : i64} {
  func.func @kernel(%arg0: i32, %arg1: memref<1x8x384xf32, #tpu.memory_space<vmem>>, %arg2: memref<1x8x128xf32, #tpu.memory_space<vmem>>) attributes {dimension_semantics = [#tpu.dimension_semantics<parallel>], iteration_bounds = array<i64: 2>, scalar_prefetch = 0 : i64, scratch_operands = 0 : i64, tpu.core_type = #tpu.core_type<tc>, window_params = [{transform_indices = @transform_0, window_bounds = array<i64: 1, 8, 384>}, {transform_indices = @transform_1, window_bounds = array<i64: 1, 8, 128>}]} {
    %c0 = arith.constant 0 : index
    %c0_0 = arith.constant 0 : index
    %c0_1 = arith.constant 0 : index
    %0 = vector.load %arg1[%c0, %c0_0, %c0_1] : memref<1x8x384xf32, #tpu.memory_space<vmem>>, vector<1x8x384xf32>
    %1 = vector.shape_cast %0 : vector<1x8x384xf32> to vector<8x384xf32>
    %cst = arith.constant 0.000000e+00 : f32
    %2 = vector.broadcast %cst : f32 to vector<8x8xf32>
    %3 = tpu.iota {dimensions = array<i32: 0>} : vector<8x8xi32>
    %4 = tpu.iota {dimensions = array<i32: 1>} : vector<8x8xi32>
    %5 = arith.cmpi sle, %4, %3 : vector<8x8xi32>
    %cst_2 = arith.constant -1.000000e+09 : f32
    %6 = vector.broadcast %cst_2 : f32 to vector<8x8xf32>
    %7 = arith.select %5, %2, %6 : vector<8x8xi1>, vector<8x8xf32>
    %8 = vector.extract_strided_slice %1 {offsets = [0, 0], sizes = [8, 8], strides = [1, 1]} : vector<8x384xf32> to vector<8x8xf32>
    %9 = vector.extract_strided_slice %1 {offsets = [0, 128], sizes = [8, 8], strides = [1, 1]} : vector<8x384xf32> to vector<8x8xf32>
    %10 = vector.extract_strided_slice %1 {offsets = [0, 256], sizes = [8, 8], strides = [1, 1]} : vector<8x384xf32> to vector<8x8xf32>
    %cst_3 = arith.constant dense<0.000000e+00> : vector<8x8xf32>
    %11 = tpu.matmul %8, %9, %cst_3 {dimension_numbers = #tpu.dot_dimension_numbers<[1], [1], [0], [0], [0, 0, 1, 0], [], []>} : vector<8x8xf32>, vector<8x8xf32>, vector<8x8xf32> -> vector<8x8xf32>
    %cst_4 = arith.constant 0.353553385 : f32
    %12 = vector.broadcast %cst_4 : f32 to vector<8x8xf32>
    %13 = arith.mulf %11, %12 : vector<8x8xf32>
    %14 = arith.addf %13, %7 : vector<8x8xf32>
    %cst_5 = arith.constant dense<0xFF800000> : vector<8xf32>
    %15 = vector.multi_reduction <maximumf>, %14, %cst_5 [1] : vector<8x8xf32> to vector<8xf32>
    %16 = vector.shape_cast %15 : vector<8xf32> to vector<8x1xf32>
    %17 = vector.broadcast %16 : vector<8x1xf32> to vector<8x8xf32>
    %18 = arith.subf %14, %17 : vector<8x8xf32>
    %19 = math.exp %18 : vector<8x8xf32>
    %cst_6 = arith.constant dense<0.000000e+00> : vector<8xf32>
    %20 = vector.multi_reduction <add>, %19, %cst_6 [1] : vector<8x8xf32> to vector<8xf32>
    %21 = vector.shape_cast %20 : vector<8xf32> to vector<8x1xf32>
    %cst_7 = arith.constant dense<0.000000e+00> : vector<8x8xf32>
    %22 = tpu.matmul %19, %10, %cst_7 {dimension_numbers = #tpu.dot_dimension_numbers<[1], [0], [0], [1], [0, 0, 1, 1], [], []>} : vector<8x8xf32>, vector<8x8xf32>, vector<8x8xf32> -> vector<8x8xf32>
    %23 = tpu.reciprocal %21 {approx = true} : vector<8x1xf32> -> vector<8x1xf32>
    %24 = vector.broadcast %23 : vector<8x1xf32> to vector<8x8xf32>
    %25 = arith.mulf %22, %24 : vector<8x8xf32>
    %26 = vector.extract_strided_slice %1 {offsets = [0, 8], sizes = [8, 8], strides = [1, 1]} : vector<8x384xf32> to vector<8x8xf32>
    %27 = vector.extract_strided_slice %1 {offsets = [0, 136], sizes = [8, 8], strides = [1, 1]} : vector<8x384xf32> to vector<8x8xf32>
    %28 = vector.extract_strided_slice %1 {offsets = [0, 264], sizes = [8, 8], strides = [1, 1]} : vector<8x384xf32> to vector<8x8xf32>
    %cst_8 = arith.constant dense<0.000000e+00> : vector<8x8xf32>
    %29 = tpu.matmul %26, %27, %cst_8 {dimension_numbers = #tpu.dot_dimension_numbers<[1], [1], [0], [0], [0, 0, 1, 0], [], []>} : vector<8x8xf32>, vector<8x8xf32>, vector<8x8xf32> -> vector<8x8xf32>
    %cst_9 = arith.constant 0.353553385 : f32
    %30 = vector.broadcast %cst_9 : f32 to vector<8x8xf32>
    %31 = arith.mulf %29, %30 : vector<8x8xf32>
    %32 = arith.addf %31, %7 : vector<8x8xf32>
    %cst_10 = arith.constant dense<0xFF800000> : vector<8xf32>
    %33 = vector.multi_reduction <maximumf>, %32, %cst_10 [1] : vector<8x8xf32> to vector<8xf32>
    %34 = vector.shape_cast %33 : vector<8xf32> to vector<8x1xf32>
    %35 = vector.broadcast %34 : vector<8x1xf32> to vector<8x8xf32>
    %36 = arith.subf %32, %35 : vector<8x8xf32>
    %37 = math.exp %36 : vector<8x8xf32>
    %cst_11 = arith.constant dense<0.000000e+00> : vector<8xf32>
    %38 = vector.multi_reduction <add>, %37, %cst_11 [1] : vector<8x8xf32> to vector<8xf32>
    %39 = vector.shape_cast %38 : vector<8xf32> to vector<8x1xf32>
    %cst_12 = arith.constant dense<0.000000e+00> : vector<8x8xf32>
    %40 = tpu.matmul %37, %28, %cst_12 {dimension_numbers = #tpu.dot_dimension_numbers<[1], [0], [0], [1], [0, 0, 1, 1], [], []>} : vector<8x8xf32>, vector<8x8xf32>, vector<8x8xf32> -> vector<8x8xf32>
    %41 = tpu.reciprocal %39 {approx = true} : vector<8x1xf32> -> vector<8x1xf32>
    %42 = vector.broadcast %41 : vector<8x1xf32> to vector<8x8xf32>
    %43 = arith.mulf %40, %42 : vector<8x8xf32>
    %44 = vector.extract_strided_slice %1 {offsets = [0, 16], sizes = [8, 8], strides = [1, 1]} : vector<8x384xf32> to vector<8x8xf32>
    %45 = vector.extract_strided_slice %1 {offsets = [0, 144], sizes = [8, 8], strides = [1, 1]} : vector<8x384xf32> to vector<8x8xf32>
    %46 = vector.extract_strided_slice %1 {offsets = [0, 272], sizes = [8, 8], strides = [1, 1]} : vector<8x384xf32> to vector<8x8xf32>
    %cst_13 = arith.constant dense<0.000000e+00> : vector<8x8xf32>
    %47 = tpu.matmul %44, %45, %cst_13 {dimension_numbers = #tpu.dot_dimension_numbers<[1], [1], [0], [0], [0, 0, 1, 0], [], []>} : vector<8x8xf32>, vector<8x8xf32>, vector<8x8xf32> -> vector<8x8xf32>
    %cst_14 = arith.constant 0.353553385 : f32
    %48 = vector.broadcast %cst_14 : f32 to vector<8x8xf32>
    %49 = arith.mulf %47, %48 : vector<8x8xf32>
    %50 = arith.addf %49, %7 : vector<8x8xf32>
    %cst_15 = arith.constant dense<0xFF800000> : vector<8xf32>
    %51 = vector.multi_reduction <maximumf>, %50, %cst_15 [1] : vector<8x8xf32> to vector<8xf32>
    %52 = vector.shape_cast %51 : vector<8xf32> to vector<8x1xf32>
    %53 = vector.broadcast %52 : vector<8x1xf32> to vector<8x8xf32>
    %54 = arith.subf %50, %53 : vector<8x8xf32>
    %55 = math.exp %54 : vector<8x8xf32>
    %cst_16 = arith.constant dense<0.000000e+00> : vector<8xf32>
    %56 = vector.multi_reduction <add>, %55, %cst_16 [1] : vector<8x8xf32> to vector<8xf32>
    %57 = vector.shape_cast %56 : vector<8xf32> to vector<8x1xf32>
    %cst_17 = arith.constant dense<0.000000e+00> : vector<8x8xf32>
    %58 = tpu.matmul %55, %46, %cst_17 {dimension_numbers = #tpu.dot_dimension_numbers<[1], [0], [0], [1], [0, 0, 1, 1], [], []>} : vector<8x8xf32>, vector<8x8xf32>, vector<8x8xf32> -> vector<8x8xf32>
    %59 = tpu.reciprocal %57 {approx = true} : vector<8x1xf32> -> vector<8x1xf32>
    %60 = vector.broadcast %59 : vector<8x1xf32> to vector<8x8xf32>
    %61 = arith.mulf %58, %60 : vector<8x8xf32>
    %62 = vector.extract_strided_slice %1 {offsets = [0, 24], sizes = [8, 8], strides = [1, 1]} : vector<8x384xf32> to vector<8x8xf32>
    %63 = vector.extract_strided_slice %1 {offsets = [0, 152], sizes = [8, 8], strides = [1, 1]} : vector<8x384xf32> to vector<8x8xf32>
    %64 = vector.extract_strided_slice %1 {offsets = [0, 280], sizes = [8, 8], strides = [1, 1]} : vector<8x384xf32> to vector<8x8xf32>
    %cst_18 = arith.constant dense<0.000000e+00> : vector<8x8xf32>
    %65 = tpu.matmul %62, %63, %cst_18 {dimension_numbers = #tpu.dot_dimension_numbers<[1], [1], [0], [0], [0, 0, 1, 0], [], []>} : vector<8x8xf32>, vector<8x8xf32>, vector<8x8xf32> -> vector<8x8xf32>
    %cst_19 = arith.constant 0.353553385 : f32
    %66 = vector.broadcast %cst_19 : f32 to vector<8x8xf32>
    %67 = arith.mulf %65, %66 : vector<8x8xf32>
    %68 = arith.addf %67, %7 : vector<8x8xf32>
    %cst_20 = arith.constant dense<0xFF800000> : vector<8xf32>
    %69 = vector.multi_reduction <maximumf>, %68, %cst_20 [1] : vector<8x8xf32> to vector<8xf32>
    %70 = vector.shape_cast %69 : vector<8xf32> to vector<8x1xf32>
    %71 = vector.broadcast %70 : vector<8x1xf32> to vector<8x8xf32>
    %72 = arith.subf %68, %71 : vector<8x8xf32>
    %73 = math.exp %72 : vector<8x8xf32>
    %cst_21 = arith.constant dense<0.000000e+00> : vector<8xf32>
    %74 = vector.multi_reduction <add>, %73, %cst_21 [1] : vector<8x8xf32> to vector<8xf32>
    %75 = vector.shape_cast %74 : vector<8xf32> to vector<8x1xf32>
    %cst_22 = arith.constant dense<0.000000e+00> : vector<8x8xf32>
    %76 = tpu.matmul %73, %64, %cst_22 {dimension_numbers = #tpu.dot_dimension_numbers<[1], [0], [0], [1], [0, 0, 1, 1], [], []>} : vector<8x8xf32>, vector<8x8xf32>, vector<8x8xf32> -> vector<8x8xf32>
    %77 = tpu.reciprocal %75 {approx = true} : vector<8x1xf32> -> vector<8x1xf32>
    %78 = vector.broadcast %77 : vector<8x1xf32> to vector<8x8xf32>
    %79 = arith.mulf %76, %78 : vector<8x8xf32>
    %cst_23 = arith.constant 0.000000e+00 : f32
    %80 = vector.broadcast %cst_23 : f32 to vector<8x96xf32>
    %81 = tpu.concatenate %25, %43, %61, %79, %80 in 1 : vector<8x8xf32>, vector<8x8xf32>, vector<8x8xf32>, vector<8x8xf32>, vector<8x96xf32> -> vector<8x128xf32>
    %c0_24 = arith.constant 0 : index
    %c0_25 = arith.constant 0 : index
    %c0_26 = arith.constant 0 : index
    %82 = vector.load %arg2[%c0_24, %c0_25, %c0_26] : memref<1x8x128xf32, #tpu.memory_space<vmem>>, vector<1x8x128xf32>
    %83 = vector.shape_cast %82 : vector<1x8x128xf32> to vector<8x128xf32>
    %84 = vector.shape_cast %81 : vector<8x128xf32> to vector<1x8x128xf32>
    tpu.vector_store %arg2[%c0_24, %c0_25, %c0_26], %84 {strides = array<i32>} : memref<1x8x128xf32, #tpu.memory_space<vmem>>, vector<1x8x128xf32>,
    return
  }
  func.func @transform_0(%arg0: i32) -> (i32, i32, i32) {
    %c0_i32 = arith.constant 0 : i32
    %c0_i32_0 = arith.constant 0 : i32
    %c0_i32_1 = arith.constant 0 : i32
    return %arg0, %c0_i32, %c0_i32_0 : i32, i32, i32
  }
  func.func @transform_1(%arg0: i32) -> (i32, i32, i32) {
    %c0_i32 = arith.constant 0 : i32
    %c0_i32_0 = arith.constant 0 : i32
    %c0_i32_1 = arith.constant 0 : i32
    return %arg0, %c0_i32, %c0_i32_0 : i32, i32, i32
  }
}

module attributes {stable_mosaic.version = 11 : i64} {
  func.func @kernel(%arg0: i32, %arg1: i32, %arg2: i32, %arg3: memref<16x128xf32, #tpu.memory_space<vmem>>, %arg4: memref<128x128xf32, #tpu.memory_space<vmem>>, %arg5: memref<1x128xf32, #tpu.memory_space<vmem>>, %arg6: memref<16x128xf32, #tpu.memory_space<vmem>>, %arg7: memref<16x128xf32, #tpu.memory_space<vmem>>) attributes {dimension_semantics = [#tpu.dimension_semantics<parallel>, #tpu.dimension_semantics<parallel>, #tpu.dimension_semantics<arbitrary>], iteration_bounds = array<i64: 1, 1, 1>, scalar_prefetch = 0 : i64, scratch_operands = 0 : i64, tpu.core_type = #tpu.core_type<tc>, window_params = [{transform_indices = @transform_0, window_bounds = array<i64: 16, 128>}, {transform_indices = @transform_1, window_bounds = array<i64: 128, 128>}, {transform_indices = @transform_2, window_bounds = array<i64: 1, 128>}, {transform_indices = @transform_3, window_bounds = array<i64: 16, 128>}, {transform_indices = @transform_4, window_bounds = array<i64: 16, 128>}]} {
    %c0 = arith.constant 0 : index
    %c0_0 = arith.constant 0 : index
    %0 = vector.load %arg3[%c0, %c0_0] : memref<16x128xf32, #tpu.memory_space<vmem>>, vector<16x128xf32>
    %c0_1 = arith.constant 0 : index
    %c0_2 = arith.constant 0 : index
    %1 = vector.load %arg4[%c0_1, %c0_2] : memref<128x128xf32, #tpu.memory_space<vmem>>, vector<128x128xf32>
    %cst = arith.constant dense<0.000000e+00> : vector<16x128xf32>
    %2 = tpu.matmul %0, %1, %cst {dimension_numbers = #tpu.dot_dimension_numbers<[1], [0], [0], [1], [0, 0, 1, 1], [], []>} : vector<16x128xf32>, vector<128x128xf32>, vector<16x128xf32> -> vector<16x128xf32>
    %c0_3 = arith.constant 0 : index
    %c0_4 = arith.constant 0 : index
    %3 = vector.load %arg5[%c0_3, %c0_4] : memref<1x128xf32, #tpu.memory_space<vmem>>, vector<1x128xf32>
    %4 = vector.broadcast %3 : vector<1x128xf32> to vector<16x128xf32>
    %5 = arith.addf %2, %4 : vector<16x128xf32>
    %c0_5 = arith.constant 0 : index
    %c0_6 = arith.constant 0 : index
    %6 = vector.load %arg6[%c0_5, %c0_6] : memref<16x128xf32, #tpu.memory_space<vmem>>, vector<16x128xf32>
    %7 = arith.addf %5, %6 : vector<16x128xf32>
    %c0_7 = arith.constant 0 : index
    %c0_8 = arith.constant 0 : index
    %8 = vector.load %arg7[%c0_7, %c0_8] : memref<16x128xf32, #tpu.memory_space<vmem>>, vector<16x128xf32>
    tpu.vector_store %arg7[%c0_7, %c0_8], %7 {strides = array<i32>} : memref<16x128xf32, #tpu.memory_space<vmem>>, vector<16x128xf32>,
    return
  }
  func.func @transform_0(%arg0: i32, %arg1: i32, %arg2: i32) -> (i32, i32) {
    %c0_i32 = arith.constant 0 : i32
    return %arg0, %arg2 : i32, i32
  }
  func.func @transform_1(%arg0: i32, %arg1: i32, %arg2: i32) -> (i32, i32) {
    %c0_i32 = arith.constant 0 : i32
    return %arg2, %arg1 : i32, i32
  }
  func.func @transform_2(%arg0: i32, %arg1: i32, %arg2: i32) -> (i32, i32) {
    %c0_i32 = arith.constant 0 : i32
    %c0_i32_0 = arith.constant 0 : i32
    return %c0_i32, %arg1 : i32, i32
  }
  func.func @transform_3(%arg0: i32, %arg1: i32, %arg2: i32) -> (i32, i32) {
    %c0_i32 = arith.constant 0 : i32
    return %arg0, %arg1 : i32, i32
  }
  func.func @transform_4(%arg0: i32, %arg1: i32, %arg2: i32) -> (i32, i32) {
    %c0_i32 = arith.constant 0 : i32
    return %arg0, %arg1 : i32, i32
  }
}

module attributes {stable_mosaic.version = 11 : i64} {
  func.func @kernel(%arg0: i32, %arg1: i32, %arg2: memref<16x128xf32, #tpu.memory_space<vmem>>, %arg3: memref<1x128xf32, #tpu.memory_space<vmem>>, %arg4: memref<1x128xf32, #tpu.memory_space<vmem>>, %arg5: memref<128x128xf32, #tpu.memory_space<vmem>>, %arg6: memref<1x128xf32, #tpu.memory_space<vmem>>, %arg7: memref<16x128xf32, #tpu.memory_space<vmem>>) attributes {dimension_semantics = [#tpu.dimension_semantics<parallel>, #tpu.dimension_semantics<parallel>], iteration_bounds = array<i64: 1, 1>, scalar_prefetch = 0 : i64, scratch_operands = 0 : i64, tpu.core_type = #tpu.core_type<tc>, window_params = [{transform_indices = @transform_0, window_bounds = array<i64: 16, 128>}, {pipeline_mode = #tpu.pipeline_mode<synchronous>, transform_indices = @transform_1, window_bounds = array<i64: 1, 128>}, {pipeline_mode = #tpu.pipeline_mode<synchronous>, transform_indices = @transform_2, window_bounds = array<i64: 1, 128>}, {transform_indices = @transform_3, window_bounds = array<i64: 128, 128>}, {transform_indices = @transform_4, window_bounds = array<i64: 1, 128>}, {transform_indices = @transform_5, window_bounds = array<i64: 16, 128>}]} {
    %c0 = arith.constant 0 : index
    %c0_0 = arith.constant 0 : index
    %0 = vector.load %arg2[%c0, %c0_0] : memref<16x128xf32, #tpu.memory_space<vmem>>, vector<16x128xf32>
    %1 = tpu.iota {dimensions = array<i32: 1>} : vector<16x128xi32>
    %c32_i32 = arith.constant 32 : i32
    %2 = vector.broadcast %c32_i32 : i32 to vector<16x128xi32>
    %3 = arith.cmpi slt, %1, %2 : vector<16x128xi32>
    %cst = arith.constant 0.000000e+00 : f32
    %4 = vector.broadcast %cst : f32 to vector<16x128xf32>
    %5 = arith.select %3, %0, %4 : vector<16x128xi1>, vector<16x128xf32>
    %cst_1 = arith.constant dense<0.000000e+00> : vector<16xf32>
    %6 = vector.multi_reduction <add>, %5, %cst_1 [1] : vector<16x128xf32> to vector<16xf32>
    %7 = vector.shape_cast %6 : vector<16xf32> to vector<16x1xf32>
    %cst_2 = arith.constant 3.125000e-02 : f32
    %8 = vector.broadcast %cst_2 : f32 to vector<16x1xf32>
    %9 = arith.mulf %7, %8 : vector<16x1xf32>
    %10 = vector.broadcast %9 : vector<16x1xf32> to vector<16x128xf32>
    %11 = arith.subf %0, %10 : vector<16x128xf32>
    %cst_3 = arith.constant 0.000000e+00 : f32
    %12 = vector.broadcast %cst_3 : f32 to vector<16x128xf32>
    %13 = arith.select %3, %11, %12 : vector<16x128xi1>, vector<16x128xf32>
    %14 = arith.mulf %13, %13 : vector<16x128xf32>
    %cst_4 = arith.constant dense<0.000000e+00> : vector<16xf32>
    %15 = vector.multi_reduction <add>, %14, %cst_4 [1] : vector<16x128xf32> to vector<16xf32>
    %16 = vector.shape_cast %15 : vector<16xf32> to vector<16x1xf32>
    %cst_5 = arith.constant 3.125000e-02 : f32
    %17 = vector.broadcast %cst_5 : f32 to vector<16x1xf32>
    %18 = arith.mulf %16, %17 : vector<16x1xf32>
    %cst_6 = arith.constant 9.99999974E-6 : f32
    %19 = vector.broadcast %cst_6 : f32 to vector<16x1xf32>
    %20 = arith.addf %18, %19 : vector<16x1xf32>
    %21 = math.rsqrt %20 : vector<16x1xf32>
    %22 = vector.broadcast %21 : vector<16x1xf32> to vector<16x128xf32>
    %23 = arith.mulf %13, %22 : vector<16x128xf32>
    %c0_7 = arith.constant 0 : index
    %c0_8 = arith.constant 0 : index
    %24 = vector.load %arg3[%c0_7, %c0_8] : memref<1x128xf32, #tpu.memory_space<vmem>>, vector<1x128xf32>
    %25 = vector.broadcast %24 : vector<1x128xf32> to vector<16x128xf32>
    %26 = arith.mulf %23, %25 : vector<16x128xf32>
    %c0_9 = arith.constant 0 : index
    %c0_10 = arith.constant 0 : index
    %27 = vector.load %arg4[%c0_9, %c0_10] : memref<1x128xf32, #tpu.memory_space<vmem>>, vector<1x128xf32>
    %28 = vector.broadcast %27 : vector<1x128xf32> to vector<16x128xf32>
    %29 = arith.addf %26, %28 : vector<16x128xf32>
    %c0_11 = arith.constant 0 : index
    %c0_12 = arith.constant 0 : index
    %30 = vector.load %arg5[%c0_11, %c0_12] : memref<128x128xf32, #tpu.memory_space<vmem>>, vector<128x128xf32>
    %cst_13 = arith.constant dense<0.000000e+00> : vector<16x128xf32>
    %31 = tpu.matmul %29, %30, %cst_13 {dimension_numbers = #tpu.dot_dimension_numbers<[1], [0], [0], [1], [0, 0, 1, 1], [], []>} : vector<16x128xf32>, vector<128x128xf32>, vector<16x128xf32> -> vector<16x128xf32>
    %c0_14 = arith.constant 0 : index
    %c0_15 = arith.constant 0 : index
    %32 = vector.load %arg6[%c0_14, %c0_15] : memref<1x128xf32, #tpu.memory_space<vmem>>, vector<1x128xf32>
    %33 = vector.broadcast %32 : vector<1x128xf32> to vector<16x128xf32>
    %34 = arith.addf %31, %33 : vector<16x128xf32>
    %c0_16 = arith.constant 0 : index
    %c0_17 = arith.constant 0 : index
    %35 = vector.load %arg7[%c0_16, %c0_17] : memref<16x128xf32, #tpu.memory_space<vmem>>, vector<16x128xf32>
    tpu.vector_store %arg7[%c0_16, %c0_17], %34 {strides = array<i32>} : memref<16x128xf32, #tpu.memory_space<vmem>>, vector<16x128xf32>,
    return
  }
  func.func @transform_0(%arg0: i32, %arg1: i32) -> (i32, i32) {
    %c0_i32 = arith.constant 0 : i32
    %c0_i32_0 = arith.constant 0 : i32
    return %arg0, %c0_i32 : i32, i32
  }
  func.func @transform_1(%arg0: i32, %arg1: i32) -> (i32, i32) {
    %c0_i32 = arith.constant 0 : i32
    %c0_i32_0 = arith.constant 0 : i32
    %c0_i32_1 = arith.constant 0 : i32
    return %c0_i32, %c0_i32_0 : i32, i32
  }
  func.func @transform_2(%arg0: i32, %arg1: i32) -> (i32, i32) {
    %c0_i32 = arith.constant 0 : i32
    %c0_i32_0 = arith.constant 0 : i32
    %c0_i32_1 = arith.constant 0 : i32
    return %c0_i32, %c0_i32_0 : i32, i32
  }
  func.func @transform_3(%arg0: i32, %arg1: i32) -> (i32, i32) {
    %c0_i32 = arith.constant 0 : i32
    %c0_i32_0 = arith.constant 0 : i32
    return %c0_i32, %arg1 : i32, i32
  }
  func.func @transform_4(%arg0: i32, %arg1: i32) -> (i32, i32) {
    %c0_i32 = arith.constant 0 : i32
    %c0_i32_0 = arith.constant 0 : i32
    return %c0_i32, %arg1 : i32, i32
  }
  func.func @transform_5(%arg0: i32, %arg1: i32) -> (i32, i32) {
    %c0_i32 = arith.constant 0 : i32
    return %arg0, %arg1 : i32, i32
  }
}

module attributes {stable_mosaic.version = 11 : i64} {
  func.func @kernel(%arg0: i32, %arg1: i32, %arg2: i32, %arg3: memref<16x128xf32, #tpu.memory_space<vmem>>, %arg4: memref<128x256xf32, #tpu.memory_space<vmem>>, %arg5: memref<1x256xf32, #tpu.memory_space<vmem>>, %arg6: memref<16x256xf32, #tpu.memory_space<vmem>>) attributes {dimension_semantics = [#tpu.dimension_semantics<parallel>, #tpu.dimension_semantics<parallel>, #tpu.dimension_semantics<arbitrary>], iteration_bounds = array<i64: 1, 1, 1>, scalar_prefetch = 0 : i64, scratch_operands = 0 : i64, tpu.core_type = #tpu.core_type<tc>, window_params = [{transform_indices = @transform_0, window_bounds = array<i64: 16, 128>}, {transform_indices = @transform_1, window_bounds = array<i64: 128, 256>}, {transform_indices = @transform_2, window_bounds = array<i64: 1, 256>}, {transform_indices = @transform_3, window_bounds = array<i64: 16, 256>}]} {
    %c0 = arith.constant 0 : index
    %c0_0 = arith.constant 0 : index
    %0 = vector.load %arg3[%c0, %c0_0] : memref<16x128xf32, #tpu.memory_space<vmem>>, vector<16x128xf32>
    %c0_1 = arith.constant 0 : index
    %c0_2 = arith.constant 0 : index
    %1 = vector.load %arg4[%c0_1, %c0_2] : memref<128x256xf32, #tpu.memory_space<vmem>>, vector<128x256xf32>
    %cst = arith.constant dense<0.000000e+00> : vector<16x256xf32>
    %2 = tpu.matmul %0, %1, %cst {dimension_numbers = #tpu.dot_dimension_numbers<[1], [0], [0], [1], [0, 0, 1, 1], [], []>} : vector<16x128xf32>, vector<128x256xf32>, vector<16x256xf32> -> vector<16x256xf32>
    %c0_3 = arith.constant 0 : index
    %c0_4 = arith.constant 0 : index
    %3 = vector.load %arg5[%c0_3, %c0_4] : memref<1x256xf32, #tpu.memory_space<vmem>>, vector<1x256xf32>
    %4 = vector.broadcast %3 : vector<1x256xf32> to vector<16x256xf32>
    %5 = arith.addf %2, %4 : vector<16x256xf32>
    %c0_5 = arith.constant 0 : index
    %c0_6 = arith.constant 0 : index
    %6 = vector.load %arg6[%c0_5, %c0_6] : memref<16x256xf32, #tpu.memory_space<vmem>>, vector<16x256xf32>
    tpu.vector_store %arg6[%c0_5, %c0_6], %5 {strides = array<i32>} : memref<16x256xf32, #tpu.memory_space<vmem>>, vector<16x256xf32>,
    return
  }
  func.func @transform_0(%arg0: i32, %arg1: i32, %arg2: i32) -> (i32, i32) {
    %c0_i32 = arith.constant 0 : i32
    return %arg0, %arg2 : i32, i32
  }
  func.func @transform_1(%arg0: i32, %arg1: i32, %arg2: i32) -> (i32, i32) {
    %c0_i32 = arith.constant 0 : i32
    return %arg2, %arg1 : i32, i32
  }
  func.func @transform_2(%arg0: i32, %arg1: i32, %arg2: i32) -> (i32, i32) {
    %c0_i32 = arith.constant 0 : i32
    %c0_i32_0 = arith.constant 0 : i32
    return %c0_i32, %arg1 : i32, i32
  }
  func.func @transform_3(%arg0: i32, %arg1: i32, %arg2: i32) -> (i32, i32) {
    %c0_i32 = arith.constant 0 : i32
    return %arg0, %arg1 : i32, i32
  }
}

module attributes {stable_mosaic.version = 11 : i64} {
  func.func @kernel(%arg0: i32, %arg1: memref<1x8x128xf32, #tpu.memory_space<vmem>>, %arg2: memref<1x8x256xf32, #tpu.memory_space<vmem>>, %arg3: memref<1x8x128xf32, #tpu.memory_space<vmem>>) attributes {dimension_semantics = [#tpu.dimension_semantics<parallel>], iteration_bounds = array<i64: 2>, scalar_prefetch = 0 : i64, scratch_operands = 0 : i64, tpu.core_type = #tpu.core_type<tc>, window_params = [{transform_indices = @transform_0, window_bounds = array<i64: 1, 8, 128>}, {transform_indices = @transform_1, window_bounds = array<i64: 1, 8, 256>}, {transform_indices = @transform_2, window_bounds = array<i64: 1, 8, 128>}]} {
    %c0 = arith.constant 0 : index
    %c0_0 = arith.constant 0 : index
    %c0_1 = arith.constant 0 : index
    %0 = vector.load %arg1[%c0, %c0_0, %c0_1] : memref<1x8x128xf32, #tpu.memory_space<vmem>>, vector<1x8x128xf32>
    %1 = vector.shape_cast %0 : vector<1x8x128xf32> to vector<8x128xf32>
    %c0_2 = arith.constant 0 : index
    %c0_3 = arith.constant 0 : index
    %c0_4 = arith.constant 0 : index
    %2 = vector.load %arg2[%c0_2, %c0_3, %c0_4] : memref<1x8x256xf32, #tpu.memory_space<vmem>>, vector<1x8x256xf32>
    %3 = vector.shape_cast %2 : vector<1x8x256xf32> to vector<8x256xf32>
    %cst = arith.constant 0.000000e+00 : f32
    %4 = vector.broadcast %cst : f32 to vector<8x8xf32>
    %5 = vector.extract_strided_slice %1 {offsets = [0, 0], sizes = [8, 8], strides = [1, 1]} : vector<8x128xf32> to vector<8x8xf32>
    %6 = vector.extract_strided_slice %3 {offsets = [0, 0], sizes = [8, 8], strides = [1, 1]} : vector<8x256xf32> to vector<8x8xf32>
    %7 = vector.extract_strided_slice %3 {offsets = [0, 128], sizes = [8, 8], strides = [1, 1]} : vector<8x256xf32> to vector<8x8xf32>
    %cst_5 = arith.constant dense<0.000000e+00> : vector<8x8xf32>
    %8 = tpu.matmul %5, %6, %cst_5 {dimension_numbers = #tpu.dot_dimension_numbers<[1], [1], [0], [0], [0, 0, 1, 0], [], []>} : vector<8x8xf32>, vector<8x8xf32>, vector<8x8xf32> -> vector<8x8xf32>
    %cst_6 = arith.constant 0.353553385 : f32
    %9 = vector.broadcast %cst_6 : f32 to vector<8x8xf32>
    %10 = arith.mulf %8, %9 : vector<8x8xf32>
    %11 = arith.addf %10, %4 : vector<8x8xf32>
    %cst_7 = arith.constant dense<0xFF800000> : vector<8xf32>
    %12 = vector.multi_reduction <maximumf>, %11, %cst_7 [1] : vector<8x8xf32> to vector<8xf32>
    %13 = vector.shape_cast %12 : vector<8xf32> to vector<8x1xf32>
    %14 = vector.broadcast %13 : vector<8x1xf32> to vector<8x8xf32>
    %15 = arith.subf %11, %14 : vector<8x8xf32>
    %16 = math.exp %15 : vector<8x8xf32>
    %cst_8 = arith.constant dense<0.000000e+00> : vector<8xf32>
    %17 = vector.multi_reduction <add>, %16, %cst_8 [1] : vector<8x8xf32> to vector<8xf32>
    %18 = vector.shape_cast %17 : vector<8xf32> to vector<8x1xf32>
    %cst_9 = arith.constant dense<0.000000e+00> : vector<8x8xf32>
    %19 = tpu.matmul %16, %7, %cst_9 {dimension_numbers = #tpu.dot_dimension_numbers<[1], [0], [0], [1], [0, 0, 1, 1], [], []>} : vector<8x8xf32>, vector<8x8xf32>, vector<8x8xf32> -> vector<8x8xf32>
    %20 = tpu.reciprocal %18 {approx = true} : vector<8x1xf32> -> vector<8x1xf32>
    %21 = vector.broadcast %20 : vector<8x1xf32> to vector<8x8xf32>
    %22 = arith.mulf %19, %21 : vector<8x8xf32>
    %23 = vector.extract_strided_slice %1 {offsets = [0, 8], sizes = [8, 8], strides = [1, 1]} : vector<8x128xf32> to vector<8x8xf32>
    %24 = vector.extract_strided_slice %3 {offsets = [0, 8], sizes = [8, 8], strides = [1, 1]} : vector<8x256xf32> to vector<8x8xf32>
    %25 = vector.extract_strided_slice %3 {offsets = [0, 136], sizes = [8, 8], strides = [1, 1]} : vector<8x256xf32> to vector<8x8xf32>
    %cst_10 = arith.constant dense<0.000000e+00> : vector<8x8xf32>
    %26 = tpu.matmul %23, %24, %cst_10 {dimension_numbers = #tpu.dot_dimension_numbers<[1], [1], [0], [0], [0, 0, 1, 0], [], []>} : vector<8x8xf32>, vector<8x8xf32>, vector<8x8xf32> -> vector<8x8xf32>
    %cst_11 = arith.constant 0.353553385 : f32
    %27 = vector.broadcast %cst_11 : f32 to vector<8x8xf32>
    %28 = arith.mulf %26, %27 : vector<8x8xf32>
    %29 = arith.addf %28, %4 : vector<8x8xf32>
    %cst_12 = arith.constant dense<0xFF800000> : vector<8xf32>
    %30 = vector.multi_reduction <maximumf>, %29, %cst_12 [1] : vector<8x8xf32> to vector<8xf32>
    %31 = vector.shape_cast %30 : vector<8xf32> to vector<8x1xf32>
    %32 = vector.broadcast %31 : vector<8x1xf32> to vector<8x8xf32>
    %33 = arith.subf %29, %32 : vector<8x8xf32>
    %34 = math.exp %33 : vector<8x8xf32>
    %cst_13 = arith.constant dense<0.000000e+00> : vector<8xf32>
    %35 = vector.multi_reduction <add>, %34, %cst_13 [1] : vector<8x8xf32> to vector<8xf32>
    %36 = vector.shape_cast %35 : vector<8xf32> to vector<8x1xf32>
    %cst_14 = arith.constant dense<0.000000e+00> : vector<8x8xf32>
    %37 = tpu.matmul %34, %25, %cst_14 {dimension_numbers = #tpu.dot_dimension_numbers<[1], [0], [0], [1], [0, 0, 1, 1], [], []>} : vector<8x8xf32>, vector<8x8xf32>, vector<8x8xf32> -> vector<8x8xf32>
    %38 = tpu.reciprocal %36 {approx = true} : vector<8x1xf32> -> vector<8x1xf32>
    %39 = vector.broadcast %38 : vector<8x1xf32> to vector<8x8xf32>
    %40 = arith.mulf %37, %39 : vector<8x8xf32>
    %41 = vector.extract_strided_slice %1 {offsets = [0, 16], sizes = [8, 8], strides = [1, 1]} : vector<8x128xf32> to vector<8x8xf32>
    %42 = vector.extract_strided_slice %3 {offsets = [0, 16], sizes = [8, 8], strides = [1, 1]} : vector<8x256xf32> to vector<8x8xf32>
    %43 = vector.extract_strided_slice %3 {offsets = [0, 144], sizes = [8, 8], strides = [1, 1]} : vector<8x256xf32> to vector<8x8xf32>
    %cst_15 = arith.constant dense<0.000000e+00> : vector<8x8xf32>
    %44 = tpu.matmul %41, %42, %cst_15 {dimension_numbers = #tpu.dot_dimension_numbers<[1], [1], [0], [0], [0, 0, 1, 0], [], []>} : vector<8x8xf32>, vector<8x8xf32>, vector<8x8xf32> -> vector<8x8xf32>
    %cst_16 = arith.constant 0.353553385 : f32
    %45 = vector.broadcast %cst_16 : f32 to vector<8x8xf32>
    %46 = arith.mulf %44, %45 : vector<8x8xf32>
    %47 = arith.addf %46, %4 : vector<8x8xf32>
    %cst_17 = arith.constant dense<0xFF800000> : vector<8xf32>
    %48 = vector.multi_reduction <maximumf>, %47, %cst_17 [1] : vector<8x8xf32> to vector<8xf32>
    %49 = vector.shape_cast %48 : vector<8xf32> to vector<8x1xf32>
    %50 = vector.broadcast %49 : vector<8x1xf32> to vector<8x8xf32>
    %51 = arith.subf %47, %50 : vector<8x8xf32>
    %52 = math.exp %51 : vector<8x8xf32>
    %cst_18 = arith.constant dense<0.000000e+00> : vector<8xf32>
    %53 = vector.multi_reduction <add>, %52, %cst_18 [1] : vector<8x8xf32> to vector<8xf32>
    %54 = vector.shape_cast %53 : vector<8xf32> to vector<8x1xf32>
    %cst_19 = arith.constant dense<0.000000e+00> : vector<8x8xf32>
    %55 = tpu.matmul %52, %43, %cst_19 {dimension_numbers = #tpu.dot_dimension_numbers<[1], [0], [0], [1], [0, 0, 1, 1], [], []>} : vector<8x8xf32>, vector<8x8xf32>, vector<8x8xf32> -> vector<8x8xf32>
    %56 = tpu.reciprocal %54 {approx = true} : vector<8x1xf32> -> vector<8x1xf32>
    %57 = vector.broadcast %56 : vector<8x1xf32> to vector<8x8xf32>
    %58 = arith.mulf %55, %57 : vector<8x8xf32>
    %59 = vector.extract_strided_slice %1 {offsets = [0, 24], sizes = [8, 8], strides = [1, 1]} : vector<8x128xf32> to vector<8x8xf32>
    %60 = vector.extract_strided_slice %3 {offsets = [0, 24], sizes = [8, 8], strides = [1, 1]} : vector<8x256xf32> to vector<8x8xf32>
    %61 = vector.extract_strided_slice %3 {offsets = [0, 152], sizes = [8, 8], strides = [1, 1]} : vector<8x256xf32> to vector<8x8xf32>
    %cst_20 = arith.constant dense<0.000000e+00> : vector<8x8xf32>
    %62 = tpu.matmul %59, %60, %cst_20 {dimension_numbers = #tpu.dot_dimension_numbers<[1], [1], [0], [0], [0, 0, 1, 0], [], []>} : vector<8x8xf32>, vector<8x8xf32>, vector<8x8xf32> -> vector<8x8xf32>
    %cst_21 = arith.constant 0.353553385 : f32
    %63 = vector.broadcast %cst_21 : f32 to vector<8x8xf32>
    %64 = arith.mulf %62, %63 : vector<8x8xf32>
    %65 = arith.addf %64, %4 : vector<8x8xf32>
    %cst_22 = arith.constant dense<0xFF800000> : vector<8xf32>
    %66 = vector.multi_reduction <maximumf>, %65, %cst_22 [1] : vector<8x8xf32> to vector<8xf32>
    %67 = vector.shape_cast %66 : vector<8xf32> to vector<8x1xf32>
    %68 = vector.broadcast %67 : vector<8x1xf32> to vector<8x8xf32>
    %69 = arith.subf %65, %68 : vector<8x8xf32>
    %70 = math.exp %69 : vector<8x8xf32>
    %cst_23 = arith.constant dense<0.000000e+00> : vector<8xf32>
    %71 = vector.multi_reduction <add>, %70, %cst_23 [1] : vector<8x8xf32> to vector<8xf32>
    %72 = vector.shape_cast %71 : vector<8xf32> to vector<8x1xf32>
    %cst_24 = arith.constant dense<0.000000e+00> : vector<8x8xf32>
    %73 = tpu.matmul %70, %61, %cst_24 {dimension_numbers = #tpu.dot_dimension_numbers<[1], [0], [0], [1], [0, 0, 1, 1], [], []>} : vector<8x8xf32>, vector<8x8xf32>, vector<8x8xf32> -> vector<8x8xf32>
    %74 = tpu.reciprocal %72 {approx = true} : vector<8x1xf32> -> vector<8x1xf32>
    %75 = vector.broadcast %74 : vector<8x1xf32> to vector<8x8xf32>
    %76 = arith.mulf %73, %75 : vector<8x8xf32>
    %cst_25 = arith.constant 0.000000e+00 : f32
    %77 = vector.broadcast %cst_25 : f32 to vector<8x96xf32>
    %78 = tpu.concatenate %22, %40, %58, %76, %77 in 1 : vector<8x8xf32>, vector<8x8xf32>, vector<8x8xf32>, vector<8x8xf32>, vector<8x96xf32> -> vector<8x128xf32>
    %c0_26 = arith.constant 0 : index
    %c0_27 = arith.constant 0 : index
    %c0_28 = arith.constant 0 : index
    %79 = vector.load %arg3[%c0_26, %c0_27, %c0_28] : memref<1x8x128xf32, #tpu.memory_space<vmem>>, vector<1x8x128xf32>
    %80 = vector.shape_cast %79 : vector<1x8x128xf32> to vector<8x128xf32>
    %81 = vector.shape_cast %78 : vector<8x128xf32> to vector<1x8x128xf32>
    tpu.vector_store %arg3[%c0_26, %c0_27, %c0_28], %81 {strides = array<i32>} : memref<1x8x128xf32, #tpu.memory_space<vmem>>, vector<1x8x128xf32>,
    return
  }
  func.func @transform_0(%arg0: i32) -> (i32, i32, i32) {
    %c0_i32 = arith.constant 0 : i32
    %c0_i32_0 = arith.constant 0 : i32
    %c0_i32_1 = arith.constant 0 : i32
    return %arg0, %c0_i32, %c0_i32_0 : i32, i32, i32
  }
  func.func @transform_1(%arg0: i32) -> (i32, i32, i32) {
    %c0_i32 = arith.constant 0 : i32
    %c0_i32_0 = arith.constant 0 : i32
    %c0_i32_1 = arith.constant 0 : i32
    return %arg0, %c0_i32, %c0_i32_0 : i32, i32, i32
  }
  func.func @transform_2(%arg0: i32) -> (i32, i32, i32) {
    %c0_i32 = arith.constant 0 : i32
    %c0_i32_0 = arith.constant 0 : i32
    %c0_i32_1 = arith.constant 0 : i32
    return %arg0, %c0_i32, %c0_i32_0 : i32, i32, i32
  }
}

module attributes {stable_mosaic.version = 11 : i64} {
  func.func @kernel(%arg0: i32, %arg1: i32, %arg2: memref<16x128xf32, #tpu.memory_space<vmem>>, %arg3: memref<1x128xf32, #tpu.memory_space<vmem>>, %arg4: memref<1x128xf32, #tpu.memory_space<vmem>>, %arg5: memref<128x128xf32, #tpu.memory_space<vmem>>, %arg6: memref<1x128xf32, #tpu.memory_space<vmem>>, %arg7: memref<16x128xf32, #tpu.memory_space<vmem>>) attributes {dimension_semantics = [#tpu.dimension_semantics<parallel>, #tpu.dimension_semantics<parallel>], iteration_bounds = array<i64: 1, 1>, scalar_prefetch = 0 : i64, scratch_operands = 0 : i64, tpu.core_type = #tpu.core_type<tc>, window_params = [{transform_indices = @transform_0, window_bounds = array<i64: 16, 128>}, {pipeline_mode = #tpu.pipeline_mode<synchronous>, transform_indices = @transform_1, window_bounds = array<i64: 1, 128>}, {pipeline_mode = #tpu.pipeline_mode<synchronous>, transform_indices = @transform_2, window_bounds = array<i64: 1, 128>}, {transform_indices = @transform_3, window_bounds = array<i64: 128, 128>}, {transform_indices = @transform_4, window_bounds = array<i64: 1, 128>}, {transform_indices = @transform_5, window_bounds = array<i64: 16, 128>}]} {
    %c0 = arith.constant 0 : index
    %c0_0 = arith.constant 0 : index
    %0 = vector.load %arg2[%c0, %c0_0] : memref<16x128xf32, #tpu.memory_space<vmem>>, vector<16x128xf32>
    %1 = tpu.iota {dimensions = array<i32: 1>} : vector<16x128xi32>
    %c32_i32 = arith.constant 32 : i32
    %2 = vector.broadcast %c32_i32 : i32 to vector<16x128xi32>
    %3 = arith.cmpi slt, %1, %2 : vector<16x128xi32>
    %cst = arith.constant 0.000000e+00 : f32
    %4 = vector.broadcast %cst : f32 to vector<16x128xf32>
    %5 = arith.select %3, %0, %4 : vector<16x128xi1>, vector<16x128xf32>
    %cst_1 = arith.constant dense<0.000000e+00> : vector<16xf32>
    %6 = vector.multi_reduction <add>, %5, %cst_1 [1] : vector<16x128xf32> to vector<16xf32>
    %7 = vector.shape_cast %6 : vector<16xf32> to vector<16x1xf32>
    %cst_2 = arith.constant 3.125000e-02 : f32
    %8 = vector.broadcast %cst_2 : f32 to vector<16x1xf32>
    %9 = arith.mulf %7, %8 : vector<16x1xf32>
    %10 = vector.broadcast %9 : vector<16x1xf32> to vector<16x128xf32>
    %11 = arith.subf %0, %10 : vector<16x128xf32>
    %cst_3 = arith.constant 0.000000e+00 : f32
    %12 = vector.broadcast %cst_3 : f32 to vector<16x128xf32>
    %13 = arith.select %3, %11, %12 : vector<16x128xi1>, vector<16x128xf32>
    %14 = arith.mulf %13, %13 : vector<16x128xf32>
    %cst_4 = arith.constant dense<0.000000e+00> : vector<16xf32>
    %15 = vector.multi_reduction <add>, %14, %cst_4 [1] : vector<16x128xf32> to vector<16xf32>
    %16 = vector.shape_cast %15 : vector<16xf32> to vector<16x1xf32>
    %cst_5 = arith.constant 3.125000e-02 : f32
    %17 = vector.broadcast %cst_5 : f32 to vector<16x1xf32>
    %18 = arith.mulf %16, %17 : vector<16x1xf32>
    %cst_6 = arith.constant 9.99999974E-6 : f32
    %19 = vector.broadcast %cst_6 : f32 to vector<16x1xf32>
    %20 = arith.addf %18, %19 : vector<16x1xf32>
    %21 = math.rsqrt %20 : vector<16x1xf32>
    %22 = vector.broadcast %21 : vector<16x1xf32> to vector<16x128xf32>
    %23 = arith.mulf %13, %22 : vector<16x128xf32>
    %c0_7 = arith.constant 0 : index
    %c0_8 = arith.constant 0 : index
    %24 = vector.load %arg3[%c0_7, %c0_8] : memref<1x128xf32, #tpu.memory_space<vmem>>, vector<1x128xf32>
    %25 = vector.broadcast %24 : vector<1x128xf32> to vector<16x128xf32>
    %26 = arith.mulf %23, %25 : vector<16x128xf32>
    %c0_9 = arith.constant 0 : index
    %c0_10 = arith.constant 0 : index
    %27 = vector.load %arg4[%c0_9, %c0_10] : memref<1x128xf32, #tpu.memory_space<vmem>>, vector<1x128xf32>
    %28 = vector.broadcast %27 : vector<1x128xf32> to vector<16x128xf32>
    %29 = arith.addf %26, %28 : vector<16x128xf32>
    %c0_11 = arith.constant 0 : index
    %c0_12 = arith.constant 0 : index
    %30 = vector.load %arg5[%c0_11, %c0_12] : memref<128x128xf32, #tpu.memory_space<vmem>>, vector<128x128xf32>
    %cst_13 = arith.constant dense<0.000000e+00> : vector<16x128xf32>
    %31 = tpu.matmul %29, %30, %cst_13 {dimension_numbers = #tpu.dot_dimension_numbers<[1], [0], [0], [1], [0, 0, 1, 1], [], []>} : vector<16x128xf32>, vector<128x128xf32>, vector<16x128xf32> -> vector<16x128xf32>
    %c0_14 = arith.constant 0 : index
    %c0_15 = arith.constant 0 : index
    %32 = vector.load %arg6[%c0_14, %c0_15] : memref<1x128xf32, #tpu.memory_space<vmem>>, vector<1x128xf32>
    %33 = vector.broadcast %32 : vector<1x128xf32> to vector<16x128xf32>
    %34 = arith.addf %31, %33 : vector<16x128xf32>
    %cst_16 = arith.constant 0.000000e+00 : f32
    %35 = vector.broadcast %cst_16 : f32 to vector<16x128xf32>
    %36 = arith.maximumf %34, %35 : vector<16x128xf32>
    %c0_17 = arith.constant 0 : index
    %c0_18 = arith.constant 0 : index
    %37 = vector.load %arg7[%c0_17, %c0_18] : memref<16x128xf32, #tpu.memory_space<vmem>>, vector<16x128xf32>
    tpu.vector_store %arg7[%c0_17, %c0_18], %36 {strides = array<i32>} : memref<16x128xf32, #tpu.memory_space<vmem>>, vector<16x128xf32>,
    return
  }
  func.func @transform_0(%arg0: i32, %arg1: i32) -> (i32, i32) {
    %c0_i32 = arith.constant 0 : i32
    %c0_i32_0 = arith.constant 0 : i32
    return %arg0, %c0_i32 : i32, i32
  }
  func.func @transform_1(%arg0: i32, %arg1: i32) -> (i32, i32) {
    %c0_i32 = arith.constant 0 : i32
    %c0_i32_0 = arith.constant 0 : i32
    %c0_i32_1 = arith.constant 0 : i32
    return %c0_i32, %c0_i32_0 : i32, i32
  }
  func.func @transform_2(%arg0: i32, %arg1: i32) -> (i32, i32) {
    %c0_i32 = arith.constant 0 : i32
    %c0_i32_0 = arith.constant 0 : i32
    %c0_i32_1 = arith.constant 0 : i32
    return %c0_i32, %c0_i32_0 : i32, i32
  }
  func.func @transform_3(%arg0: i32, %arg1: i32) -> (i32, i32) {
    %c0_i32 = arith.constant 0 : i32
    %c0_i32_0 = arith.constant 0 : i32
    return %c0_i32, %arg1 : i32, i32
  }
  func.func @transform_4(%arg0: i32, %arg1: i32) -> (i32, i32) {
    %c0_i32 = arith.constant 0 : i32
    %c0_i32_0 = arith.constant 0 : i32
    return %c0_i32, %arg1 : i32, i32
  }
  func.func @transform_5(%arg0: i32, %arg1: i32) -> (i32, i32) {
    %c0_i32 = arith.constant 0 : i32
    return %arg0, %arg1 : i32, i32
  }
}

</mosaic_0001>

<llo_original>
// kernel: transformer_decoder_layer.9
$region0: #{transformer_decoder_layer.9}
  #allocation0 [shape = 'u32[]', space=smem, size = 0x4, offset = 0x4, fixed_abs, tag = 'smem constant byte address 0x4 - core index']
  #allocation1 [shape = 'u32[144,128]{1,0:T(1,128)}', space=vmem, size = 0x12000, scoped, tag = 'internal scratch']
  %s0 = inlined_call_operand.vmem [shape: f32[16,128], index: 0, kind: input, shape index: {}]
  %s1 = inlined_call_operand.vmem [shape: f32[1,128], index: 1, kind: input, shape index: {}]
  %s2 = inlined_call_operand.vmem [shape: f32[1,128], index: 2, kind: input, shape index: {}]
  %s3 = inlined_call_operand.hbm [shape: f32[128,384], index: 3, kind: input, shape index: {}]
  %s4 = inlined_call_operand.vmem [shape: f32[1,384], index: 4, kind: input, shape index: {}]
  %s5 = inlined_call_operand.vmem [shape: f32[16,384], index: 5, kind: output, shape index: {}]
  %s6 = sld [smem:[#allocation0]]
  $region34: #{transformer_decoder_layer.9} parent=0
    _
  %s8 = ssub.s32 1, %s6
  %s9 = scalar_select 0, %s8, %s6
  $region1: #{transformer_decoder_layer.9} parent=0
    #allocation2 [shape = 'u8[196608]{0}', space=vmem, size = 0x30000, scoped, tag = 'input window, operand 3, single buffered']
    #allocation3 [shape = 's32[1]{0}', space=sflag, size = 0x4, scoped, tag = 'scoped memory for transformer_decoder_layer.9']
    %10 = vsyncpa [#allocation3], 0
    // Predicated region
    $region2: #{transformer_decoder_layer.9} parent=1 // pred_check
      _
    $region3: #{transformer_decoder_layer.9} parent=1 // pred_check_branch
      %12 = sbr.rel (0) target = $region5
    $region4: #{transformer_decoder_layer.9} parent=1 // pred_region
      _
    $region5: #{transformer_decoder_layer.9} parent=1 // pred_fallthru
      _
    // Predicated region
    $region6: #{transformer_decoder_layer.9} parent=1 // pred_check
      _
    $region7: #{transformer_decoder_layer.9} parent=1 // pred_check_branch
      %14 = sbr.rel (0) target = $region9
    $region8: #{transformer_decoder_layer.9} parent=1 // pred_region
      _
    $region9: #{transformer_decoder_layer.9} parent=1 // pred_fallthru
      _
    // Predicated region
    $region10: #{transformer_decoder_layer.9} parent=1 // pred_check
      _
    $region11: #{transformer_decoder_layer.9} parent=1 // pred_check_branch
      %16 = sbr.rel (0) target = $region13
    $region12: #{transformer_decoder_layer.9} parent=1 // pred_region
      _
    $region13: #{transformer_decoder_layer.9} parent=1 // pred_fallthru
      _
    // Predicated region
    $region14: #{transformer_decoder_layer.9} parent=1 // pred_check
      _
    $region15: #{transformer_decoder_layer.9} parent=1 // pred_check_branch
      %18 = sbr.rel (0) target = $region17
    $region16: #{transformer_decoder_layer.9} parent=1 // pred_region
      %s20 = ssub.s32 6144, 6144
      %21 = vsyncadd [#allocation3], %s20
      %s22 = sshll.u32 [#allocation2], 4
      %s23 = int_to_ptr.vmem [resolvable:$true] %s22
      %28 = dma.hbm_to_vmem [thread:$0]  %s3, 6144, %s23, [#allocation3], 384, 384, 24
    $region17: #{transformer_decoder_layer.9} parent=1 // pred_fallthru
      _
    // Predicated region
    $region18: #{transformer_decoder_layer.9} parent=1 // pred_check
      _
    $region19: #{transformer_decoder_layer.9} parent=1 // pred_check_branch
      %30 = sbr.rel (0) target = $region21
    $region20: #{transformer_decoder_layer.9} parent=1 // pred_region
      _
    $region21: #{transformer_decoder_layer.9} parent=1 // pred_fallthru
      _
    // Predicated region
    $region22: #{transformer_decoder_layer.9} parent=1 // pred_check
      _
    $region23: #{transformer_decoder_layer.9} parent=1 // pred_check_branch
      %32 = sbr.rel (0) target = $region25
    $region24: #{transformer_decoder_layer.9} parent=1 // pred_region
      %33 = dma.done [#allocation3], 6144
    $region25: #{transformer_decoder_layer.9} parent=1 // pred_fallthru
      _
    %v34 = vld [vmem:[%s0] sm:$0xff]
    %v35 = vld [vmem:[%s0 + $0x8] sm:$0xff]
    %v36 = vlaneseq
    %v37 = vand.u32 %v36, 127
    %vm38 = vcmp.lt.s32.totalorder %v37, 32
    %v39 = vsel %vm38, %v34, 0.0
    %v40 = vsel %vm38, %v35, 0.0
    %41 = vadd.xlane.f32.xlu0 %v39
    %v42 = vpop.xlane.xlu0 %41
    %43 = vadd.xlane.f32.xlu0 %v40
    %v44 = vpop.xlane.xlu0 %43
    %v45 = vmul.f32 %v42, 0.03125
    %v46 = vmul.f32 %v44, 0.03125
    %v47 = vsub.f32 %v34, %v45
    %v48 = vsub.f32 %v35, %v46
    %v49 = vsel %vm38, %v47, 0.0
    %v50 = vsel %vm38, %v48, 0.0
    %v51 = vmul.f32 %v49, %v49
    %v52 = vmul.f32 %v50, %v50
    %53 = vadd.xlane.f32.xlu0 %v51
    %v54 = vpop.xlane.xlu0 %53
    %55 = vadd.xlane.f32.xlu0 %v52
    %v56 = vpop.xlane.xlu0 %55
    %v57 = vmul.f32 %v54, 0.03125
    %v58 = vmul.f32 %v56, 0.03125
    %v59 = vadd.f32 %v57, 1e-05
    %v60 = vadd.f32 %v58, 1e-05
    %v61 = vrsqrt.pop %v59
    %v62 = vrsqrt.pop %v60
    %v63 = vmul.f32 %v49, %v61
    %v64 = vmul.f32 %v50, %v62
    %v65 = vld [vmem:[%s1] sm:$0x1]
    %v67 = vlaneseq
    %v68 = vshrl.u32 %v67, 7
    %v69 = vsub.s32 0, %v68
    %v70 = vrot.slane %v65, %v69
    %v72 = vmul.f32 %v63, %v70
    %v73 = vmul.f32 %v64, %v70
    %v74 = vld [vmem:[%s2] sm:$0x1]
    %v76 = vlaneseq
    %v77 = vshrl.u32 %v76, 7
    %v78 = vsub.s32 0, %v77
    %v79 = vrot.slane %v74, %v78
    %v81 = vadd.f32 %v72, %v79
    %v82 = vadd.f32 %v73, %v79
    %v83 = vld [vmem:[#allocation2] sm:$0xff]
    %v84 = vld [vmem:[#allocation2 + $0x8] sm:$0xff]
    %v85 = vld [vmem:[#allocation2 + $0x10] sm:$0xff]
    %v86 = vld [vmem:[#allocation2 + $0x18] sm:$0xff]
    %v87 = vld [vmem:[#allocation2 + $0x20] sm:$0xff]
    %v88 = vld [vmem:[#allocation2 + $0x28] sm:$0xff]
    %v89 = vld [vmem:[#allocation2 + $0x30] sm:$0xff]
    %v90 = vld [vmem:[#allocation2 + $0x38] sm:$0xff]
    %v91 = vld [vmem:[#allocation2 + $0x40] sm:$0xff]
    %v92 = vld [vmem:[#allocation2 + $0x48] sm:$0xff]
    %v93 = vld [vmem:[#allocation2 + $0x50] sm:$0xff]
    %v94 = vld [vmem:[#allocation2 + $0x58] sm:$0xff]
    %v95 = vld [vmem:[#allocation2 + $0x60] sm:$0xff]
    %v96 = vld [vmem:[#allocation2 + $0x68] sm:$0xff]
    %v97 = vld [vmem:[#allocation2 + $0x70] sm:$0xff]
    %v98 = vld [vmem:[#allocation2 + $0x78] sm:$0xff]
    %v99 = vld [vmem:[#allocation2 + $0x80] sm:$0xff]
    %v100 = vld [vmem:[#allocation2 + $0x88] sm:$0xff]
    %v101 = vld [vmem:[#allocation2 + $0x90] sm:$0xff]
    %v102 = vld [vmem:[#allocation2 + $0x98] sm:$0xff]
    %v103 = vld [vmem:[#allocation2 + $0xa0] sm:$0xff]
    %v104 = vld [vmem:[#allocation2 + $0xa8] sm:$0xff]
    %v105 = vld [vmem:[#allocation2 + $0xb0] sm:$0xff]
    %v106 = vld [vmem:[#allocation2 + $0xb8] sm:$0xff]
    %v107 = vld [vmem:[#allocation2 + $0xc0] sm:$0xff]
    %v108 = vld [vmem:[#allocation2 + $0xc8] sm:$0xff]
    %v109 = vld [vmem:[#allocation2 + $0xd0] sm:$0xff]
    %v110 = vld [vmem:[#allocation2 + $0xd8] sm:$0xff]
    %v111 = vld [vmem:[#allocation2 + $0xe0] sm:$0xff]
    %v112 = vld [vmem:[#allocation2 + $0xe8] sm:$0xff]
    %v113 = vld [vmem:[#allocation2 + $0xf0] sm:$0xff]
    %v114 = vld [vmem:[#allocation2 + $0xf8] sm:$0xff]
    %v115 = vld [vmem:[#allocation2 + $0x100] sm:$0xff]
    %v116 = vld [vmem:[#allocation2 + $0x108] sm:$0xff]
    %v117 = vld [vmem:[#allocation2 + $0x110] sm:$0xff]
    %v118 = vld [vmem:[#allocation2 + $0x118] sm:$0xff]
    %v119 = vld [vmem:[#allocation2 + $0x120] sm:$0xff]
    %v120 = vld [vmem:[#allocation2 + $0x128] sm:$0xff]
    %v121 = vld [vmem:[#allocation2 + $0x130] sm:$0xff]
    %v122 = vld [vmem:[#allocation2 + $0x138] sm:$0xff]
    %v123 = vld [vmem:[#allocation2 + $0x140] sm:$0xff]
    %v124 = vld [vmem:[#allocation2 + $0x148] sm:$0xff]
    %v125 = vld [vmem:[#allocation2 + $0x150] sm:$0xff]
    %v126 = vld [vmem:[#allocation2 + $0x158] sm:$0xff]
    %v127 = vld [vmem:[#allocation2 + $0x160] sm:$0xff]
    %v128 = vld [vmem:[#allocation2 + $0x168] sm:$0xff]
    %v129 = vld [vmem:[#allocation2 + $0x170] sm:$0xff]
    %v130 = vld [vmem:[#allocation2 + $0x178] sm:$0xff]
    %v131 = vld [vmem:[%s4] sm:$0x7]
    %v133 = vlaneseq
    %v134 = vshrl.u32 %v133, 7
    %v135 = vsub.s32 0, %v134
    %v136 = vrot.slane %v131, %v135
    %v137 = vlaneseq
    %v138 = vshrl.u32 %v137, 7
    %v139 = vsub.s32 1, %v138
    %v140 = vrot.slane %v131, %v139
    %v141 = vlaneseq
    %v142 = vshrl.u32 %v141, 7
    %v143 = vsub.s32 2, %v142
    %v144 = vrot.slane %v131, %v143
    %148 = vmatprep.subr.mxu0 %v129
    %149 = vmatpush1.msra.mxu0 %v128
    %150 = vmatprep.subr.mxu0 %v126
    %151 = vmatpush1.msra.mxu0 %v125
    %152 = vmatprep.subr.mxu0 %v123
    %153 = vmatpush1.msra.mxu0 %v122
    %154 = vmatprep.subr.mxu0 %v120
    %155 = vmatpush1.msra.mxu0 %v119
    %156 = vmatprep.subr.mxu0 %v117
    %157 = vmatpush1.msra.mxu0 %v116
    %158 = vmatprep.subr.mxu0 %v114
    %159 = vmatpush1.msra.mxu0 %v113
    %160 = vmatprep.subr.mxu0 %v111
    %161 = vmatpush1.msra.mxu0 %v110
    %162 = vmatprep.subr.mxu0 %v108
    %163 = vmatpush1.msra.mxu0 %v107
    %164 = vmatprep.subr.mxu0 %v105
    %165 = vmatpush1.msra.mxu0 %v104
    %166 = vmatprep.subr.mxu0 %v102
    %167 = vmatpush1.msra.mxu0 %v101
    %168 = vmatprep.subr.mxu0 %v99
    %169 = vmatpush1.msra.mxu0 %v98
    %170 = vmatprep.subr.mxu0 %v96
    %171 = vmatpush1.msra.mxu0 %v95
    %172 = vmatprep.subr.mxu0 %v93
    %173 = vmatpush1.msra.mxu0 %v92
    %174 = vmatprep.subr.mxu0 %v90
    %175 = vmatpush1.msra.mxu0 %v89
    %176 = vmatprep.subr.mxu0 %v87
    %177 = vmatpush1.msra.mxu0 %v86
    %178 = vmatprep.subr.mxu0 %v84
    %179 = vmatpush1.msra.mxu0 %v83
    %180 = vmatprep.subr.mxu0 0.0
    %181 = vmatpush2.msra.mxu0 0.0
    %182 = vmatprep.subr.mxu0 0.0
    %183 = vmatpush2.msra.mxu0 0.0
    %184 = vmatprep.subr.mxu0 0.0
    %185 = vmatpush2.msra.mxu0 0.0
    %186 = vmatprep.subr.mxu0 0.0
    %187 = vmatpush2.msra.mxu0 0.0
    %188 = vmatprep.subr.mxu0 0.0
    %189 = vmatpush2.msra.mxu0 0.0
    %190 = vmatprep.subr.mxu0 0.0
    %191 = vmatpush2.msra.mxu0 0.0
    %192 = vmatprep.subr.mxu0 0.0
    %193 = vmatpush2.msra.mxu0 0.0
    %194 = vmatprep.subr.mxu0 0.0
    %195 = vmatpush2.msra.mxu0 0.0
    %196 = vmatprep.subr.mxu0 0.0
    %197 = vmatpush2.msra.mxu0 0.0
    %198 = vmatprep.subr.mxu0 0.0
    %199 = vmatpush2.msra.mxu0 0.0
    %200 = vmatprep.subr.mxu0 0.0
    %201 = vmatpush2.msra.mxu0 0.0
    %202 = vmatprep.subr.mxu0 0.0
    %203 = vmatpush2.msra.mxu0 0.0
    %204 = vmatprep.subr.mxu0 0.0
    %205 = vmatpush2.msra.mxu0 0.0
    %206 = vmatprep.subr.mxu0 0.0
    %207 = vmatpush2.msra.mxu0 0.0
    %208 = vmatprep.subr.mxu0 0.0
    %209 = vmatpush2.msra.mxu0 0.0
    %210 = vmatprep.subr.mxu0 0.0
    %211 = vmatpush2.msra.mxu0 0.0
    %212 = vmatprep.mubr.f32.mxu0 0.0
    %213 = vmatmul.mubr.f32.gmra.mxu0 %v81
    %v214 = vpop.f32.mrf.mxu0
    %v215 = vadd.f32 %v136, %v214
    %v216 = vpop.f32.mrf.mxu0
    %v217 = vadd.f32 %v140, %v216
    %218 = vmatprep.mubr.f32.mxu0 0.0
    %219 = vmatmul.mubr.f32.gmra.mxu0 %v82
    %v220 = vpop.f32.mrf.mxu0
    %v221 = vadd.f32 %v136, %v220
    %v222 = vpop.f32.mrf.mxu0
    %v223 = vadd.f32 %v140, %v222
    %224 = vdwg.mxu0
    %225 = vmatprep.subr.mxu0 0.0
    %226 = vmatpush1.msra.mxu0 %v130
    %227 = vmatprep.subr.mxu0 0.0
    %228 = vmatpush1.msra.mxu0 %v127
    %229 = vmatprep.subr.mxu0 0.0
    %230 = vmatpush1.msra.mxu0 %v124
    %231 = vmatprep.subr.mxu0 0.0
    %232 = vmatpush1.msra.mxu0 %v121
    %233 = vmatprep.subr.mxu0 0.0
    %234 = vmatpush1.msra.mxu0 %v118
    %235 = vmatprep.subr.mxu0 0.0
    %236 = vmatpush1.msra.mxu0 %v115
    %237 = vmatprep.subr.mxu0 0.0
    %238 = vmatpush1.msra.mxu0 %v112
    %239 = vmatprep.subr.mxu0 0.0
    %240 = vmatpush1.msra.mxu0 %v109
    %241 = vmatprep.subr.mxu0 0.0
    %242 = vmatpush1.msra.mxu0 %v106
    %243 = vmatprep.subr.mxu0 0.0
    %244 = vmatpush1.msra.mxu0 %v103
    %245 = vmatprep.subr.mxu0 0.0
    %246 = vmatpush1.msra.mxu0 %v100
    %247 = vmatprep.subr.mxu0 0.0
    %248 = vmatpush1.msra.mxu0 %v97
    %249 = vmatprep.subr.mxu0 0.0
    %250 = vmatpush1.msra.mxu0 %v94
    %251 = vmatprep.subr.mxu0 0.0
    %252 = vmatpush1.msra.mxu0 %v91
    %253 = vmatprep.subr.mxu0 0.0
    %254 = vmatpush1.msra.mxu0 %v88
    %255 = vmatprep.subr.mxu0 0.0
    %256 = vmatpush1.msra.mxu0 %v85
    %257 = vmatprep.subr.mxu0 0.0
    %258 = vmatpush2.msra.mxu0 0.0
    %259 = vmatprep.subr.mxu0 0.0
    %260 = vmatpush2.msra.mxu0 0.0
    %261 = vmatprep.subr.mxu0 0.0
    %262 = vmatpush2.msra.mxu0 0.0
    %263 = vmatprep.subr.mxu0 0.0
    %264 = vmatpush2.msra.mxu0 0.0
    %265 = vmatprep.subr.mxu0 0.0
    %266 = vmatpush2.msra.mxu0 0.0
    %267 = vmatprep.subr.mxu0 0.0
    %268 = vmatpush2.msra.mxu0 0.0
    %269 = vmatprep.subr.mxu0 0.0
    %270 = vmatpush2.msra.mxu0 0.0
    %271 = vmatprep.subr.mxu0 0.0
    %272 = vmatpush2.msra.mxu0 0.0
    %273 = vmatprep.subr.mxu0 0.0
    %274 = vmatpush2.msra.mxu0 0.0
    %275 = vmatprep.subr.mxu0 0.0
    %276 = vmatpush2.msra.mxu0 0.0
    %277 = vmatprep.subr.mxu0 0.0
    %278 = vmatpush2.msra.mxu0 0.0
    %279 = vmatprep.subr.mxu0 0.0
    %280 = vmatpush2.msra.mxu0 0.0
    %281 = vmatprep.subr.mxu0 0.0
    %282 = vmatpush2.msra.mxu0 0.0
    %283 = vmatprep.subr.mxu0 0.0
    %284 = vmatpush2.msra.mxu0 0.0
    %285 = vmatprep.subr.mxu0 0.0
    %286 = vmatpush2.msra.mxu0 0.0
    %287 = vmatprep.subr.mxu0 0.0
    %288 = vmatpush2.msra.mxu0 0.0
    %289 = vmatprep.mubr.f32.mxu0 0.0
    %290 = vmatmul.mubr.f32.gmra.mxu0 %v81
    %v291 = vpop.f32.mrf.mxu0
    %v292 = vadd.f32 %v144, %v291
    %v293 = vpop.f32.mrf.mxu0
    %294 = vmatprep.mubr.f32.mxu0 0.0
    %295 = vmatmul.mubr.f32.gmra.mxu0 %v82
    %v296 = vpop.f32.mrf.mxu0
    %v297 = vadd.f32 %v144, %v296
    %v298 = vpop.f32.mrf.mxu0
    %299 = vdwg.mxu0
    %300 = vst [vmem:[%s5] sm:$0xff] %v215
    %301 = vst [vmem:[%s5 + $0x8] sm:$0xff] %v217
    %302 = vst [vmem:[%s5 + $0x10] sm:$0xff] %v292
    %303 = vst [vmem:[%s5 + $0x18] sm:$0xff] %v221
    %304 = vst [vmem:[%s5 + $0x20] sm:$0xff] %v223
    %305 = vst [vmem:[%s5 + $0x28] sm:$0xff] %v297
    // Predicated region
    $region26: #{transformer_decoder_layer.9} parent=1 // pred_check
      _
    $region27: #{transformer_decoder_layer.9} parent=1 // pred_check_branch
      %307 = sbr.rel (0) target = $region29
    $region28: #{transformer_decoder_layer.9} parent=1 // pred_region
      _
    $region29: #{transformer_decoder_layer.9} parent=1 // pred_fallthru
      _
    // Predicated region
    $region30: #{transformer_decoder_layer.9} parent=1 // pred_check
      _
    $region31: #{transformer_decoder_layer.9} parent=1 // pred_check_branch
      %309 = sbr.rel (0) target = $region33
    $region32: #{transformer_decoder_layer.9} parent=1 // pred_region
      _
    $region33: #{transformer_decoder_layer.9} parent=1 // pred_fallthru
      _
    %310 = vsyncpa [#allocation3], 1

// kernel: transformer_decoder_layer.10
$region0: #{transformer_decoder_layer.10}
  #allocation0 [shape = 'u32[]', space=smem, size = 0x4, offset = 0x4, fixed_abs, tag = 'smem constant byte address 0x4 - core index']
  #allocation1 [shape = 'u32[144,128]{1,0:T(1,128)}', space=vmem, size = 0x12000, scoped, tag = 'internal scratch']
  %s0 = inlined_call_operand.vmem [shape: f32[2,8,384], index: 0, kind: input, shape index: {}]
  %s1 = inlined_call_operand.vmem [shape: f32[2,8,128], index: 1, kind: output, shape index: {}]
  %s2 = sld [smem:[#allocation0]]
  $region37: #{transformer_decoder_layer.10} parent=0
    _
  %s4 = ssub.s32 1, %s2
  %s5 = scalar_select 0, %s4, %s2
  loop: start=0, step=1, limit=4
  $region2: #{transformer_decoder_layer.10} parent=0 // loop_pre_header
    _
  $region3: #{transformer_decoder_layer.10} parent=0 // loop_header
    %s7 = sphi 0, %s11
    %p8 = scmp.ge.s32.totalorder %s7, 4
    %s17 = sphi 0, %s19
    %s20 = sphi 0, %s17
    %s21 = sphi 0, %s20
    %s37 = sphi 0, %s21
    %s43 = sphi 0, %s45
    %s46 = sphi 0, %s43
    %s47 = sphi 0, %s46
    %s63 = sphi 0, %s47
  $region4: #{transformer_decoder_layer.10} parent=0 // loop_header_branch
    %10 = sbr.rel (%p8) target = $region8
  $region5: #{transformer_decoder_layer.10} parent=0 // loop_body
    %s12 = ssub.s32 %s7, 1
    %s13 = ssub.s32 %s7, 2
    %s14 = sadd.s32 %s7, 1
    %s15 = ssub.s32 %s7, %s14
    %p16 = scmp.eq.s32.totalorder %s15, 0
    %s18 = sadd.s32 %s17, 1
    %s19 = scalar_select %p16, %s17, %s18
    %p22 = pneg %p16
    %p23 = scmp.eq.s32.totalorder %s7, 1
    %p24 = por %p22, %p23
    %p25 = scmp.ne.s32.totalorder %s17, %s20
    %p26 = scmp.eq.s32.totalorder %s7, 0
    %p27 = por %p25, %p26
    %p28 = scmp.ne.s32.totalorder %s17, %s20
    %p29 = scmp.eq.s32.totalorder %s12, 1
    %p30 = por %p28, %p29
    %p31 = scmp.ne.s32.totalorder %s20, %s21
    %p32 = scmp.eq.s32.totalorder %s12, 0
    %p33 = por %p31, %p32
    %p34 = scmp.ne.s32.totalorder %s20, %s21
    %p35 = scmp.eq.s32.totalorder %s13, 1
    %p36 = por %p34, %p35
    %p38 = scmp.ne.s32.totalorder %s21, %s37
    %p39 = scmp.eq.s32.totalorder %s13, 0
    %p40 = por %p38, %p39
    %s41 = ssub.s32 %s7, %s14
    %p42 = scmp.eq.s32.totalorder %s41, 0
    %s44 = sadd.s32 %s43, 1
    %s45 = scalar_select %p42, %s43, %s44
    %p48 = pneg %p42
    %p49 = scmp.eq.s32.totalorder %s7, 1
    %p50 = por %p48, %p49
    %p51 = scmp.ne.s32.totalorder %s43, %s46
    %p52 = scmp.eq.s32.totalorder %s7, 0
    %p53 = por %p51, %p52
    %p54 = scmp.ne.s32.totalorder %s43, %s46
    %p55 = scmp.eq.s32.totalorder %s12, 1
    %p56 = por %p54, %p55
    %p57 = scmp.ne.s32.totalorder %s46, %s47
    %p58 = scmp.eq.s32.totalorder %s12, 0
    %p59 = por %p57, %p58
    %p60 = scmp.ne.s32.totalorder %s46, %s47
    %p61 = scmp.eq.s32.totalorder %s13, 1
    %p62 = por %p60, %p61
    %p64 = scmp.ne.s32.totalorder %s47, %s63
    %p65 = scmp.eq.s32.totalorder %s13, 0
    %p66 = por %p64, %p65
    %p67 = scmp.le.s32.totalorder 1, %s7
    %p68 = scmp.lt.s32.totalorder %s7, 3
    %p69 = pnand %p67, %p68
    %p70 = pneg %p69
    // Predicated region
    $region9: #{transformer_decoder_layer.10} parent=5 // pred_check
      _
    $region10: #{transformer_decoder_layer.10} parent=5 // pred_check_branch
      %72 = sbr.rel (%p69) target = $region12
    $region11: #{transformer_decoder_layer.10} parent=5 // pred_region
      %s73 = ssub.s32 %s7, 1
    $region12: #{transformer_decoder_layer.10} parent=5 // pred_fallthru
      _
    %p74 = scmp.lt.s32.totalorder %s7, 2
    // Predicated region
    $region13: #{transformer_decoder_layer.10} parent=5 // pred_check
      %p75 = pneg %p74
    $region14: #{transformer_decoder_layer.10} parent=5 // pred_check_branch
      %77 = sbr.rel (%p75) target = $region16
    $region15: #{transformer_decoder_layer.10} parent=5 // pred_region
      // Predicated region
      $region17: #{transformer_decoder_layer.10} parent=15 // pred_check
        %p78 = pneg %p27
      $region18: #{transformer_decoder_layer.10} parent=15 // pred_check_branch
        %80 = sbr.rel (%p78) target = $region20
      $region19: #{transformer_decoder_layer.10} parent=15 // pred_region
        %p81 = scmp.lt.s32.totalorder %s7, 1
        %s82 = scalar_select %p81, %s7, 1
        %s83 = smul.addr %s82, 3
        %s84 = smul.addr %s83, 8
        %s85 = scalar_lea.vmem %s0, %s84
      $region20: #{transformer_decoder_layer.10} parent=15 // pred_fallthru
        _
    $region16: #{transformer_decoder_layer.10} parent=5 // pred_fallthru
      _
    %p86 = scmp.le.s32.totalorder 1, %s7
    %p87 = scmp.lt.s32.totalorder %s7, 3
    %p88 = pnand %p86, %p87
    %p89 = pneg %p88
    // Predicated region
    $region21: #{transformer_decoder_layer.10} parent=5 // pred_check
      _
    $region22: #{transformer_decoder_layer.10} parent=5 // pred_check_branch
      %91 = sbr.rel (%p88) target = $region24
    $region23: #{transformer_decoder_layer.10} parent=5 // pred_region
      %s92 = ssub.s32 %s7, 1
      %p93 = scmp.lt.s32.totalorder %s12, 1
      %s94 = scalar_select %p93, %s12, 1
      %s95 = smul.addr %s94, 3
      %s96 = smul.addr %s95, 8
      %s97 = scalar_lea.vmem %s0, %s96
      %p98 = pneg %p33
      %p99 = pneg %p30
      %p100 = pneg %p59
      %p101 = pneg %p56
      %p102 = scmp.lt.s32.totalorder %s12, 1
      %s103 = scalar_select %p102, %s12, 1
      %s104 = smul.addr %s103, 8
      %s105 = scalar_lea.vmem %s1, %s104
      %p106 = scmp.lt.s32.totalorder %s12, 1
      %s107 = scalar_select %p106, %s12, 1
      %s108 = smul.addr %s107, 3
      %s109 = smul.addr %s108, 8
      %s110 = scalar_lea.vmem %s0, %s109
      %p111 = scmp.lt.s32.totalorder %s12, 1
      %s112 = scalar_select %p111, %s12, 1
      %s113 = smul.addr %s112, 8
      %s114 = scalar_lea.vmem %s1, %s113
      %v115 = vld [vmem:[%s110] sm:$0xff]
      %v116 = vld [vmem:[%s110 + $0x8] sm:$0xff]
      %v117 = vld [vmem:[%s110 + $0x10] sm:$0xff]
      %v118 = vlaneseq
      %v119 = vshrl.u32 %v118, 7
      %v120 = vlaneseq
      %v121 = vand.u32 %v120, 127
      %vm122 = vcmp.le.s32.totalorder %v121, %v119
      %v123 = vsel %vm122, 0.0, -1e+09
      %vm124 = vcmask 64512
      %v126 = vsel %vm124, %v115, 0
      %v129 = vsel %vm124, %v116, 0
      %131 = vmatprep.subr.mxu0 0.0
      %132 = vmatpush1.xpose.msra.mxu0 0.0
      %133 = vmatprep.subr.mxu0 0.0
      %134 = vmatpush1.xpose.msra.mxu0 0.0
      %135 = vmatprep.subr.mxu0 0.0
      %136 = vmatpush1.xpose.msra.mxu0 0.0
      %137 = vmatprep.subr.mxu0 0.0
      %138 = vmatpush1.xpose.msra.mxu0 0.0
      %139 = vmatprep.subr.mxu0 0.0
      %140 = vmatpush1.xpose.msra.mxu0 0.0
      %141 = vmatprep.subr.mxu0 0.0
      %142 = vmatpush1.xpose.msra.mxu0 0.0
      %143 = vmatprep.subr.mxu0 0.0
      %144 = vmatpush1.xpose.msra.mxu0 0.0
      %145 = vmatprep.subr.mxu0 0.0
      %146 = vmatpush1.xpose.msra.mxu0 0.0
      %147 = vmatprep.subr.mxu0 0.0
      %148 = vmatpush1.xpose.msra.mxu0 0.0
      %149 = vmatprep.subr.mxu0 0.0
      %150 = vmatpush1.xpose.msra.mxu0 0.0
      %151 = vmatprep.subr.mxu0 0.0
      %152 = vmatpush1.xpose.msra.mxu0 0.0
      %153 = vmatprep.subr.mxu0 0.0
      %154 = vmatpush1.xpose.msra.mxu0 0.0
      %155 = vmatprep.subr.mxu0 0.0
      %156 = vmatpush1.xpose.msra.mxu0 0.0
      %157 = vmatprep.subr.mxu0 0.0
      %158 = vmatpush1.xpose.msra.mxu0 0.0
      %159 = vmatprep.subr.mxu0 0.0
      %160 = vmatpush1.xpose.msra.mxu0 0.0
      %161 = vmatprep.subr.mxu0 0.0
      %162 = vmatpush1.xpose.msra.mxu0 %v129
      %163 = vmatprep.subr.mxu0 0.0
      %164 = vmatpush2.xpose.msra.mxu0 0.0
      %165 = vmatprep.subr.mxu0 0.0
      %166 = vmatpush2.xpose.msra.mxu0 0.0
      %167 = vmatprep.subr.mxu0 0.0
      %168 = vmatpush2.xpose.msra.mxu0 0.0
      %169 = vmatprep.subr.mxu0 0.0
      %170 = vmatpush2.xpose.msra.mxu0 0.0
      %171 = vmatprep.subr.mxu0 0.0
      %172 = vmatpush2.xpose.msra.mxu0 0.0
      %173 = vmatprep.subr.mxu0 0.0
      %174 = vmatpush2.xpose.msra.mxu0 0.0
      %175 = vmatprep.subr.mxu0 0.0
      %176 = vmatpush2.xpose.msra.mxu0 0.0
      %177 = vmatprep.subr.mxu0 0.0
      %178 = vmatpush2.xpose.msra.mxu0 0.0
      %179 = vmatprep.subr.mxu0 0.0
      %180 = vmatpush2.xpose.msra.mxu0 0.0
      %181 = vmatprep.subr.mxu0 0.0
      %182 = vmatpush2.xpose.msra.mxu0 0.0
      %183 = vmatprep.subr.mxu0 0.0
      %184 = vmatpush2.xpose.msra.mxu0 0.0
      %185 = vmatprep.subr.mxu0 0.0
      %186 = vmatpush2.xpose.msra.mxu0 0.0
      %187 = vmatprep.subr.mxu0 0.0
      %188 = vmatpush2.xpose.msra.mxu0 0.0
      %189 = vmatprep.subr.mxu0 0.0
      %190 = vmatpush2.xpose.msra.mxu0 0.0
      %191 = vmatprep.subr.mxu0 0.0
      %192 = vmatpush2.xpose.msra.mxu0 0.0
      %193 = vmatprep.subr.mxu0 0.0
      %194 = vmatpush2.xpose.msra.mxu0 0.0
      %195 = vmatprep.mubr.f32.mxu0 0.0
      %196 = vmatmul.mubr.f32.gmra.mxu0 %v126
      %v197 = vpop.f32.mrf.mxu0
      %v198 = vadd.f32 0.0, %v197
      %v199 = vpop.f32.mrf.mxu0
      %200 = vdwg.mxu0
      %v201 = vmul.f32 %v198, 0.35355338
      %v202 = vadd.f32 %v201, %v123
      %v203 = vsel %vm124, %v202, -inf
      %204 = vmax.xlane.f32.xlu0 %v203
      %v205 = vpop.xlane.xlu0 %204
      %v206 = vsub.f32 %v202, %v205
      %v207 = vmul.f32 %v206, 1.442695
      %v208 = vpow.pop %v207
      %v209 = vsel %vm124, %v208, 0.0
      %210 = vadd.xlane.f32.xlu0 %v209
      %v211 = vpop.xlane.xlu0 %210
      %v213 = vsel %vm124, %v208, 0
      %215 = vmatprep.subr.mxu0 0.0
      %216 = vmatpush1.msra.mxu0 0.0
      %217 = vmatprep.subr.mxu0 0.0
      %218 = vmatpush1.msra.mxu0 0.0
      %219 = vmatprep.subr.mxu0 0.0
      %220 = vmatpush1.msra.mxu0 0.0
      %221 = vmatprep.subr.mxu0 0.0
      %222 = vmatpush1.msra.mxu0 0.0
      %223 = vmatprep.subr.mxu0 0.0
      %224 = vmatpush1.msra.mxu0 0.0
      %225 = vmatprep.subr.mxu0 0.0
      %226 = vmatpush1.msra.mxu0 0.0
      %227 = vmatprep.subr.mxu0 0.0
      %228 = vmatpush1.msra.mxu0 0.0
      %229 = vmatprep.subr.mxu0 0.0
      %230 = vmatpush1.msra.mxu0 0.0
      %231 = vmatprep.subr.mxu0 0.0
      %232 = vmatpush1.msra.mxu0 0.0
      %233 = vmatprep.subr.mxu0 0.0
      %234 = vmatpush1.msra.mxu0 0.0
      %235 = vmatprep.subr.mxu0 0.0
      %236 = vmatpush1.msra.mxu0 0.0
      %237 = vmatprep.subr.mxu0 0.0
      %238 = vmatpush1.msra.mxu0 0.0
      %239 = vmatprep.subr.mxu0 0.0
      %240 = vmatpush1.msra.mxu0 0.0
      %241 = vmatprep.subr.mxu0 0.0
      %242 = vmatpush1.msra.mxu0 0.0
      %243 = vmatprep.subr.mxu0 0.0
      %244 = vmatpush1.msra.mxu0 0.0
      %245 = vmatprep.subr.mxu0 0.0
      %246 = vmatpush1.msra.mxu0 %v117
      %247 = vmatprep.subr.mxu0 0.0
      %248 = vmatpush2.msra.mxu0 0.0
      %249 = vmatprep.subr.mxu0 0.0
      %250 = vmatpush2.msra.mxu0 0.0
      %251 = vmatprep.subr.mxu0 0.0
      %252 = vmatpush2.msra.mxu0 0.0
      %253 = vmatprep.subr.mxu0 0.0
      %254 = vmatpush2.msra.mxu0 0.0
      %255 = vmatprep.subr.mxu0 0.0
      %256 = vmatpush2.msra.mxu0 0.0
      %257 = vmatprep.subr.mxu0 0.0
      %258 = vmatpush2.msra.mxu0 0.0
      %259 = vmatprep.subr.mxu0 0.0
      %260 = vmatpush2.msra.mxu0 0.0
      %261 = vmatprep.subr.mxu0 0.0
      %262 = vmatpush2.msra.mxu0 0.0
      %263 = vmatprep.subr.mxu0 0.0
      %264 = vmatpush2.msra.mxu0 0.0
      %265 = vmatprep.subr.mxu0 0.0
      %266 = vmatpush2.msra.mxu0 0.0
      %267 = vmatprep.subr.mxu0 0.0
      %268 = vmatpush2.msra.mxu0 0.0
      %269 = vmatprep.subr.mxu0 0.0
      %270 = vmatpush2.msra.mxu0 0.0
      %271 = vmatprep.subr.mxu0 0.0
      %272 = vmatpush2.msra.mxu0 0.0
      %273 = vmatprep.subr.mxu0 0.0
      %274 = vmatpush2.msra.mxu0 0.0
      %275 = vmatprep.subr.mxu0 0.0
      %276 = vmatpush2.msra.mxu0 0.0
      %277 = vmatprep.subr.mxu0 0.0
      %278 = vmatpush2.msra.mxu0 0.0
      %279 = vmatprep.mubr.f32.mxu0 0.0
      %280 = vmatmul.mubr.f32.gmra.mxu0 %v213
      %v281 = vpop.f32.mrf.mxu0
      %v282 = vadd.f32 0.0, %v281
      %v283 = vpop.f32.mrf.mxu0
      %284 = vdwg.mxu0
      %v285 = vrcp.pop %v211
      %v286 = vmul.f32 %v282, %v285
      %287 = vrot.lane.b32.xlu0 %v115, 120
      %v288 = vpop.permute.xlu0 %287
      %289 = vrot.lane.b32.xlu0 %v116, 120
      %v290 = vpop.permute.xlu0 %289
      %v291 = vsel %vm124, %v288, 0
      %v293 = vsel %vm124, %v290, 0
      %295 = vmatprep.subr.mxu0 0.0
      %296 = vmatpush1.xpose.msra.mxu0 0.0
      %297 = vmatprep.subr.mxu0 0.0
      %298 = vmatpush1.xpose.msra.mxu0 0.0
      %299 = vmatprep.subr.mxu0 0.0
      %300 = vmatpush1.xpose.msra.mxu0 0.0
      %301 = vmatprep.subr.mxu0 0.0
      %302 = vmatpush1.xpose.msra.mxu0 0.0
      %303 = vmatprep.subr.mxu0 0.0
      %304 = vmatpush1.xpose.msra.mxu0 0.0
      %305 = vmatprep.subr.mxu0 0.0
      %306 = vmatpush1.xpose.msra.mxu0 0.0
      %307 = vmatprep.subr.mxu0 0.0
      %308 = vmatpush1.xpose.msra.mxu0 0.0
      %309 = vmatprep.subr.mxu0 0.0
      %310 = vmatpush1.xpose.msra.mxu0 0.0
      %311 = vmatprep.subr.mxu0 0.0
      %312 = vmatpush1.xpose.msra.mxu0 0.0
      %313 = vmatprep.subr.mxu0 0.0
      %314 = vmatpush1.xpose.msra.mxu0 0.0
      %315 = vmatprep.subr.mxu0 0.0
      %316 = vmatpush1.xpose.msra.mxu0 0.0
      %317 = vmatprep.subr.mxu0 0.0
      %318 = vmatpush1.xpose.msra.mxu0 0.0
      %319 = vmatprep.subr.mxu0 0.0
      %320 = vmatpush1.xpose.msra.mxu0 0.0
      %321 = vmatprep.subr.mxu0 0.0
      %322 = vmatpush1.xpose.msra.mxu0 0.0
      %323 = vmatprep.subr.mxu0 0.0
      %324 = vmatpush1.xpose.msra.mxu0 0.0
      %325 = vmatprep.subr.mxu0 0.0
      %326 = vmatpush1.xpose.msra.mxu0 %v293
      %327 = vmatprep.subr.mxu0 0.0
      %328 = vmatpush2.xpose.msra.mxu0 0.0
      %329 = vmatprep.subr.mxu0 0.0
      %330 = vmatpush2.xpose.msra.mxu0 0.0
      %331 = vmatprep.subr.mxu0 0.0
      %332 = vmatpush2.xpose.msra.mxu0 0.0
      %333 = vmatprep.subr.mxu0 0.0
      %334 = vmatpush2.xpose.msra.mxu0 0.0
      %335 = vmatprep.subr.mxu0 0.0
      %336 = vmatpush2.xpose.msra.mxu0 0.0
      %337 = vmatprep.subr.mxu0 0.0
      %338 = vmatpush2.xpose.msra.mxu0 0.0
      %339 = vmatprep.subr.mxu0 0.0
      %340 = vmatpush2.xpose.msra.mxu0 0.0
      %341 = vmatprep.subr.mxu0 0.0
      %342 = vmatpush2.xpose.msra.mxu0 0.0
      %343 = vmatprep.subr.mxu0 0.0
      %344 = vmatpush2.xpose.msra.mxu0 0.0
      %345 = vmatprep.subr.mxu0 0.0
      %346 = vmatpush2.xpose.msra.mxu0 0.0
      %347 = vmatprep.subr.mxu0 0.0
      %348 = vmatpush2.xpose.msra.mxu0 0.0
      %349 = vmatprep.subr.mxu0 0.0
      %350 = vmatpush2.xpose.msra.mxu0 0.0
      %351 = vmatprep.subr.mxu0 0.0
      %352 = vmatpush2.xpose.msra.mxu0 0.0
      %353 = vmatprep.subr.mxu0 0.0
      %354 = vmatpush2.xpose.msra.mxu0 0.0
      %355 = vmatprep.subr.mxu0 0.0
      %356 = vmatpush2.xpose.msra.mxu0 0.0
      %357 = vmatprep.subr.mxu0 0.0
      %358 = vmatpush2.xpose.msra.mxu0 0.0
      %359 = vmatprep.mubr.f32.mxu0 0.0
      %360 = vmatmul.mubr.f32.gmra.mxu0 %v291
      %v361 = vpop.f32.mrf.mxu0
      %v362 = vadd.f32 0.0, %v361
      %v363 = vpop.f32.mrf.mxu0
      %364 = vdwg.mxu0
      %v365 = vmul.f32 %v362, 0.35355338
      %v366 = vadd.f32 %v365, %v123
      %v367 = vsel %vm124, %v366, -inf
      %368 = vmax.xlane.f32.xlu0 %v367
      %v369 = vpop.xlane.xlu0 %368
      %v370 = vsub.f32 %v366, %v369
      %v371 = vmul.f32 %v370, 1.442695
      %v372 = vpow.pop %v371
      %v373 = vsel %vm124, %v372, 0.0
      %374 = vadd.xlane.f32.xlu0 %v373
      %v375 = vpop.xlane.xlu0 %374
      %377 = vrot.lane.b32.xlu0 %v117, 120
      %v378 = vpop.permute.xlu0 %377
      %v381 = vsel %vm124, %v372, 0
      %383 = vmatprep.subr.mxu0 0.0
      %384 = vmatpush1.msra.mxu0 0.0
      %385 = vmatprep.subr.mxu0 0.0
      %386 = vmatpush1.msra.mxu0 0.0
      %387 = vmatprep.subr.mxu0 0.0
      %388 = vmatpush1.msra.mxu0 0.0
      %389 = vmatprep.subr.mxu0 0.0
      %390 = vmatpush1.msra.mxu0 0.0
      %391 = vmatprep.subr.mxu0 0.0
      %392 = vmatpush1.msra.mxu0 0.0
      %393 = vmatprep.subr.mxu0 0.0
      %394 = vmatpush1.msra.mxu0 0.0
      %395 = vmatprep.subr.mxu0 0.0
      %396 = vmatpush1.msra.mxu0 0.0
      %397 = vmatprep.subr.mxu0 0.0
      %398 = vmatpush1.msra.mxu0 0.0
      %399 = vmatprep.subr.mxu0 0.0
      %400 = vmatpush1.msra.mxu0 0.0
      %401 = vmatprep.subr.mxu0 0.0
      %402 = vmatpush1.msra.mxu0 0.0
      %403 = vmatprep.subr.mxu0 0.0
      %404 = vmatpush1.msra.mxu0 0.0
      %405 = vmatprep.subr.mxu0 0.0
      %406 = vmatpush1.msra.mxu0 0.0
      %407 = vmatprep.subr.mxu0 0.0
      %408 = vmatpush1.msra.mxu0 0.0
      %409 = vmatprep.subr.mxu0 0.0
      %410 = vmatpush1.msra.mxu0 0.0
      %411 = vmatprep.subr.mxu0 0.0
      %412 = vmatpush1.msra.mxu0 0.0
      %413 = vmatprep.subr.mxu0 0.0
      %414 = vmatpush1.msra.mxu0 %v378
      %415 = vmatprep.subr.mxu0 0.0
      %416 = vmatpush2.msra.mxu0 0.0
      %417 = vmatprep.subr.mxu0 0.0
      %418 = vmatpush2.msra.mxu0 0.0
      %419 = vmatprep.subr.mxu0 0.0
      %420 = vmatpush2.msra.mxu0 0.0
      %421 = vmatprep.subr.mxu0 0.0
      %422 = vmatpush2.msra.mxu0 0.0
      %423 = vmatprep.subr.mxu0 0.0
      %424 = vmatpush2.msra.mxu0 0.0
      %425 = vmatprep.subr.mxu0 0.0
      %426 = vmatpush2.msra.mxu0 0.0
      %427 = vmatprep.subr.mxu0 0.0
      %428 = vmatpush2.msra.mxu0 0.0
      %429 = vmatprep.subr.mxu0 0.0
      %430 = vmatpush2.msra.mxu0 0.0
      %431 = vmatprep.subr.mxu0 0.0
      %432 = vmatpush2.msra.mxu0 0.0
      %433 = vmatprep.subr.mxu0 0.0
      %434 = vmatpush2.msra.mxu0 0.0
      %435 = vmatprep.subr.mxu0 0.0
      %436 = vmatpush2.msra.mxu0 0.0
      %437 = vmatprep.subr.mxu0 0.0
      %438 = vmatpush2.msra.mxu0 0.0
      %439 = vmatprep.subr.mxu0 0.0
      %440 = vmatpush2.msra.mxu0 0.0
      %441 = vmatprep.subr.mxu0 0.0
      %442 = vmatpush2.msra.mxu0 0.0
      %443 = vmatprep.subr.mxu0 0.0
      %444 = vmatpush2.msra.mxu0 0.0
      %445 = vmatprep.subr.mxu0 0.0
      %446 = vmatpush2.msra.mxu0 0.0
      %447 = vmatprep.mubr.f32.mxu0 0.0
      %448 = vmatmul.mubr.f32.gmra.mxu0 %v381
      %v449 = vpop.f32.mrf.mxu0
      %v450 = vadd.f32 0.0, %v449
      %v451 = vpop.f32.mrf.mxu0
      %452 = vdwg.mxu0
      %v453 = vrcp.pop %v375
      %v454 = vmul.f32 %v450, %v453
      %455 = vrot.lane.b32.xlu0 %v115, 112
      %v456 = vpop.permute.xlu0 %455
      %457 = vrot.lane.b32.xlu0 %v116, 112
      %v458 = vpop.permute.xlu0 %457
      %v459 = vsel %vm124, %v456, 0
      %v461 = vsel %vm124, %v458, 0
      %463 = vmatprep.subr.mxu0 0.0
      %464 = vmatpush1.xpose.msra.mxu0 0.0
      %465 = vmatprep.subr.mxu0 0.0
      %466 = vmatpush1.xpose.msra.mxu0 0.0
      %467 = vmatprep.subr.mxu0 0.0
      %468 = vmatpush1.xpose.msra.mxu0 0.0
      %469 = vmatprep.subr.mxu0 0.0
      %470 = vmatpush1.xpose.msra.mxu0 0.0
      %471 = vmatprep.subr.mxu0 0.0
      %472 = vmatpush1.xpose.msra.mxu0 0.0
      %473 = vmatprep.subr.mxu0 0.0
      %474 = vmatpush1.xpose.msra.mxu0 0.0
      %475 = vmatprep.subr.mxu0 0.0
      %476 = vmatpush1.xpose.msra.mxu0 0.0
      %477 = vmatprep.subr.mxu0 0.0
      %478 = vmatpush1.xpose.msra.mxu0 0.0
      %479 = vmatprep.subr.mxu0 0.0
      %480 = vmatpush1.xpose.msra.mxu0 0.0
      %481 = vmatprep.subr.mxu0 0.0
      %482 = vmatpush1.xpose.msra.mxu0 0.0
      %483 = vmatprep.subr.mxu0 0.0
      %484 = vmatpush1.xpose.msra.mxu0 0.0
      %485 = vmatprep.subr.mxu0 0.0
      %486 = vmatpush1.xpose.msra.mxu0 0.0
      %487 = vmatprep.subr.mxu0 0.0
      %488 = vmatpush1.xpose.msra.mxu0 0.0
      %489 = vmatprep.subr.mxu0 0.0
      %490 = vmatpush1.xpose.msra.mxu0 0.0
      %491 = vmatprep.subr.mxu0 0.0
      %492 = vmatpush1.xpose.msra.mxu0 0.0
      %493 = vmatprep.subr.mxu0 0.0
      %494 = vmatpush1.xpose.msra.mxu0 %v461
      %495 = vmatprep.subr.mxu0 0.0
      %496 = vmatpush2.xpose.msra.mxu0 0.0
      %497 = vmatprep.subr.mxu0 0.0
      %498 = vmatpush2.xpose.msra.mxu0 0.0
      %499 = vmatprep.subr.mxu0 0.0
      %500 = vmatpush2.xpose.msra.mxu0 0.0
      %501 = vmatprep.subr.mxu0 0.0
      %502 = vmatpush2.xpose.msra.mxu0 0.0
      %503 = vmatprep.subr.mxu0 0.0
      %504 = vmatpush2.xpose.msra.mxu0 0.0
      %505 = vmatprep.subr.mxu0 0.0
      %506 = vmatpush2.xpose.msra.mxu0 0.0
      %507 = vmatprep.subr.mxu0 0.0
      %508 = vmatpush2.xpose.msra.mxu0 0.0
      %509 = vmatprep.subr.mxu0 0.0
      %510 = vmatpush2.xpose.msra.mxu0 0.0
      %511 = vmatprep.subr.mxu0 0.0
      %512 = vmatpush2.xpose.msra.mxu0 0.0
      %513 = vmatprep.subr.mxu0 0.0
      %514 = vmatpush2.xpose.msra.mxu0 0.0
      %515 = vmatprep.subr.mxu0 0.0
      %516 = vmatpush2.xpose.msra.mxu0 0.0
      %517 = vmatprep.subr.mxu0 0.0
      %518 = vmatpush2.xpose.msra.mxu0 0.0
      %519 = vmatprep.subr.mxu0 0.0
      %520 = vmatpush2.xpose.msra.mxu0 0.0
      %521 = vmatprep.subr.mxu0 0.0
      %522 = vmatpush2.xpose.msra.mxu0 0.0
      %523 = vmatprep.subr.mxu0 0.0
      %524 = vmatpush2.xpose.msra.mxu0 0.0
      %525 = vmatprep.subr.mxu0 0.0
      %526 = vmatpush2.xpose.msra.mxu0 0.0
      %527 = vmatprep.mubr.f32.mxu0 0.0
      %528 = vmatmul.mubr.f32.gmra.mxu0 %v459
      %v529 = vpop.f32.mrf.mxu0
      %v530 = vadd.f32 0.0, %v529
      %v531 = vpop.f32.mrf.mxu0
      %532 = vdwg.mxu0
      %v533 = vmul.f32 %v530, 0.35355338
      %v534 = vadd.f32 %v533, %v123
      %v535 = vsel %vm124, %v534, -inf
      %536 = vmax.xlane.f32.xlu0 %v535
      %v537 = vpop.xlane.xlu0 %536
      %v538 = vsub.f32 %v534, %v537
      %v539 = vmul.f32 %v538, 1.442695
      %v540 = vpow.pop %v539
      %v541 = vsel %vm124, %v540, 0.0
      %542 = vadd.xlane.f32.xlu0 %v541
      %v543 = vpop.xlane.xlu0 %542
      %544 = vrot.lane.b32.xlu0 %v117, 112
      %v545 = vpop.permute.xlu0 %544
      %v548 = vsel %vm124, %v540, 0
      %550 = vmatprep.subr.mxu0 0.0
      %551 = vmatpush1.msra.mxu0 0.0
      %552 = vmatprep.subr.mxu0 0.0
      %553 = vmatpush1.msra.mxu0 0.0
      %554 = vmatprep.subr.mxu0 0.0
      %555 = vmatpush1.msra.mxu0 0.0
      %556 = vmatprep.subr.mxu0 0.0
      %557 = vmatpush1.msra.mxu0 0.0
      %558 = vmatprep.subr.mxu0 0.0
      %559 = vmatpush1.msra.mxu0 0.0
      %560 = vmatprep.subr.mxu0 0.0
      %561 = vmatpush1.msra.mxu0 0.0
      %562 = vmatprep.subr.mxu0 0.0
      %563 = vmatpush1.msra.mxu0 0.0
      %564 = vmatprep.subr.mxu0 0.0
      %565 = vmatpush1.msra.mxu0 0.0
      %566 = vmatprep.subr.mxu0 0.0
      %567 = vmatpush1.msra.mxu0 0.0
      %568 = vmatprep.subr.mxu0 0.0
      %569 = vmatpush1.msra.mxu0 0.0
      %570 = vmatprep.subr.mxu0 0.0
      %571 = vmatpush1.msra.mxu0 0.0
      %572 = vmatprep.subr.mxu0 0.0
      %573 = vmatpush1.msra.mxu0 0.0
      %574 = vmatprep.subr.mxu0 0.0
      %575 = vmatpush1.msra.mxu0 0.0
      %576 = vmatprep.subr.mxu0 0.0
      %577 = vmatpush1.msra.mxu0 0.0
      %578 = vmatprep.subr.mxu0 0.0
      %579 = vmatpush1.msra.mxu0 0.0
      %580 = vmatprep.subr.mxu0 0.0
      %581 = vmatpush1.msra.mxu0 %v545
      %582 = vmatprep.subr.mxu0 0.0
      %583 = vmatpush2.msra.mxu0 0.0
      %584 = vmatprep.subr.mxu0 0.0
      %585 = vmatpush2.msra.mxu0 0.0
      %586 = vmatprep.subr.mxu0 0.0
      %587 = vmatpush2.msra.mxu0 0.0
      %588 = vmatprep.subr.mxu0 0.0
      %589 = vmatpush2.msra.mxu0 0.0
      %590 = vmatprep.subr.mxu0 0.0
      %591 = vmatpush2.msra.mxu0 0.0
      %592 = vmatprep.subr.mxu0 0.0
      %593 = vmatpush2.msra.mxu0 0.0
      %594 = vmatprep.subr.mxu0 0.0
      %595 = vmatpush2.msra.mxu0 0.0
      %596 = vmatprep.subr.mxu0 0.0
      %597 = vmatpush2.msra.mxu0 0.0
      %598 = vmatprep.subr.mxu0 0.0
      %599 = vmatpush2.msra.mxu0 0.0
      %600 = vmatprep.subr.mxu0 0.0
      %601 = vmatpush2.msra.mxu0 0.0
      %602 = vmatprep.subr.mxu0 0.0
      %603 = vmatpush2.msra.mxu0 0.0
      %604 = vmatprep.subr.mxu0 0.0
      %605 = vmatpush2.msra.mxu0 0.0
      %606 = vmatprep.subr.mxu0 0.0
      %607 = vmatpush2.msra.mxu0 0.0
      %608 = vmatprep.subr.mxu0 0.0
      %609 = vmatpush2.msra.mxu0 0.0
      %610 = vmatprep.subr.mxu0 0.0
      %611 = vmatpush2.msra.mxu0 0.0
      %612 = vmatprep.subr.mxu0 0.0
      %613 = vmatpush2.msra.mxu0 0.0
      %614 = vmatprep.mubr.f32.mxu0 0.0
      %615 = vmatmul.mubr.f32.gmra.mxu0 %v548
      %v616 = vpop.f32.mrf.mxu0
      %v617 = vadd.f32 0.0, %v616
      %v618 = vpop.f32.mrf.mxu0
      %619 = vdwg.mxu0
      %v620 = vrcp.pop %v543
      %v621 = vmul.f32 %v617, %v620
      %622 = vrot.lane.b32.xlu0 %v115, 104
      %v623 = vpop.permute.xlu0 %622
      %624 = vrot.lane.b32.xlu0 %v116, 104
      %v625 = vpop.permute.xlu0 %624
      %v626 = vsel %vm124, %v623, 0
      %v628 = vsel %vm124, %v625, 0
      %630 = vmatprep.subr.mxu0 0.0
      %631 = vmatpush1.xpose.msra.mxu0 0.0
      %632 = vmatprep.subr.mxu0 0.0
      %633 = vmatpush1.xpose.msra.mxu0 0.0
      %634 = vmatprep.subr.mxu0 0.0
      %635 = vmatpush1.xpose.msra.mxu0 0.0
      %636 = vmatprep.subr.mxu0 0.0
      %637 = vmatpush1.xpose.msra.mxu0 0.0
      %638 = vmatprep.subr.mxu0 0.0
      %639 = vmatpush1.xpose.msra.mxu0 0.0
      %640 = vmatprep.subr.mxu0 0.0
      %641 = vmatpush1.xpose.msra.mxu0 0.0
      %642 = vmatprep.subr.mxu0 0.0
      %643 = vmatpush1.xpose.msra.mxu0 0.0
      %644 = vmatprep.subr.mxu0 0.0
      %645 = vmatpush1.xpose.msra.mxu0 0.0
      %646 = vmatprep.subr.mxu0 0.0
      %647 = vmatpush1.xpose.msra.mxu0 0.0
      %648 = vmatprep.subr.mxu0 0.0
      %649 = vmatpush1.xpose.msra.mxu0 0.0
      %650 = vmatprep.subr.mxu0 0.0
      %651 = vmatpush1.xpose.msra.mxu0 0.0
      %652 = vmatprep.subr.mxu0 0.0
      %653 = vmatpush1.xpose.msra.mxu0 0.0
      %654 = vmatprep.subr.mxu0 0.0
      %655 = vmatpush1.xpose.msra.mxu0 0.0
      %656 = vmatprep.subr.mxu0 0.0
      %657 = vmatpush1.xpose.msra.mxu0 0.0
      %658 = vmatprep.subr.mxu0 0.0
      %659 = vmatpush1.xpose.msra.mxu0 0.0
      %660 = vmatprep.subr.mxu0 0.0
      %661 = vmatpush1.xpose.msra.mxu0 %v628
      %662 = vmatprep.subr.mxu0 0.0
      %663 = vmatpush2.xpose.msra.mxu0 0.0
      %664 = vmatprep.subr.mxu0 0.0
      %665 = vmatpush2.xpose.msra.mxu0 0.0
      %666 = vmatprep.subr.mxu0 0.0
      %667 = vmatpush2.xpose.msra.mxu0 0.0
      %668 = vmatprep.subr.mxu0 0.0
      %669 = vmatpush2.xpose.msra.mxu0 0.0
      %670 = vmatprep.subr.mxu0 0.0
      %671 = vmatpush2.xpose.msra.mxu0 0.0
      %672 = vmatprep.subr.mxu0 0.0
      %673 = vmatpush2.xpose.msra.mxu0 0.0
      %674 = vmatprep.subr.mxu0 0.0
      %675 = vmatpush2.xpose.msra.mxu0 0.0
      %676 = vmatprep.subr.mxu0 0.0
      %677 = vmatpush2.xpose.msra.mxu0 0.0
      %678 = vmatprep.subr.mxu0 0.0
      %679 = vmatpush2.xpose.msra.mxu0 0.0
      %680 = vmatprep.subr.mxu0 0.0
      %681 = vmatpush2.xpose.msra.mxu0 0.0
      %682 = vmatprep.subr.mxu0 0.0
      %683 = vmatpush2.xpose.msra.mxu0 0.0
      %684 = vmatprep.subr.mxu0 0.0
      %685 = vmatpush2.xpose.msra.mxu0 0.0
      %686 = vmatprep.subr.mxu0 0.0
      %687 = vmatpush2.xpose.msra.mxu0 0.0
      %688 = vmatprep.subr.mxu0 0.0
      %689 = vmatpush2.xpose.msra.mxu0 0.0
      %690 = vmatprep.subr.mxu0 0.0
      %691 = vmatpush2.xpose.msra.mxu0 0.0
      %692 = vmatprep.subr.mxu0 0.0
      %693 = vmatpush2.xpose.msra.mxu0 0.0
      %694 = vmatprep.mubr.f32.mxu0 0.0
      %695 = vmatmul.mubr.f32.gmra.mxu0 %v626
      %v696 = vpop.f32.mrf.mxu0
      %v697 = vadd.f32 0.0, %v696
      %v698 = vpop.f32.mrf.mxu0
      %699 = vdwg.mxu0
      %v700 = vmul.f32 %v697, 0.35355338
      %v701 = vadd.f32 %v700, %v123
      %v702 = vsel %vm124, %v701, -inf
      %703 = vmax.xlane.f32.xlu0 %v702
      %v704 = vpop.xlane.xlu0 %703
      %v705 = vsub.f32 %v701, %v704
      %v706 = vmul.f32 %v705, 1.442695
      %v707 = vpow.pop %v706
      %v708 = vsel %vm124, %v707, 0.0
      %709 = vadd.xlane.f32.xlu0 %v708
      %v710 = vpop.xlane.xlu0 %709
      %711 = vrot.lane.b32.xlu0 %v117, 104
      %v712 = vpop.permute.xlu0 %711
      %v715 = vsel %vm124, %v707, 0
      %717 = vmatprep.subr.mxu0 0.0
      %718 = vmatpush1.msra.mxu0 0.0
      %719 = vmatprep.subr.mxu0 0.0
      %720 = vmatpush1.msra.mxu0 0.0
      %721 = vmatprep.subr.mxu0 0.0
      %722 = vmatpush1.msra.mxu0 0.0
      %723 = vmatprep.subr.mxu0 0.0
      %724 = vmatpush1.msra.mxu0 0.0
      %725 = vmatprep.subr.mxu0 0.0
      %726 = vmatpush1.msra.mxu0 0.0
      %727 = vmatprep.subr.mxu0 0.0
      %728 = vmatpush1.msra.mxu0 0.0
      %729 = vmatprep.subr.mxu0 0.0
      %730 = vmatpush1.msra.mxu0 0.0
      %731 = vmatprep.subr.mxu0 0.0
      %732 = vmatpush1.msra.mxu0 0.0
      %733 = vmatprep.subr.mxu0 0.0
      %734 = vmatpush1.msra.mxu0 0.0
      %735 = vmatprep.subr.mxu0 0.0
      %736 = vmatpush1.msra.mxu0 0.0
      %737 = vmatprep.subr.mxu0 0.0
      %738 = vmatpush1.msra.mxu0 0.0
      %739 = vmatprep.subr.mxu0 0.0
      %740 = vmatpush1.msra.mxu0 0.0
      %741 = vmatprep.subr.mxu0 0.0
      %742 = vmatpush1.msra.mxu0 0.0
      %743 = vmatprep.subr.mxu0 0.0
      %744 = vmatpush1.msra.mxu0 0.0
      %745 = vmatprep.subr.mxu0 0.0
      %746 = vmatpush1.msra.mxu0 0.0
      %747 = vmatprep.subr.mxu0 0.0
      %748 = vmatpush1.msra.mxu0 %v712
      %749 = vmatprep.subr.mxu0 0.0
      %750 = vmatpush2.msra.mxu0 0.0
      %751 = vmatprep.subr.mxu0 0.0
      %752 = vmatpush2.msra.mxu0 0.0
      %753 = vmatprep.subr.mxu0 0.0
      %754 = vmatpush2.msra.mxu0 0.0
      %755 = vmatprep.subr.mxu0 0.0
      %756 = vmatpush2.msra.mxu0 0.0
      %757 = vmatprep.subr.mxu0 0.0
      %758 = vmatpush2.msra.mxu0 0.0
      %759 = vmatprep.subr.mxu0 0.0
      %760 = vmatpush2.msra.mxu0 0.0
      %761 = vmatprep.subr.mxu0 0.0
      %762 = vmatpush2.msra.mxu0 0.0
      %763 = vmatprep.subr.mxu0 0.0
      %764 = vmatpush2.msra.mxu0 0.0
      %765 = vmatprep.subr.mxu0 0.0
      %766 = vmatpush2.msra.mxu0 0.0
      %767 = vmatprep.subr.mxu0 0.0
      %768 = vmatpush2.msra.mxu0 0.0
      %769 = vmatprep.subr.mxu0 0.0
      %770 = vmatpush2.msra.mxu0 0.0
      %771 = vmatprep.subr.mxu0 0.0
      %772 = vmatpush2.msra.mxu0 0.0
      %773 = vmatprep.subr.mxu0 0.0
      %774 = vmatpush2.msra.mxu0 0.0
      %775 = vmatprep.subr.mxu0 0.0
      %776 = vmatpush2.msra.mxu0 0.0
      %777 = vmatprep.subr.mxu0 0.0
      %778 = vmatpush2.msra.mxu0 0.0
      %779 = vmatprep.subr.mxu0 0.0
      %780 = vmatpush2.msra.mxu0 0.0
      %781 = vmatprep.mubr.f32.mxu0 0.0
      %782 = vmatmul.mubr.f32.gmra.mxu0 %v715
      %v783 = vpop.f32.mrf.mxu0
      %v784 = vadd.f32 0.0, %v783
      %v785 = vpop.f32.mrf.mxu0
      %786 = vdwg.mxu0
      %v787 = vrcp.pop %v710
      %v788 = vmul.f32 %v784, %v787
      %790 = vrot.lane.b32.xlu0 %v454, 8
      %v791 = vpop.permute.xlu0 %790
      %794 = vrot.lane.b32.xlu0 %v621, 16
      %v795 = vpop.permute.xlu0 %794
      %798 = vrot.lane.b32.xlu0 %v788, 24
      %v799 = vpop.permute.xlu0 %798
      %v801 = vsel %vm124, %v286, %v791
      %vm802 = vcmask 130048
      %v803 = vsel %vm802, %v801, %v795
      %vm804 = vcmask 195584
      %v805 = vsel %vm804, %v803, %v799
      %vm806 = vcmask 261120
      %v807 = vsel %vm806, %v805, 0.0
      %808 = vst [vmem:[%s114] sm:$0xff] %v807
      %p809 = scmp.lt.s32.totalorder %s12, 1
      %s810 = scalar_select %p809, %s12, 1
      %s811 = smul.addr %s810, 8
      %s812 = scalar_lea.vmem %s1, %s811
      // Predicated region
      $region25: #{transformer_decoder_layer.10} parent=23 // pred_check
        %p813 = pneg %p56
      $region26: #{transformer_decoder_layer.10} parent=23 // pred_check_branch
        %815 = sbr.rel (%p813) target = $region28
      $region27: #{transformer_decoder_layer.10} parent=23 // pred_region
        _
      $region28: #{transformer_decoder_layer.10} parent=23 // pred_fallthru
        _
    $region24: #{transformer_decoder_layer.10} parent=5 // pred_fallthru
      _
    %p816 = scmp.le.s32.totalorder 2, %s7
    // Predicated region
    $region29: #{transformer_decoder_layer.10} parent=5 // pred_check
      %p817 = pneg %p816
    $region30: #{transformer_decoder_layer.10} parent=5 // pred_check_branch
      %819 = sbr.rel (%p817) target = $region32
    $region31: #{transformer_decoder_layer.10} parent=5 // pred_region
      %s820 = ssub.s32 %s7, 2
      // Predicated region
      $region33: #{transformer_decoder_layer.10} parent=31 // pred_check
        %p821 = pneg %p62
      $region34: #{transformer_decoder_layer.10} parent=31 // pred_check_branch
        %823 = sbr.rel (%p821) target = $region36
      $region35: #{transformer_decoder_layer.10} parent=31 // pred_region
        %p824 = scmp.lt.s32.totalorder %s13, 1
        %s825 = scalar_select %p824, %s13, 1
        %s826 = smul.addr %s825, 8
        %s827 = scalar_lea.vmem %s1, %s826
      $region36: #{transformer_decoder_layer.10} parent=31 // pred_fallthru
        _
    $region32: #{transformer_decoder_layer.10} parent=5 // pred_fallthru
      _
  $region6: #{transformer_decoder_layer.10} parent=0 // loop_footer
    %s11 = sadd.s32 1, %s7
  $region7: #{transformer_decoder_layer.10} parent=0 // loop_footer_branch
    %6 = sbr.rel target = $region3
  $region8: #{transformer_decoder_layer.10} parent=0 // loop_exit
    _

// kernel: transformer_decoder_layer.11
$region0: #{transformer_decoder_layer.11}
  #allocation0 [shape = 'u32[]', space=smem, size = 0x4, offset = 0x4, fixed_abs, tag = 'smem constant byte address 0x4 - core index']
  #allocation1 [shape = 'u32[144,128]{1,0:T(1,128)}', space=vmem, size = 0x12000, scoped, tag = 'internal scratch']
  %s0 = inlined_call_operand.vmem [shape: f32[16,128], index: 0, kind: input, shape index: {}]
  %s1 = inlined_call_operand.vmem [shape: f32[128,128], index: 1, kind: input, shape index: {}]
  %s2 = inlined_call_operand.vmem [shape: f32[1,128], index: 2, kind: input, shape index: {}]
  %s3 = inlined_call_operand.vmem [shape: f32[16,128], index: 3, kind: input, shape index: {}]
  %s4 = inlined_call_operand.vmem [shape: f32[16,128], index: 4, kind: output, shape index: {}]
  %s5 = sld [smem:[#allocation0]]
  $region26: #{transformer_decoder_layer.11} parent=0
    _
  %s7 = ssub.s32 1, %s5
  %s8 = scalar_select 0, %s7, %s5
  // Predicated region
  $region2: #{transformer_decoder_layer.11} parent=0 // pred_check
    _
  $region3: #{transformer_decoder_layer.11} parent=0 // pred_check_branch
    %10 = sbr.rel (0) target = $region5
  $region4: #{transformer_decoder_layer.11} parent=0 // pred_region
    _
  $region5: #{transformer_decoder_layer.11} parent=0 // pred_fallthru
    _
  // Predicated region
  $region6: #{transformer_decoder_layer.11} parent=0 // pred_check
    _
  $region7: #{transformer_decoder_layer.11} parent=0 // pred_check_branch
    %12 = sbr.rel (0) target = $region9
  $region8: #{transformer_decoder_layer.11} parent=0 // pred_region
    _
  $region9: #{transformer_decoder_layer.11} parent=0 // pred_fallthru
    _
  // Predicated region
  $region10: #{transformer_decoder_layer.11} parent=0 // pred_check
    _
  $region11: #{transformer_decoder_layer.11} parent=0 // pred_check_branch
    %14 = sbr.rel (0) target = $region13
  $region12: #{transformer_decoder_layer.11} parent=0 // pred_region
    _
  $region13: #{transformer_decoder_layer.11} parent=0 // pred_fallthru
    _
  // Predicated region
  $region14: #{transformer_decoder_layer.11} parent=0 // pred_check
    _
  $region15: #{transformer_decoder_layer.11} parent=0 // pred_check_branch
    %16 = sbr.rel (0) target = $region17
  $region16: #{transformer_decoder_layer.11} parent=0 // pred_region
    _
  $region17: #{transformer_decoder_layer.11} parent=0 // pred_fallthru
    _
  %v17 = vld [vmem:[%s0] sm:$0xff]
  %v18 = vld [vmem:[%s0 + $0x8] sm:$0xff]
  %v19 = vld [vmem:[%s1] sm:$0xff]
  %v20 = vld [vmem:[%s1 + $0x8] sm:$0xff]
  %v21 = vld [vmem:[%s1 + $0x10] sm:$0xff]
  %v22 = vld [vmem:[%s1 + $0x18] sm:$0xff]
  %v23 = vld [vmem:[%s1 + $0x20] sm:$0xff]
  %v24 = vld [vmem:[%s1 + $0x28] sm:$0xff]
  %v25 = vld [vmem:[%s1 + $0x30] sm:$0xff]
  %v26 = vld [vmem:[%s1 + $0x38] sm:$0xff]
  %v27 = vld [vmem:[%s1 + $0x40] sm:$0xff]
  %v28 = vld [vmem:[%s1 + $0x48] sm:$0xff]
  %v29 = vld [vmem:[%s1 + $0x50] sm:$0xff]
  %v30 = vld [vmem:[%s1 + $0x58] sm:$0xff]
  %v31 = vld [vmem:[%s1 + $0x60] sm:$0xff]
  %v32 = vld [vmem:[%s1 + $0x68] sm:$0xff]
  %v33 = vld [vmem:[%s1 + $0x70] sm:$0xff]
  %v34 = vld [vmem:[%s1 + $0x78] sm:$0xff]
  %v35 = vld [vmem:[%s2] sm:$0x1]
  %v37 = vlaneseq
  %v38 = vshrl.u32 %v37, 7
  %v39 = vsub.s32 0, %v38
  %v40 = vrot.slane %v35, %v39
  %42 = vmatprep.subr.mxu0 0.0
  %43 = vmatpush1.msra.mxu0 %v34
  %44 = vmatprep.subr.mxu0 0.0
  %45 = vmatpush1.msra.mxu0 %v33
  %46 = vmatprep.subr.mxu0 0.0
  %47 = vmatpush1.msra.mxu0 %v32
  %48 = vmatprep.subr.mxu0 0.0
  %49 = vmatpush1.msra.mxu0 %v31
  %50 = vmatprep.subr.mxu0 0.0
  %51 = vmatpush1.msra.mxu0 %v30
  %52 = vmatprep.subr.mxu0 0.0
  %53 = vmatpush1.msra.mxu0 %v29
  %54 = vmatprep.subr.mxu0 0.0
  %55 = vmatpush1.msra.mxu0 %v28
  %56 = vmatprep.subr.mxu0 0.0
  %57 = vmatpush1.msra.mxu0 %v27
  %58 = vmatprep.subr.mxu0 0.0
  %59 = vmatpush1.msra.mxu0 %v26
  %60 = vmatprep.subr.mxu0 0.0
  %61 = vmatpush1.msra.mxu0 %v25
  %62 = vmatprep.subr.mxu0 0.0
  %63 = vmatpush1.msra.mxu0 %v24
  %64 = vmatprep.subr.mxu0 0.0
  %65 = vmatpush1.msra.mxu0 %v23
  %66 = vmatprep.subr.mxu0 0.0
  %67 = vmatpush1.msra.mxu0 %v22
  %68 = vmatprep.subr.mxu0 0.0
  %69 = vmatpush1.msra.mxu0 %v21
  %70 = vmatprep.subr.mxu0 0.0
  %71 = vmatpush1.msra.mxu0 %v20
  %72 = vmatprep.subr.mxu0 0.0
  %73 = vmatpush1.msra.mxu0 %v19
  %74 = vmatprep.subr.mxu0 0.0
  %75 = vmatpush2.msra.mxu0 0.0
  %76 = vmatprep.subr.mxu0 0.0
  %77 = vmatpush2.msra.mxu0 0.0
  %78 = vmatprep.subr.mxu0 0.0
  %79 = vmatpush2.msra.mxu0 0.0
  %80 = vmatprep.subr.mxu0 0.0
  %81 = vmatpush2.msra.mxu0 0.0
  %82 = vmatprep.subr.mxu0 0.0
  %83 = vmatpush2.msra.mxu0 0.0
  %84 = vmatprep.subr.mxu0 0.0
  %85 = vmatpush2.msra.mxu0 0.0
  %86 = vmatprep.subr.mxu0 0.0
  %87 = vmatpush2.msra.mxu0 0.0
  %88 = vmatprep.subr.mxu0 0.0
  %89 = vmatpush2.msra.mxu0 0.0
  %90 = vmatprep.subr.mxu0 0.0
  %91 = vmatpush2.msra.mxu0 0.0
  %92 = vmatprep.subr.mxu0 0.0
  %93 = vmatpush2.msra.mxu0 0.0
  %94 = vmatprep.subr.mxu0 0.0
  %95 = vmatpush2.msra.mxu0 0.0
  %96 = vmatprep.subr.mxu0 0.0
  %97 = vmatpush2.msra.mxu0 0.0
  %98 = vmatprep.subr.mxu0 0.0
  %99 = vmatpush2.msra.mxu0 0.0
  %100 = vmatprep.subr.mxu0 0.0
  %101 = vmatpush2.msra.mxu0 0.0
  %102 = vmatprep.subr.mxu0 0.0
  %103 = vmatpush2.msra.mxu0 0.0
  %104 = vmatprep.subr.mxu0 0.0
  %105 = vmatpush2.msra.mxu0 0.0
  %106 = vmatprep.mubr.f32.mxu0 0.0
  %107 = vmatmul.mubr.f32.gmra.mxu0 %v17
  %v108 = vpop.f32.mrf.mxu0
  %v109 = vadd.f32 %v40, %v108
  %v110 = vpop.f32.mrf.mxu0
  %111 = vmatprep.mubr.f32.mxu0 0.0
  %112 = vmatmul.mubr.f32.gmra.mxu0 %v18
  %v113 = vpop.f32.mrf.mxu0
  %v114 = vadd.f32 %v40, %v113
  %v115 = vpop.f32.mrf.mxu0
  %116 = vdwg.mxu0
  %v117 = vld [vmem:[%s3] sm:$0xff]
  %v118 = vld [vmem:[%s3 + $0x8] sm:$0xff]
  %v119 = vadd.f32 %v109, %v117
  %v120 = vadd.f32 %v114, %v118
  %121 = vst [vmem:[%s4] sm:$0xff] %v119
  %122 = vst [vmem:[%s4 + $0x8] sm:$0xff] %v120
  // Predicated region
  $region18: #{transformer_decoder_layer.11} parent=0 // pred_check
    _
  $region19: #{transformer_decoder_layer.11} parent=0 // pred_check_branch
    %124 = sbr.rel (0) target = $region21
  $region20: #{transformer_decoder_layer.11} parent=0 // pred_region
    _
  $region21: #{transformer_decoder_layer.11} parent=0 // pred_fallthru
    _
  // Predicated region
  $region22: #{transformer_decoder_layer.11} parent=0 // pred_check
    _
  $region23: #{transformer_decoder_layer.11} parent=0 // pred_check_branch
    %126 = sbr.rel (0) target = $region25
  $region24: #{transformer_decoder_layer.11} parent=0 // pred_region
    _
  $region25: #{transformer_decoder_layer.11} parent=0 // pred_fallthru
    _

// kernel: transformer_decoder_layer.12
$region0: #{transformer_decoder_layer.12}
  #allocation0 [shape = 'u32[]', space=smem, size = 0x4, offset = 0x4, fixed_abs, tag = 'smem constant byte address 0x4 - core index']
  #allocation1 [shape = 'u32[144,128]{1,0:T(1,128)}', space=vmem, size = 0x12000, scoped, tag = 'internal scratch']
  %s0 = inlined_call_operand.vmem [shape: f32[16,128], index: 0, kind: input, shape index: {}]
  %s1 = inlined_call_operand.vmem [shape: f32[1,128], index: 1, kind: input, shape index: {}]
  %s2 = inlined_call_operand.vmem [shape: f32[1,128], index: 2, kind: input, shape index: {}]
  %s3 = inlined_call_operand.vmem [shape: f32[128,128], index: 3, kind: input, shape index: {}]
  %s4 = inlined_call_operand.vmem [shape: f32[1,128], index: 4, kind: input, shape index: {}]
  %s5 = inlined_call_operand.vmem [shape: f32[16,128], index: 5, kind: output, shape index: {}]
  %s6 = sld [smem:[#allocation0]]
  $region30: #{transformer_decoder_layer.12} parent=0
    _
  %s8 = ssub.s32 1, %s6
  %s9 = scalar_select 0, %s8, %s6
  // Predicated region
  $region2: #{transformer_decoder_layer.12} parent=0 // pred_check
    _
  $region3: #{transformer_decoder_layer.12} parent=0 // pred_check_branch
    %11 = sbr.rel (0) target = $region5
  $region4: #{transformer_decoder_layer.12} parent=0 // pred_region
    _
  $region5: #{transformer_decoder_layer.12} parent=0 // pred_fallthru
    _
  // Predicated region
  $region6: #{transformer_decoder_layer.12} parent=0 // pred_check
    _
  $region7: #{transformer_decoder_layer.12} parent=0 // pred_check_branch
    %13 = sbr.rel (0) target = $region9
  $region8: #{transformer_decoder_layer.12} parent=0 // pred_region
    _
  $region9: #{transformer_decoder_layer.12} parent=0 // pred_fallthru
    _
  // Predicated region
  $region10: #{transformer_decoder_layer.12} parent=0 // pred_check
    _
  $region11: #{transformer_decoder_layer.12} parent=0 // pred_check_branch
    %15 = sbr.rel (0) target = $region13
  $region12: #{transformer_decoder_layer.12} parent=0 // pred_region
    _
  $region13: #{transformer_decoder_layer.12} parent=0 // pred_fallthru
    _
  // Predicated region
  $region14: #{transformer_decoder_layer.12} parent=0 // pred_check
    _
  $region15: #{transformer_decoder_layer.12} parent=0 // pred_check_branch
    %17 = sbr.rel (0) target = $region17
  $region16: #{transformer_decoder_layer.12} parent=0 // pred_region
    _
  $region17: #{transformer_decoder_layer.12} parent=0 // pred_fallthru
    _
  // Predicated region
  $region18: #{transformer_decoder_layer.12} parent=0 // pred_check
    _
  $region19: #{transformer_decoder_layer.12} parent=0 // pred_check_branch
    %19 = sbr.rel (0) target = $region21
  $region20: #{transformer_decoder_layer.12} parent=0 // pred_region
    _
  $region21: #{transformer_decoder_layer.12} parent=0 // pred_fallthru
    _
  %v20 = vld [vmem:[%s0] sm:$0xff]
  %v21 = vld [vmem:[%s0 + $0x8] sm:$0xff]
  %v22 = vlaneseq
  %v23 = vand.u32 %v22, 127
  %vm24 = vcmp.lt.s32.totalorder %v23, 32
  %v25 = vsel %vm24, %v20, 0.0
  %v26 = vsel %vm24, %v21, 0.0
  %27 = vadd.xlane.f32.xlu0 %v25
  %v28 = vpop.xlane.xlu0 %27
  %29 = vadd.xlane.f32.xlu0 %v26
  %v30 = vpop.xlane.xlu0 %29
  %v31 = vmul.f32 %v28, 0.03125
  %v32 = vmul.f32 %v30, 0.03125
  %v33 = vsub.f32 %v20, %v31
  %v34 = vsub.f32 %v21, %v32
  %v35 = vsel %vm24, %v33, 0.0
  %v36 = vsel %vm24, %v34, 0.0
  %v37 = vmul.f32 %v35, %v35
  %v38 = vmul.f32 %v36, %v36
  %39 = vadd.xlane.f32.xlu0 %v37
  %v40 = vpop.xlane.xlu0 %39
  %41 = vadd.xlane.f32.xlu0 %v38
  %v42 = vpop.xlane.xlu0 %41
  %v43 = vmul.f32 %v40, 0.03125
  %v44 = vmul.f32 %v42, 0.03125
  %v45 = vadd.f32 %v43, 1e-05
  %v46 = vadd.f32 %v44, 1e-05
  %v47 = vrsqrt.pop %v45
  %v48 = vrsqrt.pop %v46
  %v49 = vmul.f32 %v35, %v47
  %v50 = vmul.f32 %v36, %v48
  %v51 = vld [vmem:[%s1] sm:$0x1]
  %v53 = vlaneseq
  %v54 = vshrl.u32 %v53, 7
  %v55 = vsub.s32 0, %v54
  %v56 = vrot.slane %v51, %v55
  %v58 = vmul.f32 %v49, %v56
  %v59 = vmul.f32 %v50, %v56
  %v60 = vld [vmem:[%s2] sm:$0x1]
  %v62 = vlaneseq
  %v63 = vshrl.u32 %v62, 7
  %v64 = vsub.s32 0, %v63
  %v65 = vrot.slane %v60, %v64
  %v67 = vadd.f32 %v58, %v65
  %v68 = vadd.f32 %v59, %v65
  %v69 = vld [vmem:[%s3] sm:$0xff]
  %v70 = vld [vmem:[%s3 + $0x8] sm:$0xff]
  %v71 = vld [vmem:[%s3 + $0x10] sm:$0xff]
  %v72 = vld [vmem:[%s3 + $0x18] sm:$0xff]
  %v73 = vld [vmem:[%s3 + $0x20] sm:$0xff]
  %v74 = vld [vmem:[%s3 + $0x28] sm:$0xff]
  %v75 = vld [vmem:[%s3 + $0x30] sm:$0xff]
  %v76 = vld [vmem:[%s3 + $0x38] sm:$0xff]
  %v77 = vld [vmem:[%s3 + $0x40] sm:$0xff]
  %v78 = vld [vmem:[%s3 + $0x48] sm:$0xff]
  %v79 = vld [vmem:[%s3 + $0x50] sm:$0xff]
  %v80 = vld [vmem:[%s3 + $0x58] sm:$0xff]
  %v81 = vld [vmem:[%s3 + $0x60] sm:$0xff]
  %v82 = vld [vmem:[%s3 + $0x68] sm:$0xff]
  %v83 = vld [vmem:[%s3 + $0x70] sm:$0xff]
  %v84 = vld [vmem:[%s3 + $0x78] sm:$0xff]
  %v85 = vld [vmem:[%s4] sm:$0x1]
  %v87 = vlaneseq
  %v88 = vshrl.u32 %v87, 7
  %v89 = vsub.s32 0, %v88
  %v90 = vrot.slane %v85, %v89
  %92 = vmatprep.subr.mxu0 0.0
  %93 = vmatpush1.msra.mxu0 %v84
  %94 = vmatprep.subr.mxu0 0.0
  %95 = vmatpush1.msra.mxu0 %v83
  %96 = vmatprep.subr.mxu0 0.0
  %97 = vmatpush1.msra.mxu0 %v82
  %98 = vmatprep.subr.mxu0 0.0
  %99 = vmatpush1.msra.mxu0 %v81
  %100 = vmatprep.subr.mxu0 0.0
  %101 = vmatpush1.msra.mxu0 %v80
  %102 = vmatprep.subr.mxu0 0.0
  %103 = vmatpush1.msra.mxu0 %v79
  %104 = vmatprep.subr.mxu0 0.0
  %105 = vmatpush1.msra.mxu0 %v78
  %106 = vmatprep.subr.mxu0 0.0
  %107 = vmatpush1.msra.mxu0 %v77
  %108 = vmatprep.subr.mxu0 0.0
  %109 = vmatpush1.msra.mxu0 %v76
  %110 = vmatprep.subr.mxu0 0.0
  %111 = vmatpush1.msra.mxu0 %v75
  %112 = vmatprep.subr.mxu0 0.0
  %113 = vmatpush1.msra.mxu0 %v74
  %114 = vmatprep.subr.mxu0 0.0
  %115 = vmatpush1.msra.mxu0 %v73
  %116 = vmatprep.subr.mxu0 0.0
  %117 = vmatpush1.msra.mxu0 %v72
  %118 = vmatprep.subr.mxu0 0.0
  %119 = vmatpush1.msra.mxu0 %v71
  %120 = vmatprep.subr.mxu0 0.0
  %121 = vmatpush1.msra.mxu0 %v70
  %122 = vmatprep.subr.mxu0 0.0
  %123 = vmatpush1.msra.mxu0 %v69
  %124 = vmatprep.subr.mxu0 0.0
  %125 = vmatpush2.msra.mxu0 0.0
  %126 = vmatprep.subr.mxu0 0.0
  %127 = vmatpush2.msra.mxu0 0.0
  %128 = vmatprep.subr.mxu0 0.0
  %129 = vmatpush2.msra.mxu0 0.0
  %130 = vmatprep.subr.mxu0 0.0
  %131 = vmatpush2.msra.mxu0 0.0
  %132 = vmatprep.subr.mxu0 0.0
  %133 = vmatpush2.msra.mxu0 0.0
  %134 = vmatprep.subr.mxu0 0.0
  %135 = vmatpush2.msra.mxu0 0.0
  %136 = vmatprep.subr.mxu0 0.0
  %137 = vmatpush2.msra.mxu0 0.0
  %138 = vmatprep.subr.mxu0 0.0
  %139 = vmatpush2.msra.mxu0 0.0
  %140 = vmatprep.subr.mxu0 0.0
  %141 = vmatpush2.msra.mxu0 0.0
  %142 = vmatprep.subr.mxu0 0.0
  %143 = vmatpush2.msra.mxu0 0.0
  %144 = vmatprep.subr.mxu0 0.0
  %145 = vmatpush2.msra.mxu0 0.0
  %146 = vmatprep.subr.mxu0 0.0
  %147 = vmatpush2.msra.mxu0 0.0
  %148 = vmatprep.subr.mxu0 0.0
  %149 = vmatpush2.msra.mxu0 0.0
  %150 = vmatprep.subr.mxu0 0.0
  %151 = vmatpush2.msra.mxu0 0.0
  %152 = vmatprep.subr.mxu0 0.0
  %153 = vmatpush2.msra.mxu0 0.0
  %154 = vmatprep.subr.mxu0 0.0
  %155 = vmatpush2.msra.mxu0 0.0
  %156 = vmatprep.mubr.f32.mxu0 0.0
  %157 = vmatmul.mubr.f32.gmra.mxu0 %v67
  %v158 = vpop.f32.mrf.mxu0
  %v159 = vadd.f32 %v90, %v158
  %v160 = vpop.f32.mrf.mxu0
  %161 = vmatprep.mubr.f32.mxu0 0.0
  %162 = vmatmul.mubr.f32.gmra.mxu0 %v68
  %v163 = vpop.f32.mrf.mxu0
  %v164 = vadd.f32 %v90, %v163
  %v165 = vpop.f32.mrf.mxu0
  %166 = vdwg.mxu0
  %167 = vst [vmem:[%s5] sm:$0xff] %v159
  %168 = vst [vmem:[%s5 + $0x8] sm:$0xff] %v164
  // Predicated region
  $region22: #{transformer_decoder_layer.12} parent=0 // pred_check
    _
  $region23: #{transformer_decoder_layer.12} parent=0 // pred_check_branch
    %170 = sbr.rel (0) target = $region25
  $region24: #{transformer_decoder_layer.12} parent=0 // pred_region
    _
  $region25: #{transformer_decoder_layer.12} parent=0 // pred_fallthru
    _
  // Predicated region
  $region26: #{transformer_decoder_layer.12} parent=0 // pred_check
    _
  $region27: #{transformer_decoder_layer.12} parent=0 // pred_check_branch
    %172 = sbr.rel (0) target = $region29
  $region28: #{transformer_decoder_layer.12} parent=0 // pred_region
    _
  $region29: #{transformer_decoder_layer.12} parent=0 // pred_fallthru
    _

// kernel: transformer_decoder_layer.13
$region0: #{transformer_decoder_layer.13}
  #allocation0 [shape = 'u32[]', space=smem, size = 0x4, offset = 0x4, fixed_abs, tag = 'smem constant byte address 0x4 - core index']
  #allocation1 [shape = 'u32[144,128]{1,0:T(1,128)}', space=vmem, size = 0x12000, scoped, tag = 'internal scratch']
  %s0 = inlined_call_operand.vmem [shape: f32[16,128], index: 0, kind: input, shape index: {}]
  %s1 = inlined_call_operand.vmem [shape: f32[128,256], index: 1, kind: input, shape index: {}]
  %s2 = inlined_call_operand.vmem [shape: f32[1,256], index: 2, kind: input, shape index: {}]
  %s3 = inlined_call_operand.vmem [shape: f32[16,256], index: 3, kind: output, shape index: {}]
  %s4 = sld [smem:[#allocation0]]
  $region22: #{transformer_decoder_layer.13} parent=0
    _
  %s6 = ssub.s32 1, %s4
  %s7 = scalar_select 0, %s6, %s4
  // Predicated region
  $region2: #{transformer_decoder_layer.13} parent=0 // pred_check
    _
  $region3: #{transformer_decoder_layer.13} parent=0 // pred_check_branch
    %9 = sbr.rel (0) target = $region5
  $region4: #{transformer_decoder_layer.13} parent=0 // pred_region
    _
  $region5: #{transformer_decoder_layer.13} parent=0 // pred_fallthru
    _
  // Predicated region
  $region6: #{transformer_decoder_layer.13} parent=0 // pred_check
    _
  $region7: #{transformer_decoder_layer.13} parent=0 // pred_check_branch
    %11 = sbr.rel (0) target = $region9
  $region8: #{transformer_decoder_layer.13} parent=0 // pred_region
    _
  $region9: #{transformer_decoder_layer.13} parent=0 // pred_fallthru
    _
  // Predicated region
  $region10: #{transformer_decoder_layer.13} parent=0 // pred_check
    _
  $region11: #{transformer_decoder_layer.13} parent=0 // pred_check_branch
    %13 = sbr.rel (0) target = $region13
  $region12: #{transformer_decoder_layer.13} parent=0 // pred_region
    _
  $region13: #{transformer_decoder_layer.13} parent=0 // pred_fallthru
    _
  %v14 = vld [vmem:[%s0] sm:$0xff]
  %v15 = vld [vmem:[%s0 + $0x8] sm:$0xff]
  %v16 = vld [vmem:[%s1] sm:$0xff]
  %v17 = vld [vmem:[%s1 + $0x8] sm:$0xff]
  %v18 = vld [vmem:[%s1 + $0x10] sm:$0xff]
  %v19 = vld [vmem:[%s1 + $0x18] sm:$0xff]
  %v20 = vld [vmem:[%s1 + $0x20] sm:$0xff]
  %v21 = vld [vmem:[%s1 + $0x28] sm:$0xff]
  %v22 = vld [vmem:[%s1 + $0x30] sm:$0xff]
  %v23 = vld [vmem:[%s1 + $0x38] sm:$0xff]
  %v24 = vld [vmem:[%s1 + $0x40] sm:$0xff]
  %v25 = vld [vmem:[%s1 + $0x48] sm:$0xff]
  %v26 = vld [vmem:[%s1 + $0x50] sm:$0xff]
  %v27 = vld [vmem:[%s1 + $0x58] sm:$0xff]
  %v28 = vld [vmem:[%s1 + $0x60] sm:$0xff]
  %v29 = vld [vmem:[%s1 + $0x68] sm:$0xff]
  %v30 = vld [vmem:[%s1 + $0x70] sm:$0xff]
  %v31 = vld [vmem:[%s1 + $0x78] sm:$0xff]
  %v32 = vld [vmem:[%s1 + $0x80] sm:$0xff]
  %v33 = vld [vmem:[%s1 + $0x88] sm:$0xff]
  %v34 = vld [vmem:[%s1 + $0x90] sm:$0xff]
  %v35 = vld [vmem:[%s1 + $0x98] sm:$0xff]
  %v36 = vld [vmem:[%s1 + $0xa0] sm:$0xff]
  %v37 = vld [vmem:[%s1 + $0xa8] sm:$0xff]
  %v38 = vld [vmem:[%s1 + $0xb0] sm:$0xff]
  %v39 = vld [vmem:[%s1 + $0xb8] sm:$0xff]
  %v40 = vld [vmem:[%s1 + $0xc0] sm:$0xff]
  %v41 = vld [vmem:[%s1 + $0xc8] sm:$0xff]
  %v42 = vld [vmem:[%s1 + $0xd0] sm:$0xff]
  %v43 = vld [vmem:[%s1 + $0xd8] sm:$0xff]
  %v44 = vld [vmem:[%s1 + $0xe0] sm:$0xff]
  %v45 = vld [vmem:[%s1 + $0xe8] sm:$0xff]
  %v46 = vld [vmem:[%s1 + $0xf0] sm:$0xff]
  %v47 = vld [vmem:[%s1 + $0xf8] sm:$0xff]
  %v48 = vld [vmem:[%s2] sm:$0x3]
  %v50 = vlaneseq
  %v51 = vshrl.u32 %v50, 7
  %v52 = vsub.s32 0, %v51
  %v53 = vrot.slane %v48, %v52
  %v54 = vlaneseq
  %v55 = vshrl.u32 %v54, 7
  %v56 = vsub.s32 1, %v55
  %v57 = vrot.slane %v48, %v56
  %60 = vmatprep.subr.mxu0 %v47
  %61 = vmatpush1.msra.mxu0 %v46
  %62 = vmatprep.subr.mxu0 %v45
  %63 = vmatpush1.msra.mxu0 %v44
  %64 = vmatprep.subr.mxu0 %v43
  %65 = vmatpush1.msra.mxu0 %v42
  %66 = vmatprep.subr.mxu0 %v41
  %67 = vmatpush1.msra.mxu0 %v40
  %68 = vmatprep.subr.mxu0 %v39
  %69 = vmatpush1.msra.mxu0 %v38
  %70 = vmatprep.subr.mxu0 %v37
  %71 = vmatpush1.msra.mxu0 %v36
  %72 = vmatprep.subr.mxu0 %v35
  %73 = vmatpush1.msra.mxu0 %v34
  %74 = vmatprep.subr.mxu0 %v33
  %75 = vmatpush1.msra.mxu0 %v32
  %76 = vmatprep.subr.mxu0 %v31
  %77 = vmatpush1.msra.mxu0 %v30
  %78 = vmatprep.subr.mxu0 %v29
  %79 = vmatpush1.msra.mxu0 %v28
  %80 = vmatprep.subr.mxu0 %v27
  %81 = vmatpush1.msra.mxu0 %v26
  %82 = vmatprep.subr.mxu0 %v25
  %83 = vmatpush1.msra.mxu0 %v24
  %84 = vmatprep.subr.mxu0 %v23
  %85 = vmatpush1.msra.mxu0 %v22
  %86 = vmatprep.subr.mxu0 %v21
  %87 = vmatpush1.msra.mxu0 %v20
  %88 = vmatprep.subr.mxu0 %v19
  %89 = vmatpush1.msra.mxu0 %v18
  %90 = vmatprep.subr.mxu0 %v17
  %91 = vmatpush1.msra.mxu0 %v16
  %92 = vmatprep.subr.mxu0 0.0
  %93 = vmatpush2.msra.mxu0 0.0
  %94 = vmatprep.subr.mxu0 0.0
  %95 = vmatpush2.msra.mxu0 0.0
  %96 = vmatprep.subr.mxu0 0.0
  %97 = vmatpush2.msra.mxu0 0.0
  %98 = vmatprep.subr.mxu0 0.0
  %99 = vmatpush2.msra.mxu0 0.0
  %100 = vmatprep.subr.mxu0 0.0
  %101 = vmatpush2.msra.mxu0 0.0
  %102 = vmatprep.subr.mxu0 0.0
  %103 = vmatpush2.msra.mxu0 0.0
  %104 = vmatprep.subr.mxu0 0.0
  %105 = vmatpush2.msra.mxu0 0.0
  %106 = vmatprep.subr.mxu0 0.0
  %107 = vmatpush2.msra.mxu0 0.0
  %108 = vmatprep.subr.mxu0 0.0
  %109 = vmatpush2.msra.mxu0 0.0
  %110 = vmatprep.subr.mxu0 0.0
  %111 = vmatpush2.msra.mxu0 0.0
  %112 = vmatprep.subr.mxu0 0.0
  %113 = vmatpush2.msra.mxu0 0.0
  %114 = vmatprep.subr.mxu0 0.0
  %115 = vmatpush2.msra.mxu0 0.0
  %116 = vmatprep.subr.mxu0 0.0
  %117 = vmatpush2.msra.mxu0 0.0
  %118 = vmatprep.subr.mxu0 0.0
  %119 = vmatpush2.msra.mxu0 0.0
  %120 = vmatprep.subr.mxu0 0.0
  %121 = vmatpush2.msra.mxu0 0.0
  %122 = vmatprep.subr.mxu0 0.0
  %123 = vmatpush2.msra.mxu0 0.0
  %124 = vmatprep.mubr.f32.mxu0 0.0
  %125 = vmatmul.mubr.f32.gmra.mxu0 %v14
  %v126 = vpop.f32.mrf.mxu0
  %v127 = vadd.f32 %v53, %v126
  %v128 = vpop.f32.mrf.mxu0
  %v129 = vadd.f32 %v57, %v128
  %130 = vmatprep.mubr.f32.mxu0 0.0
  %131 = vmatmul.mubr.f32.gmra.mxu0 %v15
  %v132 = vpop.f32.mrf.mxu0
  %v133 = vadd.f32 %v53, %v132
  %v134 = vpop.f32.mrf.mxu0
  %v135 = vadd.f32 %v57, %v134
  %136 = vdwg.mxu0
  %137 = vst [vmem:[%s3] sm:$0xff] %v127
  %138 = vst [vmem:[%s3 + $0x8] sm:$0xff] %v129
  %139 = vst [vmem:[%s3 + $0x10] sm:$0xff] %v133
  %140 = vst [vmem:[%s3 + $0x18] sm:$0xff] %v135
  // Predicated region
  $region14: #{transformer_decoder_layer.13} parent=0 // pred_check
    _
  $region15: #{transformer_decoder_layer.13} parent=0 // pred_check_branch
    %142 = sbr.rel (0) target = $region17
  $region16: #{transformer_decoder_layer.13} parent=0 // pred_region
    _
  $region17: #{transformer_decoder_layer.13} parent=0 // pred_fallthru
    _
  // Predicated region
  $region18: #{transformer_decoder_layer.13} parent=0 // pred_check
    _
  $region19: #{transformer_decoder_layer.13} parent=0 // pred_check_branch
    %144 = sbr.rel (0) target = $region21
  $region20: #{transformer_decoder_layer.13} parent=0 // pred_region
    _
  $region21: #{transformer_decoder_layer.13} parent=0 // pred_fallthru
    _

// kernel: transformer_decoder_layer.16
$region0: #{transformer_decoder_layer.16}
  #allocation0 [shape = 'u32[]', space=smem, size = 0x4, offset = 0x4, fixed_abs, tag = 'smem constant byte address 0x4 - core index']
  #allocation1 [shape = 'u32[144,128]{1,0:T(1,128)}', space=vmem, size = 0x12000, scoped, tag = 'internal scratch']
  %s0 = inlined_call_operand.vmem [shape: f32[16,128], index: 0, kind: input, shape index: {}]
  %s1 = inlined_call_operand.vmem [shape: f32[1,128], index: 1, kind: input, shape index: {}]
  %s2 = inlined_call_operand.vmem [shape: f32[1,128], index: 2, kind: input, shape index: {}]
  %s3 = inlined_call_operand.vmem [shape: f32[128,128], index: 3, kind: input, shape index: {}]
  %s4 = inlined_call_operand.vmem [shape: f32[1,128], index: 4, kind: input, shape index: {}]
  %s5 = inlined_call_operand.vmem [shape: f32[16,128], index: 5, kind: output, shape index: {}]
  %s6 = sld [smem:[#allocation0]]
  $region30: #{transformer_decoder_layer.16} parent=0
    _
  %s8 = ssub.s32 1, %s6
  %s9 = scalar_select 0, %s8, %s6
  // Predicated region
  $region2: #{transformer_decoder_layer.16} parent=0 // pred_check
    _
  $region3: #{transformer_decoder_layer.16} parent=0 // pred_check_branch
    %11 = sbr.rel (0) target = $region5
  $region4: #{transformer_decoder_layer.16} parent=0 // pred_region
    _
  $region5: #{transformer_decoder_layer.16} parent=0 // pred_fallthru
    _
  // Predicated region
  $region6: #{transformer_decoder_layer.16} parent=0 // pred_check
    _
  $region7: #{transformer_decoder_layer.16} parent=0 // pred_check_branch
    %13 = sbr.rel (0) target = $region9
  $region8: #{transformer_decoder_layer.16} parent=0 // pred_region
    _
  $region9: #{transformer_decoder_layer.16} parent=0 // pred_fallthru
    _
  // Predicated region
  $region10: #{transformer_decoder_layer.16} parent=0 // pred_check
    _
  $region11: #{transformer_decoder_layer.16} parent=0 // pred_check_branch
    %15 = sbr.rel (0) target = $region13
  $region12: #{transformer_decoder_layer.16} parent=0 // pred_region
    _
  $region13: #{transformer_decoder_layer.16} parent=0 // pred_fallthru
    _
  // Predicated region
  $region14: #{transformer_decoder_layer.16} parent=0 // pred_check
    _
  $region15: #{transformer_decoder_layer.16} parent=0 // pred_check_branch
    %17 = sbr.rel (0) target = $region17
  $region16: #{transformer_decoder_layer.16} parent=0 // pred_region
    _
  $region17: #{transformer_decoder_layer.16} parent=0 // pred_fallthru
    _
  // Predicated region
  $region18: #{transformer_decoder_layer.16} parent=0 // pred_check
    _
  $region19: #{transformer_decoder_layer.16} parent=0 // pred_check_branch
    %19 = sbr.rel (0) target = $region21
  $region20: #{transformer_decoder_layer.16} parent=0 // pred_region
    _
  $region21: #{transformer_decoder_layer.16} parent=0 // pred_fallthru
    _
  %v20 = vld [vmem:[%s0] sm:$0xff]
  %v21 = vld [vmem:[%s0 + $0x8] sm:$0xff]
  %v22 = vlaneseq
  %v23 = vand.u32 %v22, 127
  %vm24 = vcmp.lt.s32.totalorder %v23, 32
  %v25 = vsel %vm24, %v20, 0.0
  %v26 = vsel %vm24, %v21, 0.0
  %27 = vadd.xlane.f32.xlu0 %v25
  %v28 = vpop.xlane.xlu0 %27
  %29 = vadd.xlane.f32.xlu0 %v26
  %v30 = vpop.xlane.xlu0 %29
  %v31 = vmul.f32 %v28, 0.03125
  %v32 = vmul.f32 %v30, 0.03125
  %v33 = vsub.f32 %v20, %v31
  %v34 = vsub.f32 %v21, %v32
  %v35 = vsel %vm24, %v33, 0.0
  %v36 = vsel %vm24, %v34, 0.0
  %v37 = vmul.f32 %v35, %v35
  %v38 = vmul.f32 %v36, %v36
  %39 = vadd.xlane.f32.xlu0 %v37
  %v40 = vpop.xlane.xlu0 %39
  %41 = vadd.xlane.f32.xlu0 %v38
  %v42 = vpop.xlane.xlu0 %41
  %v43 = vmul.f32 %v40, 0.03125
  %v44 = vmul.f32 %v42, 0.03125
  %v45 = vadd.f32 %v43, 1e-05
  %v46 = vadd.f32 %v44, 1e-05
  %v47 = vrsqrt.pop %v45
  %v48 = vrsqrt.pop %v46
  %v49 = vmul.f32 %v35, %v47
  %v50 = vmul.f32 %v36, %v48
  %v51 = vld [vmem:[%s1] sm:$0x1]
  %v53 = vlaneseq
  %v54 = vshrl.u32 %v53, 7
  %v55 = vsub.s32 0, %v54
  %v56 = vrot.slane %v51, %v55
  %v58 = vmul.f32 %v49, %v56
  %v59 = vmul.f32 %v50, %v56
  %v60 = vld [vmem:[%s2] sm:$0x1]
  %v62 = vlaneseq
  %v63 = vshrl.u32 %v62, 7
  %v64 = vsub.s32 0, %v63
  %v65 = vrot.slane %v60, %v64
  %v67 = vadd.f32 %v58, %v65
  %v68 = vadd.f32 %v59, %v65
  %v69 = vld [vmem:[%s3] sm:$0xff]
  %v70 = vld [vmem:[%s3 + $0x8] sm:$0xff]
  %v71 = vld [vmem:[%s3 + $0x10] sm:$0xff]
  %v72 = vld [vmem:[%s3 + $0x18] sm:$0xff]
  %v73 = vld [vmem:[%s3 + $0x20] sm:$0xff]
  %v74 = vld [vmem:[%s3 + $0x28] sm:$0xff]
  %v75 = vld [vmem:[%s3 + $0x30] sm:$0xff]
  %v76 = vld [vmem:[%s3 + $0x38] sm:$0xff]
  %v77 = vld [vmem:[%s3 + $0x40] sm:$0xff]
  %v78 = vld [vmem:[%s3 + $0x48] sm:$0xff]
  %v79 = vld [vmem:[%s3 + $0x50] sm:$0xff]
  %v80 = vld [vmem:[%s3 + $0x58] sm:$0xff]
  %v81 = vld [vmem:[%s3 + $0x60] sm:$0xff]
  %v82 = vld [vmem:[%s3 + $0x68] sm:$0xff]
  %v83 = vld [vmem:[%s3 + $0x70] sm:$0xff]
  %v84 = vld [vmem:[%s3 + $0x78] sm:$0xff]
  %v85 = vld [vmem:[%s4] sm:$0x1]
  %v87 = vlaneseq
  %v88 = vshrl.u32 %v87, 7
  %v89 = vsub.s32 0, %v88
  %v90 = vrot.slane %v85, %v89
  %92 = vmatprep.subr.mxu0 0.0
  %93 = vmatpush1.msra.mxu0 %v84
  %94 = vmatprep.subr.mxu0 0.0
  %95 = vmatpush1.msra.mxu0 %v83
  %96 = vmatprep.subr.mxu0 0.0
  %97 = vmatpush1.msra.mxu0 %v82
  %98 = vmatprep.subr.mxu0 0.0
  %99 = vmatpush1.msra.mxu0 %v81
  %100 = vmatprep.subr.mxu0 0.0
  %101 = vmatpush1.msra.mxu0 %v80
  %102 = vmatprep.subr.mxu0 0.0
  %103 = vmatpush1.msra.mxu0 %v79
  %104 = vmatprep.subr.mxu0 0.0
  %105 = vmatpush1.msra.mxu0 %v78
  %106 = vmatprep.subr.mxu0 0.0
  %107 = vmatpush1.msra.mxu0 %v77
  %108 = vmatprep.subr.mxu0 0.0
  %109 = vmatpush1.msra.mxu0 %v76
  %110 = vmatprep.subr.mxu0 0.0
  %111 = vmatpush1.msra.mxu0 %v75
  %112 = vmatprep.subr.mxu0 0.0
  %113 = vmatpush1.msra.mxu0 %v74
  %114 = vmatprep.subr.mxu0 0.0
  %115 = vmatpush1.msra.mxu0 %v73
  %116 = vmatprep.subr.mxu0 0.0
  %117 = vmatpush1.msra.mxu0 %v72
  %118 = vmatprep.subr.mxu0 0.0
  %119 = vmatpush1.msra.mxu0 %v71
  %120 = vmatprep.subr.mxu0 0.0
  %121 = vmatpush1.msra.mxu0 %v70
  %122 = vmatprep.subr.mxu0 0.0
  %123 = vmatpush1.msra.mxu0 %v69
  %124 = vmatprep.subr.mxu0 0.0
  %125 = vmatpush2.msra.mxu0 0.0
  %126 = vmatprep.subr.mxu0 0.0
  %127 = vmatpush2.msra.mxu0 0.0
  %128 = vmatprep.subr.mxu0 0.0
  %129 = vmatpush2.msra.mxu0 0.0
  %130 = vmatprep.subr.mxu0 0.0
  %131 = vmatpush2.msra.mxu0 0.0
  %132 = vmatprep.subr.mxu0 0.0
  %133 = vmatpush2.msra.mxu0 0.0
  %134 = vmatprep.subr.mxu0 0.0
  %135 = vmatpush2.msra.mxu0 0.0
  %136 = vmatprep.subr.mxu0 0.0
  %137 = vmatpush2.msra.mxu0 0.0
  %138 = vmatprep.subr.mxu0 0.0
  %139 = vmatpush2.msra.mxu0 0.0
  %140 = vmatprep.subr.mxu0 0.0
  %141 = vmatpush2.msra.mxu0 0.0
  %142 = vmatprep.subr.mxu0 0.0
  %143 = vmatpush2.msra.mxu0 0.0
  %144 = vmatprep.subr.mxu0 0.0
  %145 = vmatpush2.msra.mxu0 0.0
  %146 = vmatprep.subr.mxu0 0.0
  %147 = vmatpush2.msra.mxu0 0.0
  %148 = vmatprep.subr.mxu0 0.0
  %149 = vmatpush2.msra.mxu0 0.0
  %150 = vmatprep.subr.mxu0 0.0
  %151 = vmatpush2.msra.mxu0 0.0
  %152 = vmatprep.subr.mxu0 0.0
  %153 = vmatpush2.msra.mxu0 0.0
  %154 = vmatprep.subr.mxu0 0.0
  %155 = vmatpush2.msra.mxu0 0.0
  %156 = vmatprep.mubr.f32.mxu0 0.0
  %157 = vmatmul.mubr.f32.gmra.mxu0 %v67
  %v158 = vpop.f32.mrf.mxu0
  %v159 = vadd.f32 %v90, %v158
  %v160 = vpop.f32.mrf.mxu0
  %161 = vmatprep.mubr.f32.mxu0 0.0
  %162 = vmatmul.mubr.f32.gmra.mxu0 %v68
  %v163 = vpop.f32.mrf.mxu0
  %v164 = vadd.f32 %v90, %v163
  %v165 = vpop.f32.mrf.mxu0
  %166 = vdwg.mxu0
  %v167 = vmax.f32 %v159, 0.0
  %v168 = vmax.f32 %v164, 0.0
  %169 = vst [vmem:[%s5] sm:$0xff] %v167
  %170 = vst [vmem:[%s5 + $0x8] sm:$0xff] %v168
  // Predicated region
  $region22: #{transformer_decoder_layer.16} parent=0 // pred_check
    _
  $region23: #{transformer_decoder_layer.16} parent=0 // pred_check_branch
    %172 = sbr.rel (0) target = $region25
  $region24: #{transformer_decoder_layer.16} parent=0 // pred_region
    _
  $region25: #{transformer_decoder_layer.16} parent=0 // pred_fallthru
    _
  // Predicated region
  $region26: #{transformer_decoder_layer.16} parent=0 // pred_check
    _
  $region27: #{transformer_decoder_layer.16} parent=0 // pred_check_branch
    %174 = sbr.rel (0) target = $region29
  $region28: #{transformer_decoder_layer.16} parent=0 // pred_region
    _
  $region29: #{transformer_decoder_layer.16} parent=0 // pred_fallthru
    _

// kernel: transformer_decoder_layer.14
$region0: #{transformer_decoder_layer.14}
  #allocation0 [shape = 'u32[]', space=smem, size = 0x4, offset = 0x4, fixed_abs, tag = 'smem constant byte address 0x4 - core index']
  #allocation1 [shape = 'u32[144,128]{1,0:T(1,128)}', space=vmem, size = 0x12000, scoped, tag = 'internal scratch']
  %s0 = inlined_call_operand.vmem [shape: f32[2,8,128], index: 0, kind: input, shape index: {}]
  %s1 = inlined_call_operand.vmem [shape: f32[2,8,256], index: 1, kind: input, shape index: {}]
  %s2 = inlined_call_operand.vmem [shape: f32[2,8,128], index: 2, kind: output, shape index: {}]
  %s3 = sld [smem:[#allocation0]]
  $region41: #{transformer_decoder_layer.14} parent=0
    _
  %s5 = ssub.s32 1, %s3
  %s6 = scalar_select 0, %s5, %s3
  loop: start=0, step=1, limit=4
  $region2: #{transformer_decoder_layer.14} parent=0 // loop_pre_header
    _
  $region3: #{transformer_decoder_layer.14} parent=0 // loop_header
    %s8 = sphi 0, %s12
    %p9 = scmp.ge.s32.totalorder %s8, 4
    %s18 = sphi 0, %s20
    %s21 = sphi 0, %s18
    %s22 = sphi 0, %s21
    %s38 = sphi 0, %s22
    %s44 = sphi 0, %s46
    %s47 = sphi 0, %s44
    %s48 = sphi 0, %s47
    %s64 = sphi 0, %s48
    %s70 = sphi 0, %s72
    %s73 = sphi 0, %s70
    %s74 = sphi 0, %s73
    %s90 = sphi 0, %s74
  $region4: #{transformer_decoder_layer.14} parent=0 // loop_header_branch
    %11 = sbr.rel (%p9) target = $region8
  $region5: #{transformer_decoder_layer.14} parent=0 // loop_body
    %s13 = ssub.s32 %s8, 1
    %s14 = ssub.s32 %s8, 2
    %s15 = sadd.s32 %s8, 1
    %s16 = ssub.s32 %s8, %s15
    %p17 = scmp.eq.s32.totalorder %s16, 0
    %s19 = sadd.s32 %s18, 1
    %s20 = scalar_select %p17, %s18, %s19
    %p23 = pneg %p17
    %p24 = scmp.eq.s32.totalorder %s8, 1
    %p25 = por %p23, %p24
    %p26 = scmp.ne.s32.totalorder %s18, %s21
    %p27 = scmp.eq.s32.totalorder %s8, 0
    %p28 = por %p26, %p27
    %p29 = scmp.ne.s32.totalorder %s18, %s21
    %p30 = scmp.eq.s32.totalorder %s13, 1
    %p31 = por %p29, %p30
    %p32 = scmp.ne.s32.totalorder %s21, %s22
    %p33 = scmp.eq.s32.totalorder %s13, 0
    %p34 = por %p32, %p33
    %p35 = scmp.ne.s32.totalorder %s21, %s22
    %p36 = scmp.eq.s32.totalorder %s14, 1
    %p37 = por %p35, %p36
    %p39 = scmp.ne.s32.totalorder %s22, %s38
    %p40 = scmp.eq.s32.totalorder %s14, 0
    %p41 = por %p39, %p40
    %s42 = ssub.s32 %s8, %s15
    %p43 = scmp.eq.s32.totalorder %s42, 0
    %s45 = sadd.s32 %s44, 1
    %s46 = scalar_select %p43, %s44, %s45
    %p49 = pneg %p43
    %p50 = scmp.eq.s32.totalorder %s8, 1
    %p51 = por %p49, %p50
    %p52 = scmp.ne.s32.totalorder %s44, %s47
    %p53 = scmp.eq.s32.totalorder %s8, 0
    %p54 = por %p52, %p53
    %p55 = scmp.ne.s32.totalorder %s44, %s47
    %p56 = scmp.eq.s32.totalorder %s13, 1
    %p57 = por %p55, %p56
    %p58 = scmp.ne.s32.totalorder %s47, %s48
    %p59 = scmp.eq.s32.totalorder %s13, 0
    %p60 = por %p58, %p59
    %p61 = scmp.ne.s32.totalorder %s47, %s48
    %p62 = scmp.eq.s32.totalorder %s14, 1
    %p63 = por %p61, %p62
    %p65 = scmp.ne.s32.totalorder %s48, %s64
    %p66 = scmp.eq.s32.totalorder %s14, 0
    %p67 = por %p65, %p66
    %s68 = ssub.s32 %s8, %s15
    %p69 = scmp.eq.s32.totalorder %s68, 0
    %s71 = sadd.s32 %s70, 1
    %s72 = scalar_select %p69, %s70, %s71
    %p75 = pneg %p69
    %p76 = scmp.eq.s32.totalorder %s8, 1
    %p77 = por %p75, %p76
    %p78 = scmp.ne.s32.totalorder %s70, %s73
    %p79 = scmp.eq.s32.totalorder %s8, 0
    %p80 = por %p78, %p79
    %p81 = scmp.ne.s32.totalorder %s70, %s73
    %p82 = scmp.eq.s32.totalorder %s13, 1
    %p83 = por %p81, %p82
    %p84 = scmp.ne.s32.totalorder %s73, %s74
    %p85 = scmp.eq.s32.totalorder %s13, 0
    %p86 = por %p84, %p85
    %p87 = scmp.ne.s32.totalorder %s73, %s74
    %p88 = scmp.eq.s32.totalorder %s14, 1
    %p89 = por %p87, %p88
    %p91 = scmp.ne.s32.totalorder %s74, %s90
    %p92 = scmp.eq.s32.totalorder %s14, 0
    %p93 = por %p91, %p92
    %p94 = scmp.le.s32.totalorder 1, %s8
    %p95 = scmp.lt.s32.totalorder %s8, 3
    %p96 = pnand %p94, %p95
    %p97 = pneg %p96
    // Predicated region
    $region9: #{transformer_decoder_layer.14} parent=5 // pred_check
      _
    $region10: #{transformer_decoder_layer.14} parent=5 // pred_check_branch
      %99 = sbr.rel (%p96) target = $region12
    $region11: #{transformer_decoder_layer.14} parent=5 // pred_region
      %s100 = ssub.s32 %s8, 1
    $region12: #{transformer_decoder_layer.14} parent=5 // pred_fallthru
      _
    %p101 = scmp.lt.s32.totalorder %s8, 2
    // Predicated region
    $region13: #{transformer_decoder_layer.14} parent=5 // pred_check
      %p102 = pneg %p101
    $region14: #{transformer_decoder_layer.14} parent=5 // pred_check_branch
      %104 = sbr.rel (%p102) target = $region16
    $region15: #{transformer_decoder_layer.14} parent=5 // pred_region
      // Predicated region
      $region17: #{transformer_decoder_layer.14} parent=15 // pred_check
        %p105 = pneg %p28
      $region18: #{transformer_decoder_layer.14} parent=15 // pred_check_branch
        %107 = sbr.rel (%p105) target = $region20
      $region19: #{transformer_decoder_layer.14} parent=15 // pred_region
        %p108 = scmp.lt.s32.totalorder %s8, 1
        %s109 = scalar_select %p108, %s8, 1
        %s110 = smul.addr %s109, 8
        %s111 = scalar_lea.vmem %s0, %s110
      $region20: #{transformer_decoder_layer.14} parent=15 // pred_fallthru
        _
      // Predicated region
      $region21: #{transformer_decoder_layer.14} parent=15 // pred_check
        %p112 = pneg %p54
      $region22: #{transformer_decoder_layer.14} parent=15 // pred_check_branch
        %114 = sbr.rel (%p112) target = $region24
      $region23: #{transformer_decoder_layer.14} parent=15 // pred_region
        %p115 = scmp.lt.s32.totalorder %s8, 1
        %s116 = scalar_select %p115, %s8, 1
        %s117 = smul.addr %s116, 2
        %s118 = smul.addr %s117, 8
        %s119 = scalar_lea.vmem %s1, %s118
      $region24: #{transformer_decoder_layer.14} parent=15 // pred_fallthru
        _
    $region16: #{transformer_decoder_layer.14} parent=5 // pred_fallthru
      _
    %p120 = scmp.le.s32.totalorder 1, %s8
    %p121 = scmp.lt.s32.totalorder %s8, 3
    %p122 = pnand %p120, %p121
    %p123 = pneg %p122
    // Predicated region
    $region25: #{transformer_decoder_layer.14} parent=5 // pred_check
      _
    $region26: #{transformer_decoder_layer.14} parent=5 // pred_check_branch
      %125 = sbr.rel (%p122) target = $region28
    $region27: #{transformer_decoder_layer.14} parent=5 // pred_region
      %s126 = ssub.s32 %s8, 1
      %p127 = scmp.lt.s32.totalorder %s13, 1
      %s128 = scalar_select %p127, %s13, 1
      %s129 = smul.addr %s128, 8
      %s130 = scalar_lea.vmem %s0, %s129
      %p131 = pneg %p34
      %p132 = pneg %p31
      %p133 = scmp.lt.s32.totalorder %s13, 1
      %s134 = scalar_select %p133, %s13, 1
      %s135 = smul.addr %s134, 2
      %s136 = smul.addr %s135, 8
      %s137 = scalar_lea.vmem %s1, %s136
      %p138 = pneg %p60
      %p139 = pneg %p57
      %p140 = pneg %p86
      %p141 = pneg %p83
      %p142 = scmp.lt.s32.totalorder %s13, 1
      %s143 = scalar_select %p142, %s13, 1
      %s144 = smul.addr %s143, 8
      %s145 = scalar_lea.vmem %s2, %s144
      %p146 = scmp.lt.s32.totalorder %s13, 1
      %s147 = scalar_select %p146, %s13, 1
      %s148 = smul.addr %s147, 8
      %s149 = scalar_lea.vmem %s0, %s148
      %p150 = scmp.lt.s32.totalorder %s13, 1
      %s151 = scalar_select %p150, %s13, 1
      %s152 = smul.addr %s151, 2
      %s153 = smul.addr %s152, 8
      %s154 = scalar_lea.vmem %s1, %s153
      %p155 = scmp.lt.s32.totalorder %s13, 1
      %s156 = scalar_select %p155, %s13, 1
      %s157 = smul.addr %s156, 8
      %s158 = scalar_lea.vmem %s2, %s157
      %v159 = vld [vmem:[%s149] sm:$0xff]
      %v160 = vld [vmem:[%s154] sm:$0xff]
      %v161 = vld [vmem:[%s154 + $0x8] sm:$0xff]
      %vm162 = vcmask 64512
      %v164 = vsel %vm162, %v159, 0
      %v167 = vsel %vm162, %v160, 0
      %169 = vmatprep.subr.mxu0 0.0
      %170 = vmatpush1.xpose.msra.mxu0 0.0
      %171 = vmatprep.subr.mxu0 0.0
      %172 = vmatpush1.xpose.msra.mxu0 0.0
      %173 = vmatprep.subr.mxu0 0.0
      %174 = vmatpush1.xpose.msra.mxu0 0.0
      %175 = vmatprep.subr.mxu0 0.0
      %176 = vmatpush1.xpose.msra.mxu0 0.0
      %177 = vmatprep.subr.mxu0 0.0
      %178 = vmatpush1.xpose.msra.mxu0 0.0
      %179 = vmatprep.subr.mxu0 0.0
      %180 = vmatpush1.xpose.msra.mxu0 0.0
      %181 = vmatprep.subr.mxu0 0.0
      %182 = vmatpush1.xpose.msra.mxu0 0.0
      %183 = vmatprep.subr.mxu0 0.0
      %184 = vmatpush1.xpose.msra.mxu0 0.0
      %185 = vmatprep.subr.mxu0 0.0
      %186 = vmatpush1.xpose.msra.mxu0 0.0
      %187 = vmatprep.subr.mxu0 0.0
      %188 = vmatpush1.xpose.msra.mxu0 0.0
      %189 = vmatprep.subr.mxu0 0.0
      %190 = vmatpush1.xpose.msra.mxu0 0.0
      %191 = vmatprep.subr.mxu0 0.0
      %192 = vmatpush1.xpose.msra.mxu0 0.0
      %193 = vmatprep.subr.mxu0 0.0
      %194 = vmatpush1.xpose.msra.mxu0 0.0
      %195 = vmatprep.subr.mxu0 0.0
      %196 = vmatpush1.xpose.msra.mxu0 0.0
      %197 = vmatprep.subr.mxu0 0.0
      %198 = vmatpush1.xpose.msra.mxu0 0.0
      %199 = vmatprep.subr.mxu0 0.0
      %200 = vmatpush1.xpose.msra.mxu0 %v167
      %201 = vmatprep.subr.mxu0 0.0
      %202 = vmatpush2.xpose.msra.mxu0 0.0
      %203 = vmatprep.subr.mxu0 0.0
      %204 = vmatpush2.xpose.msra.mxu0 0.0
      %205 = vmatprep.subr.mxu0 0.0
      %206 = vmatpush2.xpose.msra.mxu0 0.0
      %207 = vmatprep.subr.mxu0 0.0
      %208 = vmatpush2.xpose.msra.mxu0 0.0
      %209 = vmatprep.subr.mxu0 0.0
      %210 = vmatpush2.xpose.msra.mxu0 0.0
      %211 = vmatprep.subr.mxu0 0.0
      %212 = vmatpush2.xpose.msra.mxu0 0.0
      %213 = vmatprep.subr.mxu0 0.0
      %214 = vmatpush2.xpose.msra.mxu0 0.0
      %215 = vmatprep.subr.mxu0 0.0
      %216 = vmatpush2.xpose.msra.mxu0 0.0
      %217 = vmatprep.subr.mxu0 0.0
      %218 = vmatpush2.xpose.msra.mxu0 0.0
      %219 = vmatprep.subr.mxu0 0.0
      %220 = vmatpush2.xpose.msra.mxu0 0.0
      %221 = vmatprep.subr.mxu0 0.0
      %222 = vmatpush2.xpose.msra.mxu0 0.0
      %223 = vmatprep.subr.mxu0 0.0
      %224 = vmatpush2.xpose.msra.mxu0 0.0
      %225 = vmatprep.subr.mxu0 0.0
      %226 = vmatpush2.xpose.msra.mxu0 0.0
      %227 = vmatprep.subr.mxu0 0.0
      %228 = vmatpush2.xpose.msra.mxu0 0.0
      %229 = vmatprep.subr.mxu0 0.0
      %230 = vmatpush2.xpose.msra.mxu0 0.0
      %231 = vmatprep.subr.mxu0 0.0
      %232 = vmatpush2.xpose.msra.mxu0 0.0
      %233 = vmatprep.mubr.f32.mxu0 0.0
      %234 = vmatmul.mubr.f32.gmra.mxu0 %v164
      %v235 = vpop.f32.mrf.mxu0
      %v236 = vadd.f32 0.0, %v235
      %v237 = vpop.f32.mrf.mxu0
      %238 = vdwg.mxu0
      %v239 = vmul.f32 %v236, 0.35355338
      %v240 = vadd.f32 %v239, 0.0
      %v241 = vsel %vm162, %v240, -inf
      %242 = vmax.xlane.f32.xlu0 %v241
      %v243 = vpop.xlane.xlu0 %242
      %v244 = vsub.f32 %v240, %v243
      %v245 = vmul.f32 %v244, 1.442695
      %v246 = vpow.pop %v245
      %v247 = vsel %vm162, %v246, 0.0
      %248 = vadd.xlane.f32.xlu0 %v247
      %v249 = vpop.xlane.xlu0 %248
      %v251 = vsel %vm162, %v246, 0
      %253 = vmatprep.subr.mxu0 0.0
      %254 = vmatpush1.msra.mxu0 0.0
      %255 = vmatprep.subr.mxu0 0.0
      %256 = vmatpush1.msra.mxu0 0.0
      %257 = vmatprep.subr.mxu0 0.0
      %258 = vmatpush1.msra.mxu0 0.0
      %259 = vmatprep.subr.mxu0 0.0
      %260 = vmatpush1.msra.mxu0 0.0
      %261 = vmatprep.subr.mxu0 0.0
      %262 = vmatpush1.msra.mxu0 0.0
      %263 = vmatprep.subr.mxu0 0.0
      %264 = vmatpush1.msra.mxu0 0.0
      %265 = vmatprep.subr.mxu0 0.0
      %266 = vmatpush1.msra.mxu0 0.0
      %267 = vmatprep.subr.mxu0 0.0
      %268 = vmatpush1.msra.mxu0 0.0
      %269 = vmatprep.subr.mxu0 0.0
      %270 = vmatpush1.msra.mxu0 0.0
      %271 = vmatprep.subr.mxu0 0.0
      %272 = vmatpush1.msra.mxu0 0.0
      %273 = vmatprep.subr.mxu0 0.0
      %274 = vmatpush1.msra.mxu0 0.0
      %275 = vmatprep.subr.mxu0 0.0
      %276 = vmatpush1.msra.mxu0 0.0
      %277 = vmatprep.subr.mxu0 0.0
      %278 = vmatpush1.msra.mxu0 0.0
      %279 = vmatprep.subr.mxu0 0.0
      %280 = vmatpush1.msra.mxu0 0.0
      %281 = vmatprep.subr.mxu0 0.0
      %282 = vmatpush1.msra.mxu0 0.0
      %283 = vmatprep.subr.mxu0 0.0
      %284 = vmatpush1.msra.mxu0 %v161
      %285 = vmatprep.subr.mxu0 0.0
      %286 = vmatpush2.msra.mxu0 0.0
      %287 = vmatprep.subr.mxu0 0.0
      %288 = vmatpush2.msra.mxu0 0.0
      %289 = vmatprep.subr.mxu0 0.0
      %290 = vmatpush2.msra.mxu0 0.0
      %291 = vmatprep.subr.mxu0 0.0
      %292 = vmatpush2.msra.mxu0 0.0
      %293 = vmatprep.subr.mxu0 0.0
      %294 = vmatpush2.msra.mxu0 0.0
      %295 = vmatprep.subr.mxu0 0.0
      %296 = vmatpush2.msra.mxu0 0.0
      %297 = vmatprep.subr.mxu0 0.0
      %298 = vmatpush2.msra.mxu0 0.0
      %299 = vmatprep.subr.mxu0 0.0
      %300 = vmatpush2.msra.mxu0 0.0
      %301 = vmatprep.subr.mxu0 0.0
      %302 = vmatpush2.msra.mxu0 0.0
      %303 = vmatprep.subr.mxu0 0.0
      %304 = vmatpush2.msra.mxu0 0.0
      %305 = vmatprep.subr.mxu0 0.0
      %306 = vmatpush2.msra.mxu0 0.0
      %307 = vmatprep.subr.mxu0 0.0
      %308 = vmatpush2.msra.mxu0 0.0
      %309 = vmatprep.subr.mxu0 0.0
      %310 = vmatpush2.msra.mxu0 0.0
      %311 = vmatprep.subr.mxu0 0.0
      %312 = vmatpush2.msra.mxu0 0.0
      %313 = vmatprep.subr.mxu0 0.0
      %314 = vmatpush2.msra.mxu0 0.0
      %315 = vmatprep.subr.mxu0 0.0
      %316 = vmatpush2.msra.mxu0 0.0
      %317 = vmatprep.mubr.f32.mxu0 0.0
      %318 = vmatmul.mubr.f32.gmra.mxu0 %v251
      %v319 = vpop.f32.mrf.mxu0
      %v320 = vadd.f32 0.0, %v319
      %v321 = vpop.f32.mrf.mxu0
      %322 = vdwg.mxu0
      %v323 = vrcp.pop %v249
      %v324 = vmul.f32 %v320, %v323
      %325 = vrot.lane.b32.xlu0 %v159, 120
      %v326 = vpop.permute.xlu0 %325
      %327 = vrot.lane.b32.xlu0 %v160, 120
      %v328 = vpop.permute.xlu0 %327
      %v329 = vsel %vm162, %v326, 0
      %v331 = vsel %vm162, %v328, 0
      %333 = vmatprep.subr.mxu0 0.0
      %334 = vmatpush1.xpose.msra.mxu0 0.0
      %335 = vmatprep.subr.mxu0 0.0
      %336 = vmatpush1.xpose.msra.mxu0 0.0
      %337 = vmatprep.subr.mxu0 0.0
      %338 = vmatpush1.xpose.msra.mxu0 0.0
      %339 = vmatprep.subr.mxu0 0.0
      %340 = vmatpush1.xpose.msra.mxu0 0.0
      %341 = vmatprep.subr.mxu0 0.0
      %342 = vmatpush1.xpose.msra.mxu0 0.0
      %343 = vmatprep.subr.mxu0 0.0
      %344 = vmatpush1.xpose.msra.mxu0 0.0
      %345 = vmatprep.subr.mxu0 0.0
      %346 = vmatpush1.xpose.msra.mxu0 0.0
      %347 = vmatprep.subr.mxu0 0.0
      %348 = vmatpush1.xpose.msra.mxu0 0.0
      %349 = vmatprep.subr.mxu0 0.0
      %350 = vmatpush1.xpose.msra.mxu0 0.0
      %351 = vmatprep.subr.mxu0 0.0
      %352 = vmatpush1.xpose.msra.mxu0 0.0
      %353 = vmatprep.subr.mxu0 0.0
      %354 = vmatpush1.xpose.msra.mxu0 0.0
      %355 = vmatprep.subr.mxu0 0.0
      %356 = vmatpush1.xpose.msra.mxu0 0.0
      %357 = vmatprep.subr.mxu0 0.0
      %358 = vmatpush1.xpose.msra.mxu0 0.0
      %359 = vmatprep.subr.mxu0 0.0
      %360 = vmatpush1.xpose.msra.mxu0 0.0
      %361 = vmatprep.subr.mxu0 0.0
      %362 = vmatpush1.xpose.msra.mxu0 0.0
      %363 = vmatprep.subr.mxu0 0.0
      %364 = vmatpush1.xpose.msra.mxu0 %v331
      %365 = vmatprep.subr.mxu0 0.0
      %366 = vmatpush2.xpose.msra.mxu0 0.0
      %367 = vmatprep.subr.mxu0 0.0
      %368 = vmatpush2.xpose.msra.mxu0 0.0
      %369 = vmatprep.subr.mxu0 0.0
      %370 = vmatpush2.xpose.msra.mxu0 0.0
      %371 = vmatprep.subr.mxu0 0.0
      %372 = vmatpush2.xpose.msra.mxu0 0.0
      %373 = vmatprep.subr.mxu0 0.0
      %374 = vmatpush2.xpose.msra.mxu0 0.0
      %375 = vmatprep.subr.mxu0 0.0
      %376 = vmatpush2.xpose.msra.mxu0 0.0
      %377 = vmatprep.subr.mxu0 0.0
      %378 = vmatpush2.xpose.msra.mxu0 0.0
      %379 = vmatprep.subr.mxu0 0.0
      %380 = vmatpush2.xpose.msra.mxu0 0.0
      %381 = vmatprep.subr.mxu0 0.0
      %382 = vmatpush2.xpose.msra.mxu0 0.0
      %383 = vmatprep.subr.mxu0 0.0
      %384 = vmatpush2.xpose.msra.mxu0 0.0
      %385 = vmatprep.subr.mxu0 0.0
      %386 = vmatpush2.xpose.msra.mxu0 0.0
      %387 = vmatprep.subr.mxu0 0.0
      %388 = vmatpush2.xpose.msra.mxu0 0.0
      %389 = vmatprep.subr.mxu0 0.0
      %390 = vmatpush2.xpose.msra.mxu0 0.0
      %391 = vmatprep.subr.mxu0 0.0
      %392 = vmatpush2.xpose.msra.mxu0 0.0
      %393 = vmatprep.subr.mxu0 0.0
      %394 = vmatpush2.xpose.msra.mxu0 0.0
      %395 = vmatprep.subr.mxu0 0.0
      %396 = vmatpush2.xpose.msra.mxu0 0.0
      %397 = vmatprep.mubr.f32.mxu0 0.0
      %398 = vmatmul.mubr.f32.gmra.mxu0 %v329
      %v399 = vpop.f32.mrf.mxu0
      %v400 = vadd.f32 0.0, %v399
      %v401 = vpop.f32.mrf.mxu0
      %402 = vdwg.mxu0
      %v403 = vmul.f32 %v400, 0.35355338
      %v404 = vadd.f32 %v403, 0.0
      %v405 = vsel %vm162, %v404, -inf
      %406 = vmax.xlane.f32.xlu0 %v405
      %v407 = vpop.xlane.xlu0 %406
      %v408 = vsub.f32 %v404, %v407
      %v409 = vmul.f32 %v408, 1.442695
      %v410 = vpow.pop %v409
      %v411 = vsel %vm162, %v410, 0.0
      %412 = vadd.xlane.f32.xlu0 %v411
      %v413 = vpop.xlane.xlu0 %412
      %415 = vrot.lane.b32.xlu0 %v161, 120
      %v416 = vpop.permute.xlu0 %415
      %v419 = vsel %vm162, %v410, 0
      %421 = vmatprep.subr.mxu0 0.0
      %422 = vmatpush1.msra.mxu0 0.0
      %423 = vmatprep.subr.mxu0 0.0
      %424 = vmatpush1.msra.mxu0 0.0
      %425 = vmatprep.subr.mxu0 0.0
      %426 = vmatpush1.msra.mxu0 0.0
      %427 = vmatprep.subr.mxu0 0.0
      %428 = vmatpush1.msra.mxu0 0.0
      %429 = vmatprep.subr.mxu0 0.0
      %430 = vmatpush1.msra.mxu0 0.0
      %431 = vmatprep.subr.mxu0 0.0
      %432 = vmatpush1.msra.mxu0 0.0
      %433 = vmatprep.subr.mxu0 0.0
      %434 = vmatpush1.msra.mxu0 0.0
      %435 = vmatprep.subr.mxu0 0.0
      %436 = vmatpush1.msra.mxu0 0.0
      %437 = vmatprep.subr.mxu0 0.0
      %438 = vmatpush1.msra.mxu0 0.0
      %439 = vmatprep.subr.mxu0 0.0
      %440 = vmatpush1.msra.mxu0 0.0
      %441 = vmatprep.subr.mxu0 0.0
      %442 = vmatpush1.msra.mxu0 0.0
      %443 = vmatprep.subr.mxu0 0.0
      %444 = vmatpush1.msra.mxu0 0.0
      %445 = vmatprep.subr.mxu0 0.0
      %446 = vmatpush1.msra.mxu0 0.0
      %447 = vmatprep.subr.mxu0 0.0
      %448 = vmatpush1.msra.mxu0 0.0
      %449 = vmatprep.subr.mxu0 0.0
      %450 = vmatpush1.msra.mxu0 0.0
      %451 = vmatprep.subr.mxu0 0.0
      %452 = vmatpush1.msra.mxu0 %v416
      %453 = vmatprep.subr.mxu0 0.0
      %454 = vmatpush2.msra.mxu0 0.0
      %455 = vmatprep.subr.mxu0 0.0
      %456 = vmatpush2.msra.mxu0 0.0
      %457 = vmatprep.subr.mxu0 0.0
      %458 = vmatpush2.msra.mxu0 0.0
      %459 = vmatprep.subr.mxu0 0.0
      %460 = vmatpush2.msra.mxu0 0.0
      %461 = vmatprep.subr.mxu0 0.0
      %462 = vmatpush2.msra.mxu0 0.0
      %463 = vmatprep.subr.mxu0 0.0
      %464 = vmatpush2.msra.mxu0 0.0
      %465 = vmatprep.subr.mxu0 0.0
      %466 = vmatpush2.msra.mxu0 0.0
      %467 = vmatprep.subr.mxu0 0.0
      %468 = vmatpush2.msra.mxu0 0.0
      %469 = vmatprep.subr.mxu0 0.0
      %470 = vmatpush2.msra.mxu0 0.0
      %471 = vmatprep.subr.mxu0 0.0
      %472 = vmatpush2.msra.mxu0 0.0
      %473 = vmatprep.subr.mxu0 0.0
      %474 = vmatpush2.msra.mxu0 0.0
      %475 = vmatprep.subr.mxu0 0.0
      %476 = vmatpush2.msra.mxu0 0.0
      %477 = vmatprep.subr.mxu0 0.0
      %478 = vmatpush2.msra.mxu0 0.0
      %479 = vmatprep.subr.mxu0 0.0
      %480 = vmatpush2.msra.mxu0 0.0
      %481 = vmatprep.subr.mxu0 0.0
      %482 = vmatpush2.msra.mxu0 0.0
      %483 = vmatprep.subr.mxu0 0.0
      %484 = vmatpush2.msra.mxu0 0.0
      %485 = vmatprep.mubr.f32.mxu0 0.0
      %486 = vmatmul.mubr.f32.gmra.mxu0 %v419
      %v487 = vpop.f32.mrf.mxu0
      %v488 = vadd.f32 0.0, %v487
      %v489 = vpop.f32.mrf.mxu0
      %490 = vdwg.mxu0
      %v491 = vrcp.pop %v413
      %v492 = vmul.f32 %v488, %v491
      %493 = vrot.lane.b32.xlu0 %v159, 112
      %v494 = vpop.permute.xlu0 %493
      %495 = vrot.lane.b32.xlu0 %v160, 112
      %v496 = vpop.permute.xlu0 %495
      %v497 = vsel %vm162, %v494, 0
      %v499 = vsel %vm162, %v496, 0
      %501 = vmatprep.subr.mxu0 0.0
      %502 = vmatpush1.xpose.msra.mxu0 0.0
      %503 = vmatprep.subr.mxu0 0.0
      %504 = vmatpush1.xpose.msra.mxu0 0.0
      %505 = vmatprep.subr.mxu0 0.0
      %506 = vmatpush1.xpose.msra.mxu0 0.0
      %507 = vmatprep.subr.mxu0 0.0
      %508 = vmatpush1.xpose.msra.mxu0 0.0
      %509 = vmatprep.subr.mxu0 0.0
      %510 = vmatpush1.xpose.msra.mxu0 0.0
      %511 = vmatprep.subr.mxu0 0.0
      %512 = vmatpush1.xpose.msra.mxu0 0.0
      %513 = vmatprep.subr.mxu0 0.0
      %514 = vmatpush1.xpose.msra.mxu0 0.0
      %515 = vmatprep.subr.mxu0 0.0
      %516 = vmatpush1.xpose.msra.mxu0 0.0
      %517 = vmatprep.subr.mxu0 0.0
      %518 = vmatpush1.xpose.msra.mxu0 0.0
      %519 = vmatprep.subr.mxu0 0.0
      %520 = vmatpush1.xpose.msra.mxu0 0.0
      %521 = vmatprep.subr.mxu0 0.0
      %522 = vmatpush1.xpose.msra.mxu0 0.0
      %523 = vmatprep.subr.mxu0 0.0
      %524 = vmatpush1.xpose.msra.mxu0 0.0
      %525 = vmatprep.subr.mxu0 0.0
      %526 = vmatpush1.xpose.msra.mxu0 0.0
      %527 = vmatprep.subr.mxu0 0.0
      %528 = vmatpush1.xpose.msra.mxu0 0.0
      %529 = vmatprep.subr.mxu0 0.0
      %530 = vmatpush1.xpose.msra.mxu0 0.0
      %531 = vmatprep.subr.mxu0 0.0
      %532 = vmatpush1.xpose.msra.mxu0 %v499
      %533 = vmatprep.subr.mxu0 0.0
      %534 = vmatpush2.xpose.msra.mxu0 0.0
      %535 = vmatprep.subr.mxu0 0.0
      %536 = vmatpush2.xpose.msra.mxu0 0.0
      %537 = vmatprep.subr.mxu0 0.0
      %538 = vmatpush2.xpose.msra.mxu0 0.0
      %539 = vmatprep.subr.mxu0 0.0
      %540 = vmatpush2.xpose.msra.mxu0 0.0
      %541 = vmatprep.subr.mxu0 0.0
      %542 = vmatpush2.xpose.msra.mxu0 0.0
      %543 = vmatprep.subr.mxu0 0.0
      %544 = vmatpush2.xpose.msra.mxu0 0.0
      %545 = vmatprep.subr.mxu0 0.0
      %546 = vmatpush2.xpose.msra.mxu0 0.0
      %547 = vmatprep.subr.mxu0 0.0
      %548 = vmatpush2.xpose.msra.mxu0 0.0
      %549 = vmatprep.subr.mxu0 0.0
      %550 = vmatpush2.xpose.msra.mxu0 0.0
      %551 = vmatprep.subr.mxu0 0.0
      %552 = vmatpush2.xpose.msra.mxu0 0.0
      %553 = vmatprep.subr.mxu0 0.0
      %554 = vmatpush2.xpose.msra.mxu0 0.0
      %555 = vmatprep.subr.mxu0 0.0
      %556 = vmatpush2.xpose.msra.mxu0 0.0
      %557 = vmatprep.subr.mxu0 0.0
      %558 = vmatpush2.xpose.msra.mxu0 0.0
      %559 = vmatprep.subr.mxu0 0.0
      %560 = vmatpush2.xpose.msra.mxu0 0.0
      %561 = vmatprep.subr.mxu0 0.0
      %562 = vmatpush2.xpose.msra.mxu0 0.0
      %563 = vmatprep.subr.mxu0 0.0
      %564 = vmatpush2.xpose.msra.mxu0 0.0
      %565 = vmatprep.mubr.f32.mxu0 0.0
      %566 = vmatmul.mubr.f32.gmra.mxu0 %v497
      %v567 = vpop.f32.mrf.mxu0
      %v568 = vadd.f32 0.0, %v567
      %v569 = vpop.f32.mrf.mxu0
      %570 = vdwg.mxu0
      %v571 = vmul.f32 %v568, 0.35355338
      %v572 = vadd.f32 %v571, 0.0
      %v573 = vsel %vm162, %v572, -inf
      %574 = vmax.xlane.f32.xlu0 %v573
      %v575 = vpop.xlane.xlu0 %574
      %v576 = vsub.f32 %v572, %v575
      %v577 = vmul.f32 %v576, 1.442695
      %v578 = vpow.pop %v577
      %v579 = vsel %vm162, %v578, 0.0
      %580 = vadd.xlane.f32.xlu0 %v579
      %v581 = vpop.xlane.xlu0 %580
      %582 = vrot.lane.b32.xlu0 %v161, 112
      %v583 = vpop.permute.xlu0 %582
      %v586 = vsel %vm162, %v578, 0
      %588 = vmatprep.subr.mxu0 0.0
      %589 = vmatpush1.msra.mxu0 0.0
      %590 = vmatprep.subr.mxu0 0.0
      %591 = vmatpush1.msra.mxu0 0.0
      %592 = vmatprep.subr.mxu0 0.0
      %593 = vmatpush1.msra.mxu0 0.0
      %594 = vmatprep.subr.mxu0 0.0
      %595 = vmatpush1.msra.mxu0 0.0
      %596 = vmatprep.subr.mxu0 0.0
      %597 = vmatpush1.msra.mxu0 0.0
      %598 = vmatprep.subr.mxu0 0.0
      %599 = vmatpush1.msra.mxu0 0.0
      %600 = vmatprep.subr.mxu0 0.0
      %601 = vmatpush1.msra.mxu0 0.0
      %602 = vmatprep.subr.mxu0 0.0
      %603 = vmatpush1.msra.mxu0 0.0
      %604 = vmatprep.subr.mxu0 0.0
      %605 = vmatpush1.msra.mxu0 0.0
      %606 = vmatprep.subr.mxu0 0.0
      %607 = vmatpush1.msra.mxu0 0.0
      %608 = vmatprep.subr.mxu0 0.0
      %609 = vmatpush1.msra.mxu0 0.0
      %610 = vmatprep.subr.mxu0 0.0
      %611 = vmatpush1.msra.mxu0 0.0
      %612 = vmatprep.subr.mxu0 0.0
      %613 = vmatpush1.msra.mxu0 0.0
      %614 = vmatprep.subr.mxu0 0.0
      %615 = vmatpush1.msra.mxu0 0.0
      %616 = vmatprep.subr.mxu0 0.0
      %617 = vmatpush1.msra.mxu0 0.0
      %618 = vmatprep.subr.mxu0 0.0
      %619 = vmatpush1.msra.mxu0 %v583
      %620 = vmatprep.subr.mxu0 0.0
      %621 = vmatpush2.msra.mxu0 0.0
      %622 = vmatprep.subr.mxu0 0.0
      %623 = vmatpush2.msra.mxu0 0.0
      %624 = vmatprep.subr.mxu0 0.0
      %625 = vmatpush2.msra.mxu0 0.0
      %626 = vmatprep.subr.mxu0 0.0
      %627 = vmatpush2.msra.mxu0 0.0
      %628 = vmatprep.subr.mxu0 0.0
      %629 = vmatpush2.msra.mxu0 0.0
      %630 = vmatprep.subr.mxu0 0.0
      %631 = vmatpush2.msra.mxu0 0.0
      %632 = vmatprep.subr.mxu0 0.0
      %633 = vmatpush2.msra.mxu0 0.0
      %634 = vmatprep.subr.mxu0 0.0
      %635 = vmatpush2.msra.mxu0 0.0
      %636 = vmatprep.subr.mxu0 0.0
      %637 = vmatpush2.msra.mxu0 0.0
      %638 = vmatprep.subr.mxu0 0.0
      %639 = vmatpush2.msra.mxu0 0.0
      %640 = vmatprep.subr.mxu0 0.0
      %641 = vmatpush2.msra.mxu0 0.0
      %642 = vmatprep.subr.mxu0 0.0
      %643 = vmatpush2.msra.mxu0 0.0
      %644 = vmatprep.subr.mxu0 0.0
      %645 = vmatpush2.msra.mxu0 0.0
      %646 = vmatprep.subr.mxu0 0.0
      %647 = vmatpush2.msra.mxu0 0.0
      %648 = vmatprep.subr.mxu0 0.0
      %649 = vmatpush2.msra.mxu0 0.0
      %650 = vmatprep.subr.mxu0 0.0
      %651 = vmatpush2.msra.mxu0 0.0
      %652 = vmatprep.mubr.f32.mxu0 0.0
      %653 = vmatmul.mubr.f32.gmra.mxu0 %v586
      %v654 = vpop.f32.mrf.mxu0
      %v655 = vadd.f32 0.0, %v654
      %v656 = vpop.f32.mrf.mxu0
      %657 = vdwg.mxu0
      %v658 = vrcp.pop %v581
      %v659 = vmul.f32 %v655, %v658
      %660 = vrot.lane.b32.xlu0 %v159, 104
      %v661 = vpop.permute.xlu0 %660
      %662 = vrot.lane.b32.xlu0 %v160, 104
      %v663 = vpop.permute.xlu0 %662
      %v664 = vsel %vm162, %v661, 0
      %v666 = vsel %vm162, %v663, 0
      %668 = vmatprep.subr.mxu0 0.0
      %669 = vmatpush1.xpose.msra.mxu0 0.0
      %670 = vmatprep.subr.mxu0 0.0
      %671 = vmatpush1.xpose.msra.mxu0 0.0
      %672 = vmatprep.subr.mxu0 0.0
      %673 = vmatpush1.xpose.msra.mxu0 0.0
      %674 = vmatprep.subr.mxu0 0.0
      %675 = vmatpush1.xpose.msra.mxu0 0.0
      %676 = vmatprep.subr.mxu0 0.0
      %677 = vmatpush1.xpose.msra.mxu0 0.0
      %678 = vmatprep.subr.mxu0 0.0
      %679 = vmatpush1.xpose.msra.mxu0 0.0
      %680 = vmatprep.subr.mxu0 0.0
      %681 = vmatpush1.xpose.msra.mxu0 0.0
      %682 = vmatprep.subr.mxu0 0.0
      %683 = vmatpush1.xpose.msra.mxu0 0.0
      %684 = vmatprep.subr.mxu0 0.0
      %685 = vmatpush1.xpose.msra.mxu0 0.0
      %686 = vmatprep.subr.mxu0 0.0
      %687 = vmatpush1.xpose.msra.mxu0 0.0
      %688 = vmatprep.subr.mxu0 0.0
      %689 = vmatpush1.xpose.msra.mxu0 0.0
      %690 = vmatprep.subr.mxu0 0.0
      %691 = vmatpush1.xpose.msra.mxu0 0.0
      %692 = vmatprep.subr.mxu0 0.0
      %693 = vmatpush1.xpose.msra.mxu0 0.0
      %694 = vmatprep.subr.mxu0 0.0
      %695 = vmatpush1.xpose.msra.mxu0 0.0
      %696 = vmatprep.subr.mxu0 0.0
      %697 = vmatpush1.xpose.msra.mxu0 0.0
      %698 = vmatprep.subr.mxu0 0.0
      %699 = vmatpush1.xpose.msra.mxu0 %v666
      %700 = vmatprep.subr.mxu0 0.0
      %701 = vmatpush2.xpose.msra.mxu0 0.0
      %702 = vmatprep.subr.mxu0 0.0
      %703 = vmatpush2.xpose.msra.mxu0 0.0
      %704 = vmatprep.subr.mxu0 0.0
      %705 = vmatpush2.xpose.msra.mxu0 0.0
      %706 = vmatprep.subr.mxu0 0.0
      %707 = vmatpush2.xpose.msra.mxu0 0.0
      %708 = vmatprep.subr.mxu0 0.0
      %709 = vmatpush2.xpose.msra.mxu0 0.0
      %710 = vmatprep.subr.mxu0 0.0
      %711 = vmatpush2.xpose.msra.mxu0 0.0
      %712 = vmatprep.subr.mxu0 0.0
      %713 = vmatpush2.xpose.msra.mxu0 0.0
      %714 = vmatprep.subr.mxu0 0.0
      %715 = vmatpush2.xpose.msra.mxu0 0.0
      %716 = vmatprep.subr.mxu0 0.0
      %717 = vmatpush2.xpose.msra.mxu0 0.0
      %718 = vmatprep.subr.mxu0 0.0
      %719 = vmatpush2.xpose.msra.mxu0 0.0
      %720 = vmatprep.subr.mxu0 0.0
      %721 = vmatpush2.xpose.msra.mxu0 0.0
      %722 = vmatprep.subr.mxu0 0.0
      %723 = vmatpush2.xpose.msra.mxu0 0.0
      %724 = vmatprep.subr.mxu0 0.0
      %725 = vmatpush2.xpose.msra.mxu0 0.0
      %726 = vmatprep.subr.mxu0 0.0
      %727 = vmatpush2.xpose.msra.mxu0 0.0
      %728 = vmatprep.subr.mxu0 0.0
      %729 = vmatpush2.xpose.msra.mxu0 0.0
      %730 = vmatprep.subr.mxu0 0.0
      %731 = vmatpush2.xpose.msra.mxu0 0.0
      %732 = vmatprep.mubr.f32.mxu0 0.0
      %733 = vmatmul.mubr.f32.gmra.mxu0 %v664
      %v734 = vpop.f32.mrf.mxu0
      %v735 = vadd.f32 0.0, %v734
      %v736 = vpop.f32.mrf.mxu0
      %737 = vdwg.mxu0
      %v738 = vmul.f32 %v735, 0.35355338
      %v739 = vadd.f32 %v738, 0.0
      %v740 = vsel %vm162, %v739, -inf
      %741 = vmax.xlane.f32.xlu0 %v740
      %v742 = vpop.xlane.xlu0 %741
      %v743 = vsub.f32 %v739, %v742
      %v744 = vmul.f32 %v743, 1.442695
      %v745 = vpow.pop %v744
      %v746 = vsel %vm162, %v745, 0.0
      %747 = vadd.xlane.f32.xlu0 %v746
      %v748 = vpop.xlane.xlu0 %747
      %749 = vrot.lane.b32.xlu0 %v161, 104
      %v750 = vpop.permute.xlu0 %749
      %v753 = vsel %vm162, %v745, 0
      %755 = vmatprep.subr.mxu0 0.0
      %756 = vmatpush1.msra.mxu0 0.0
      %757 = vmatprep.subr.mxu0 0.0
      %758 = vmatpush1.msra.mxu0 0.0
      %759 = vmatprep.subr.mxu0 0.0
      %760 = vmatpush1.msra.mxu0 0.0
      %761 = vmatprep.subr.mxu0 0.0
      %762 = vmatpush1.msra.mxu0 0.0
      %763 = vmatprep.subr.mxu0 0.0
      %764 = vmatpush1.msra.mxu0 0.0
      %765 = vmatprep.subr.mxu0 0.0
      %766 = vmatpush1.msra.mxu0 0.0
      %767 = vmatprep.subr.mxu0 0.0
      %768 = vmatpush1.msra.mxu0 0.0
      %769 = vmatprep.subr.mxu0 0.0
      %770 = vmatpush1.msra.mxu0 0.0
      %771 = vmatprep.subr.mxu0 0.0
      %772 = vmatpush1.msra.mxu0 0.0
      %773 = vmatprep.subr.mxu0 0.0
      %774 = vmatpush1.msra.mxu0 0.0
      %775 = vmatprep.subr.mxu0 0.0
      %776 = vmatpush1.msra.mxu0 0.0
      %777 = vmatprep.subr.mxu0 0.0
      %778 = vmatpush1.msra.mxu0 0.0
      %779 = vmatprep.subr.mxu0 0.0
      %780 = vmatpush1.msra.mxu0 0.0
      %781 = vmatprep.subr.mxu0 0.0
      %782 = vmatpush1.msra.mxu0 0.0
      %783 = vmatprep.subr.mxu0 0.0
      %784 = vmatpush1.msra.mxu0 0.0
      %785 = vmatprep.subr.mxu0 0.0
      %786 = vmatpush1.msra.mxu0 %v750
      %787 = vmatprep.subr.mxu0 0.0
      %788 = vmatpush2.msra.mxu0 0.0
      %789 = vmatprep.subr.mxu0 0.0
      %790 = vmatpush2.msra.mxu0 0.0
      %791 = vmatprep.subr.mxu0 0.0
      %792 = vmatpush2.msra.mxu0 0.0
      %793 = vmatprep.subr.mxu0 0.0
      %794 = vmatpush2.msra.mxu0 0.0
      %795 = vmatprep.subr.mxu0 0.0
      %796 = vmatpush2.msra.mxu0 0.0
      %797 = vmatprep.subr.mxu0 0.0
      %798 = vmatpush2.msra.mxu0 0.0
      %799 = vmatprep.subr.mxu0 0.0
      %800 = vmatpush2.msra.mxu0 0.0
      %801 = vmatprep.subr.mxu0 0.0
      %802 = vmatpush2.msra.mxu0 0.0
      %803 = vmatprep.subr.mxu0 0.0
      %804 = vmatpush2.msra.mxu0 0.0
      %805 = vmatprep.subr.mxu0 0.0
      %806 = vmatpush2.msra.mxu0 0.0
      %807 = vmatprep.subr.mxu0 0.0
      %808 = vmatpush2.msra.mxu0 0.0
      %809 = vmatprep.subr.mxu0 0.0
      %810 = vmatpush2.msra.mxu0 0.0
      %811 = vmatprep.subr.mxu0 0.0
      %812 = vmatpush2.msra.mxu0 0.0
      %813 = vmatprep.subr.mxu0 0.0
      %814 = vmatpush2.msra.mxu0 0.0
      %815 = vmatprep.subr.mxu0 0.0
      %816 = vmatpush2.msra.mxu0 0.0
      %817 = vmatprep.subr.mxu0 0.0
      %818 = vmatpush2.msra.mxu0 0.0
      %819 = vmatprep.mubr.f32.mxu0 0.0
      %820 = vmatmul.mubr.f32.gmra.mxu0 %v753
      %v821 = vpop.f32.mrf.mxu0
      %v822 = vadd.f32 0.0, %v821
      %v823 = vpop.f32.mrf.mxu0
      %824 = vdwg.mxu0
      %v825 = vrcp.pop %v748
      %v826 = vmul.f32 %v822, %v825
      %828 = vrot.lane.b32.xlu0 %v492, 8
      %v829 = vpop.permute.xlu0 %828
      %832 = vrot.lane.b32.xlu0 %v659, 16
      %v833 = vpop.permute.xlu0 %832
      %836 = vrot.lane.b32.xlu0 %v826, 24
      %v837 = vpop.permute.xlu0 %836
      %v839 = vsel %vm162, %v324, %v829
      %vm840 = vcmask 130048
      %v841 = vsel %vm840, %v839, %v833
      %vm842 = vcmask 195584
      %v843 = vsel %vm842, %v841, %v837
      %vm844 = vcmask 261120
      %v845 = vsel %vm844, %v843, 0.0
      %846 = vst [vmem:[%s158] sm:$0xff] %v845
      %p847 = scmp.lt.s32.totalorder %s13, 1
      %s848 = scalar_select %p847, %s13, 1
      %s849 = smul.addr %s848, 8
      %s850 = scalar_lea.vmem %s2, %s849
      // Predicated region
      $region29: #{transformer_decoder_layer.14} parent=27 // pred_check
        %p851 = pneg %p83
      $region30: #{transformer_decoder_layer.14} parent=27 // pred_check_branch
        %853 = sbr.rel (%p851) target = $region32
      $region31: #{transformer_decoder_layer.14} parent=27 // pred_region
        _
      $region32: #{transformer_decoder_layer.14} parent=27 // pred_fallthru
        _
    $region28: #{transformer_decoder_layer.14} parent=5 // pred_fallthru
      _
    %p854 = scmp.le.s32.totalorder 2, %s8
    // Predicated region
    $region33: #{transformer_decoder_layer.14} parent=5 // pred_check
      %p855 = pneg %p854
    $region34: #{transformer_decoder_layer.14} parent=5 // pred_check_branch
      %857 = sbr.rel (%p855) target = $region36
    $region35: #{transformer_decoder_layer.14} parent=5 // pred_region
      %s858 = ssub.s32 %s8, 2
      // Predicated region
      $region37: #{transformer_decoder_layer.14} parent=35 // pred_check
        %p859 = pneg %p89
      $region38: #{transformer_decoder_layer.14} parent=35 // pred_check_branch
        %861 = sbr.rel (%p859) target = $region40
      $region39: #{transformer_decoder_layer.14} parent=35 // pred_region
        %p862 = scmp.lt.s32.totalorder %s14, 1
        %s863 = scalar_select %p862, %s14, 1
        %s864 = smul.addr %s863, 8
        %s865 = scalar_lea.vmem %s2, %s864
      $region40: #{transformer_decoder_layer.14} parent=35 // pred_fallthru
        _
    $region36: #{transformer_decoder_layer.14} parent=5 // pred_fallthru
      _
  $region6: #{transformer_decoder_layer.14} parent=0 // loop_footer
    %s12 = sadd.s32 1, %s8
  $region7: #{transformer_decoder_layer.14} parent=0 // loop_footer_branch
    %7 = sbr.rel target = $region3
  $region8: #{transformer_decoder_layer.14} parent=0 // loop_exit
    _

</llo_original>
